<compile_context>
chip_gen: v7x
topology: tpu7x:2x2x1
jax: 0.10.0
libtpu: 0.0.40
codegen_flags: <defaults>
</compile_context>

<pallas_src>
import math

import jax
import jax.numpy as jnp
from jax import lax
from jax.experimental import pallas as pl
from jax.experimental.pallas import tpu as pltpu


def _make_intent_decoder_kernel(T: int, B: int, Hc: int, has_pooler: bool):
    """Build the fused IntentDecoder kernel for static (T, B, Hc, has_pooler)."""
    G = 4 * Hc

    def kernel(*refs):
        if has_pooler:
            (x_ref, lens_ref, wihf_ref, whhf_ref, bf_ref,
             wihb_ref, whhb_ref, bb_ref, wlin_ref, blin_ref,
             pooler_ref, out_ref, xgf_scr, xgb_scr) = refs
        else:
            (x_ref, lens_ref, wihf_ref, whhf_ref, bf_ref,
             wihb_ref, whhb_ref, bb_ref, wlin_ref, blin_ref,
             out_ref, xgf_scr, xgb_scr) = refs
            pooler_ref = None

        # ---- Stage 1: input projections for all timesteps (one MXU matmul / direction).
        x_flat = x_ref[...]                                   # (T*B, 2H), time-major
        xgf_scr[...] = (
            jnp.dot(x_flat, wihf_ref[...], preferred_element_type=jnp.float32)
            + bf_ref[...]
        )                                                     # (T*B, 4Hc)
        xgb_scr[...] = (
            jnp.dot(x_flat, wihb_ref[...], preferred_element_type=jnp.float32)
            + bb_ref[...]
        )

        lens = lens_ref[...]                                  # (B, 1) int32
        whh_f = whhf_ref[...]                                 # (Hc, 4Hc)
        whh_b = whhb_ref[...]

        def lstm_cell(gates, c_prev):
            # PyTorch gate order: i, f, g, o
            i = jax.nn.sigmoid(gates[:, 0:Hc])
            f = jax.nn.sigmoid(gates[:, Hc:2 * Hc])
            g = jnp.tanh(gates[:, 2 * Hc:3 * Hc])
            o = jax.nn.sigmoid(gates[:, 3 * Hc:4 * Hc])
            c_new = f * c_prev + i * g
            h_new = o * jnp.tanh(c_new)
            return h_new, c_new

        def step(t, carry):
            h_f, c_f, h_b, c_b = carry

            # Forward direction consumes timestep t.
            g_f = xgf_scr[pl.ds(t * B, B), :] + jnp.dot(
                h_f, whh_f, preferred_element_type=jnp.float32)
            h_new, c_new = lstm_cell(g_f, c_f)
            m = lens > t                                      # (B, 1) mask: valid timestep?
            h_f = jnp.where(m, h_new, h_f)
            c_f = jnp.where(m, c_new, c_f)

            # Backward direction consumes timestep T-1-t.
            tb = T - 1 - t
            g_b = xgb_scr[pl.ds(tb * B, B), :] + jnp.dot(
                h_b, whh_b, preferred_element_type=jnp.float32)
            h_new, c_new = lstm_cell(g_b, c_b)
            m = lens > tb
            h_b = jnp.where(m, h_new, h_b)
            c_b = jnp.where(m, c_new, c_b)
            return h_f, c_f, h_b, c_b

        z = jnp.zeros((B, Hc), jnp.float32)
        h_f, c_f, h_b, c_b = lax.fori_loop(0, T, step, (z, z, z, z), unroll=True)

        # h_state = cat([h_n[-1] (reverse), h_n[-2] (forward)], dim=1); dropout = identity (eval).
        # TODO(synk): training-mode stochastic dropout not implemented (inference semantics).
        # Linear(cat([...])) == sum of per-chunk matmuls -> avoids in-kernel lane concat.
        w_lin = wlin_ref[...]                                 # (H [+pd], num_label)
        out = (
            jnp.dot(h_b, w_lin[0:Hc, :], preferred_element_type=jnp.float32)
            + jnp.dot(h_f, w_lin[Hc:2 * Hc, :], preferred_element_type=jnp.float32)
            + blin_ref[...]
        )
        if pooler_ref is not None:
            out = out + jnp.dot(
                pooler_ref[...], w_lin[2 * Hc:, :], preferred_element_type=jnp.float32)
        out_ref[...] = out

    return kernel


def intent_decoder_forward(x, lengths, params, pooler=None):
    """Pallas equivalent of IntentDecoder.forward(input, len_list, pooler)."""
    x = x.astype(jnp.float32)
    B, T, D = x.shape                       # D = hidden_dim * 2

    w_ih_f = params["w_ih_l0"]              # (4Hc, 2H)
    w_hh_f = params["w_hh_l0"]              # (4Hc, Hc)
    b_f = params["b_ih_l0"] + params["b_hh_l0"]
    w_ih_b = params["w_ih_l0_reverse"]
    w_hh_b = params["w_hh_l0_reverse"]
    b_b = params["b_ih_l0_reverse"] + params["b_hh_l0_reverse"]
    w_lin = params["linear_w"]              # (num_label, H + pd)
    b_lin = params["linear_b"]              # (num_label,)

    Hc = w_hh_f.shape[1]
    G = 4 * Hc
    num_label = w_lin.shape[0]

    # Time-major, flattened layout so each timestep is a contiguous (B, *) row block.
    x_tm = jnp.transpose(x, (1, 0, 2)).reshape(T * B, D)
    lens = jnp.asarray(lengths, jnp.int32).reshape(B, 1)

    inputs = [
        x_tm,
        lens,
        w_ih_f.T, w_hh_f.T, b_f.reshape(1, G),
        w_ih_b.T, w_hh_b.T, b_b.reshape(1, G),
        w_lin.T, b_lin.reshape(1, num_label),
    ]
    has_pooler = pooler is not None
    if has_pooler:
        inputs.append(pooler.astype(jnp.float32))

    kernel = _make_intent_decoder_kernel(T=T, B=B, Hc=Hc, has_pooler=has_pooler)

    out = pl.pallas_call(
        kernel,
        out_shape=jax.ShapeDtypeStruct((B, num_label), jnp.float32),
        in_specs=[pl.BlockSpec(memory_space=pltpu.MemorySpace.VMEM)] * len(inputs),
        out_specs=pl.BlockSpec(memory_space=pltpu.MemorySpace.VMEM),
        scratch_shapes=[
            pltpu.VMEM((T * B, G), jnp.float32),   # forward-dir precomputed input gates
            pltpu.VMEM((T * B, G), jnp.float32),   # backward-dir precomputed input gates
        ],
    )(*inputs)
    return out


# ----------------------------- pure-JAX reference -----------------------------

def intent_decoder_ref(x, lengths, params, pooler=None):
    B, T, _ = x.shape
    w_hh_f = params["w_hh_l0"]
    Hc = w_hh_f.shape[1]
    lens = jnp.asarray(lengths, jnp.int32)

    def run_dir(w_ih, w_hh, b, reverse):
        xg = jnp.einsum("btd,gd->btg", x, w_ih) + b
        h = jnp.zeros((B, Hc), jnp.float32)
        c = jnp.zeros((B, Hc), jnp.float32)
        steps = range(T - 1, -1, -1) if reverse else range(T)
        for t in steps:
            gates = xg[:, t, :] + h @ w_hh.T
            i = jax.nn.sigmoid(gates[:, 0:Hc])
            f = jax.nn.sigmoid(gates[:, Hc:2 * Hc])
            g = jnp.tanh(gates[:, 2 * Hc:3 * Hc])
            o = jax.nn.sigmoid(gates[:, 3 * Hc:4 * Hc])
            c_new = f * c + i * g
            h_new = o * jnp.tanh(c_new)
            m = (lens > t)[:, None]
            h = jnp.where(m, h_new, h)
            c = jnp.where(m, c_new, c)
        return h

    h_f = run_dir(params["w_ih_l0"], params["w_hh_l0"],
                  params["b_ih_l0"] + params["b_hh_l0"], reverse=False)
    h_b = run_dir(params["w_ih_l0_reverse"], params["w_hh_l0_reverse"],
                  params["b_ih_l0_reverse"] + params["b_hh_l0_reverse"], reverse=True)
    h_cat = jnp.concatenate([h_b, h_f], axis=1)        # [h_n[-1], h_n[-2]]
    if pooler is not None:
        h_cat = jnp.concatenate([h_cat, pooler], axis=1)
    return h_cat @ params["linear_w"].T + params["linear_b"]


def init_params(key, hidden_dim, num_label, pretrained_dim=0):
    """PyTorch-style default init (U(-1/sqrt(fan), 1/sqrt(fan))), deterministic."""
    Hc = hidden_dim // 2
    D = hidden_dim * 2
    ks = jax.random.split(key, 10)

    def u(k, shape, bound):
        return jax.random.uniform(k, shape, jnp.float32, -bound, bound)

    kl = 1.0 / math.sqrt(Hc)
    params = {
        "w_ih_l0": u(ks[0], (4 * Hc, D), kl),
        "w_hh_l0": u(ks[1], (4 * Hc, Hc), kl),
        "b_ih_l0": u(ks[2], (4 * Hc,), kl),
        "b_hh_l0": u(ks[3], (4 * Hc,), kl),
        "w_ih_l0_reverse": u(ks[4], (4 * Hc, D), kl),
        "w_hh_l0_reverse": u(ks[5], (4 * Hc, Hc), kl),
        "b_ih_l0_reverse": u(ks[6], (4 * Hc,), kl),
        "b_hh_l0_reverse": u(ks[7], (4 * Hc,), kl),
    }
    fan_in = hidden_dim + pretrained_dim
    klin = 1.0 / math.sqrt(fan_in)
    params["linear_w"] = u(ks[8], (num_label, fan_in), klin)
    params["linear_b"] = u(ks[9], (num_label,), klin)
    return params


if __name__ == "__main__":
    hidden_dim, num_label, pretrained_dim = 32, 8, 16
    batch, seq = 2, 8

    key = jax.random.PRNGKey(0)
    k_p, k_x, k_pool = jax.random.split(key, 3)

    params = init_params(k_p, hidden_dim, num_label, pretrained_dim)
    x = jax.random.normal(k_x, (batch, seq, hidden_dim * 2), jnp.float32)
    lengths = jnp.array([8, 5], jnp.int32)   # sorted descending (pack_padded_sequence)
    pooler = jax.random.normal(k_pool, (batch, pretrained_dim), jnp.float32)

    # With pooler.
    out = jax.block_until_ready(intent_decoder_forward(x, lengths, params, pooler=pooler))
    ref = intent_decoder_ref(x, lengths, params, pooler=pooler)
    assert out.shape == (batch, num_label), out.shape
    assert jnp.allclose(out, ref, atol=1e-4, rtol=1e-4), "mismatch (with pooler)"

    # Without pooler (pretrained_dim=0 linear).
    params0 = init_params(k_p, hidden_dim, num_label, 0)
    out0 = jax.block_until_ready(intent_decoder_forward(x, lengths, params0))
    ref0 = intent_decoder_ref(x, lengths, params0)
    assert out0.shape == (batch, num_label), out0.shape
    assert jnp.allclose(out0, ref0, atol=1e-4, rtol=1e-4), "mismatch (no pooler)"

    print("KERNEL_OK")
</pallas_src>

<mosaic_0001>
module attributes {stable_mosaic.version = 11 : i64} {
  func.func @kernel(%arg0: memref<16x64xf32, #tpu.memory_space<vmem>>, %arg1: memref<2x1xi32, #tpu.memory_space<vmem>>, %arg2: memref<64x64xf32, #tpu.memory_space<vmem>>, %arg3: memref<16x64xf32, #tpu.memory_space<vmem>>, %arg4: memref<1x64xf32, #tpu.memory_space<vmem>>, %arg5: memref<64x64xf32, #tpu.memory_space<vmem>>, %arg6: memref<16x64xf32, #tpu.memory_space<vmem>>, %arg7: memref<1x64xf32, #tpu.memory_space<vmem>>, %arg8: memref<48x8xf32, #tpu.memory_space<vmem>>, %arg9: memref<1x8xf32, #tpu.memory_space<vmem>>, %arg10: memref<2x16xf32, #tpu.memory_space<vmem>>, %arg11: memref<2x8xf32, #tpu.memory_space<vmem>>, %arg12: memref<16x64xf32, #tpu.memory_space<vmem>>, %arg13: memref<16x64xf32, #tpu.memory_space<vmem>>) attributes {dimension_semantics = [], scalar_prefetch = 0 : i64, scratch_operands = 2 : i64, tpu.core_type = #tpu.core_type<tc>} {
    %c0 = arith.constant 0 : index
    %c0_0 = arith.constant 0 : index
    %0 = vector.load %arg0[%c0, %c0_0] : memref<16x64xf32, #tpu.memory_space<vmem>>, vector<16x64xf32>
    %c0_1 = arith.constant 0 : index
    %c0_2 = arith.constant 0 : index
    %1 = vector.load %arg2[%c0_1, %c0_2] : memref<64x64xf32, #tpu.memory_space<vmem>>, vector<64x64xf32>
    %cst = arith.constant dense<0.000000e+00> : vector<16x64xf32>
    %2 = tpu.matmul %0, %1, %cst {dimension_numbers = #tpu.dot_dimension_numbers<[1], [0], [0], [1], [0, 0, 1, 1], [], []>} : vector<16x64xf32>, vector<64x64xf32>, vector<16x64xf32> -> vector<16x64xf32>
    %c0_3 = arith.constant 0 : index
    %c0_4 = arith.constant 0 : index
    %3 = vector.load %arg4[%c0_3, %c0_4] : memref<1x64xf32, #tpu.memory_space<vmem>>, vector<1x64xf32>
    %4 = vector.broadcast %3 : vector<1x64xf32> to vector<16x64xf32>
    %5 = arith.addf %2, %4 : vector<16x64xf32>
    %c0_5 = arith.constant 0 : index
    %c0_6 = arith.constant 0 : index
    %6 = vector.load %arg12[%c0_5, %c0_6] : memref<16x64xf32, #tpu.memory_space<vmem>>, vector<16x64xf32>
    tpu.vector_store %arg12[%c0_5, %c0_6], %5 {strides = array<i32>} : memref<16x64xf32, #tpu.memory_space<vmem>>, vector<16x64xf32>,
    %c0_7 = arith.constant 0 : index
    %c0_8 = arith.constant 0 : index
    %7 = vector.load %arg5[%c0_7, %c0_8] : memref<64x64xf32, #tpu.memory_space<vmem>>, vector<64x64xf32>
    %cst_9 = arith.constant dense<0.000000e+00> : vector<16x64xf32>
    %8 = tpu.matmul %0, %7, %cst_9 {dimension_numbers = #tpu.dot_dimension_numbers<[1], [0], [0], [1], [0, 0, 1, 1], [], []>} : vector<16x64xf32>, vector<64x64xf32>, vector<16x64xf32> -> vector<16x64xf32>
    %c0_10 = arith.constant 0 : index
    %c0_11 = arith.constant 0 : index
    %9 = vector.load %arg7[%c0_10, %c0_11] : memref<1x64xf32, #tpu.memory_space<vmem>>, vector<1x64xf32>
    %10 = vector.broadcast %9 : vector<1x64xf32> to vector<16x64xf32>
    %11 = arith.addf %8, %10 : vector<16x64xf32>
    %c0_12 = arith.constant 0 : index
    %c0_13 = arith.constant 0 : index
    %12 = vector.load %arg13[%c0_12, %c0_13] : memref<16x64xf32, #tpu.memory_space<vmem>>, vector<16x64xf32>
    tpu.vector_store %arg13[%c0_12, %c0_13], %11 {strides = array<i32>} : memref<16x64xf32, #tpu.memory_space<vmem>>, vector<16x64xf32>,
    %c0_14 = arith.constant 0 : index
    %c0_15 = arith.constant 0 : index
    %13 = vector.load %arg1[%c0_14, %c0_15] : memref<2x1xi32, #tpu.memory_space<vmem>>, vector<2x1xi32>
    %c0_16 = arith.constant 0 : index
    %c0_17 = arith.constant 0 : index
    %14 = vector.load %arg3[%c0_16, %c0_17] : memref<16x64xf32, #tpu.memory_space<vmem>>, vector<16x64xf32>
    %c0_18 = arith.constant 0 : index
    %c0_19 = arith.constant 0 : index
    %15 = vector.load %arg6[%c0_18, %c0_19] : memref<16x64xf32, #tpu.memory_space<vmem>>, vector<16x64xf32>
    %cst_20 = arith.constant 0.000000e+00 : f32
    %16 = vector.broadcast %cst_20 : f32 to vector<2x16xf32>
    %c0_i32 = arith.constant 0 : i32
    %c2_i32 = arith.constant 2 : i32
    %17 = arith.muli %c0_i32, %c2_i32 : i32
    %18 = arith.index_cast %17 : i32 to index
    %c0_21 = arith.constant 0 : index
    %19 = vector.load %arg12[%18, %c0_21] : memref<16x64xf32, #tpu.memory_space<vmem>>, vector<2x64xf32>
    %cst_22 = arith.constant dense<0.000000e+00> : vector<2x64xf32>
    %20 = tpu.matmul %16, %14, %cst_22 {dimension_numbers = #tpu.dot_dimension_numbers<[1], [0], [0], [1], [0, 0, 1, 1], [], []>} : vector<2x16xf32>, vector<16x64xf32>, vector<2x64xf32> -> vector<2x64xf32>
    %21 = arith.addf %19, %20 : vector<2x64xf32>
    %22 = vector.extract_strided_slice %21 {offsets = [0, 0], sizes = [2, 16], strides = [1, 1]} : vector<2x64xf32> to vector<2x16xf32>
    %23 = arith.negf %22 : vector<2x16xf32>
    %24 = math.exp %23 : vector<2x16xf32>
    %cst_23 = arith.constant 1.000000e+00 : f32
    %25 = vector.broadcast %cst_23 : f32 to vector<2x16xf32>
    %26 = arith.addf %25, %24 : vector<2x16xf32>
    %27 = arith.divf %25, %26 : vector<2x16xf32>
    %28 = vector.extract_strided_slice %21 {offsets = [0, 16], sizes = [2, 16], strides = [1, 1]} : vector<2x64xf32> to vector<2x16xf32>
    %29 = arith.negf %28 : vector<2x16xf32>
    %30 = math.exp %29 : vector<2x16xf32>
    %cst_24 = arith.constant 1.000000e+00 : f32
    %31 = vector.broadcast %cst_24 : f32 to vector<2x16xf32>
    %32 = arith.addf %31, %30 : vector<2x16xf32>
    %33 = arith.divf %31, %32 : vector<2x16xf32>
    %34 = vector.extract_strided_slice %21 {offsets = [0, 32], sizes = [2, 16], strides = [1, 1]} : vector<2x64xf32> to vector<2x16xf32>
    %35 = math.tanh %34 : vector<2x16xf32>
    %36 = vector.extract_strided_slice %21 {offsets = [0, 48], sizes = [2, 16], strides = [1, 1]} : vector<2x64xf32> to vector<2x16xf32>
    %37 = arith.negf %36 : vector<2x16xf32>
    %38 = math.exp %37 : vector<2x16xf32>
    %cst_25 = arith.constant 1.000000e+00 : f32
    %39 = vector.broadcast %cst_25 : f32 to vector<2x16xf32>
    %40 = arith.addf %39, %38 : vector<2x16xf32>
    %41 = arith.divf %39, %40 : vector<2x16xf32>
    %42 = arith.mulf %33, %16 : vector<2x16xf32>
    %43 = arith.mulf %27, %35 : vector<2x16xf32>
    %44 = arith.addf %42, %43 : vector<2x16xf32>
    %45 = math.tanh %44 : vector<2x16xf32>
    %46 = arith.mulf %41, %45 : vector<2x16xf32>
    %47 = vector.broadcast %c0_i32 : i32 to vector<2x1xi32>
    %48 = arith.cmpi sgt, %13, %47 : vector<2x1xi32>
    %49 = vector.shape_cast %48 : vector<2x1xi1> to vector<2x1xi1>
    %50 = vector.broadcast %49 : vector<2x1xi1> to vector<2x16xi1>
    %51 = arith.select %50, %46, %16 : vector<2x16xi1>, vector<2x16xf32>
    %52 = vector.shape_cast %48 : vector<2x1xi1> to vector<2x1xi1>
    %53 = vector.broadcast %52 : vector<2x1xi1> to vector<2x16xi1>
    %54 = arith.select %53, %44, %16 : vector<2x16xi1>, vector<2x16xf32>
    %c7_i32 = arith.constant 7 : i32
    %55 = arith.subi %c7_i32, %c0_i32 : i32
    %c2_i32_26 = arith.constant 2 : i32
    %56 = arith.muli %55, %c2_i32_26 : i32
    %57 = arith.index_cast %56 : i32 to index
    %c0_27 = arith.constant 0 : index
    %58 = vector.load %arg13[%57, %c0_27] : memref<16x64xf32, #tpu.memory_space<vmem>>, vector<2x64xf32>
    %cst_28 = arith.constant dense<0.000000e+00> : vector<2x64xf32>
    %59 = tpu.matmul %16, %15, %cst_28 {dimension_numbers = #tpu.dot_dimension_numbers<[1], [0], [0], [1], [0, 0, 1, 1], [], []>} : vector<2x16xf32>, vector<16x64xf32>, vector<2x64xf32> -> vector<2x64xf32>
    %60 = arith.addf %58, %59 : vector<2x64xf32>
    %61 = vector.extract_strided_slice %60 {offsets = [0, 0], sizes = [2, 16], strides = [1, 1]} : vector<2x64xf32> to vector<2x16xf32>
    %62 = arith.negf %61 : vector<2x16xf32>
    %63 = math.exp %62 : vector<2x16xf32>
    %cst_29 = arith.constant 1.000000e+00 : f32
    %64 = vector.broadcast %cst_29 : f32 to vector<2x16xf32>
    %65 = arith.addf %64, %63 : vector<2x16xf32>
    %66 = arith.divf %64, %65 : vector<2x16xf32>
    %67 = vector.extract_strided_slice %60 {offsets = [0, 16], sizes = [2, 16], strides = [1, 1]} : vector<2x64xf32> to vector<2x16xf32>
    %68 = arith.negf %67 : vector<2x16xf32>
    %69 = math.exp %68 : vector<2x16xf32>
    %cst_30 = arith.constant 1.000000e+00 : f32
    %70 = vector.broadcast %cst_30 : f32 to vector<2x16xf32>
    %71 = arith.addf %70, %69 : vector<2x16xf32>
    %72 = arith.divf %70, %71 : vector<2x16xf32>
    %73 = vector.extract_strided_slice %60 {offsets = [0, 32], sizes = [2, 16], strides = [1, 1]} : vector<2x64xf32> to vector<2x16xf32>
    %74 = math.tanh %73 : vector<2x16xf32>
    %75 = vector.extract_strided_slice %60 {offsets = [0, 48], sizes = [2, 16], strides = [1, 1]} : vector<2x64xf32> to vector<2x16xf32>
    %76 = arith.negf %75 : vector<2x16xf32>
    %77 = math.exp %76 : vector<2x16xf32>
    %cst_31 = arith.constant 1.000000e+00 : f32
    %78 = vector.broadcast %cst_31 : f32 to vector<2x16xf32>
    %79 = arith.addf %78, %77 : vector<2x16xf32>
    %80 = arith.divf %78, %79 : vector<2x16xf32>
    %81 = arith.mulf %72, %16 : vector<2x16xf32>
    %82 = arith.mulf %66, %74 : vector<2x16xf32>
    %83 = arith.addf %81, %82 : vector<2x16xf32>
    %84 = math.tanh %83 : vector<2x16xf32>
    %85 = arith.mulf %80, %84 : vector<2x16xf32>
    %86 = vector.broadcast %55 : i32 to vector<2x1xi32>
    %87 = arith.cmpi sgt, %13, %86 : vector<2x1xi32>
    %88 = vector.shape_cast %87 : vector<2x1xi1> to vector<2x1xi1>
    %89 = vector.broadcast %88 : vector<2x1xi1> to vector<2x16xi1>
    %90 = arith.select %89, %85, %16 : vector<2x16xi1>, vector<2x16xf32>
    %91 = vector.shape_cast %87 : vector<2x1xi1> to vector<2x1xi1>
    %92 = vector.broadcast %91 : vector<2x1xi1> to vector<2x16xi1>
    %93 = arith.select %92, %83, %16 : vector<2x16xi1>, vector<2x16xf32>
    %c1_i32 = arith.constant 1 : i32
    %c2_i32_32 = arith.constant 2 : i32
    %94 = arith.muli %c1_i32, %c2_i32_32 : i32
    %95 = arith.index_cast %94 : i32 to index
    %c0_33 = arith.constant 0 : index
    %96 = vector.load %arg12[%95, %c0_33] : memref<16x64xf32, #tpu.memory_space<vmem>>, vector<2x64xf32>
    %cst_34 = arith.constant dense<0.000000e+00> : vector<2x64xf32>
    %97 = tpu.matmul %51, %14, %cst_34 {dimension_numbers = #tpu.dot_dimension_numbers<[1], [0], [0], [1], [0, 0, 1, 1], [], []>} : vector<2x16xf32>, vector<16x64xf32>, vector<2x64xf32> -> vector<2x64xf32>
    %98 = arith.addf %96, %97 : vector<2x64xf32>
    %99 = vector.extract_strided_slice %98 {offsets = [0, 0], sizes = [2, 16], strides = [1, 1]} : vector<2x64xf32> to vector<2x16xf32>
    %100 = arith.negf %99 : vector<2x16xf32>
    %101 = math.exp %100 : vector<2x16xf32>
    %cst_35 = arith.constant 1.000000e+00 : f32
    %102 = vector.broadcast %cst_35 : f32 to vector<2x16xf32>
    %103 = arith.addf %102, %101 : vector<2x16xf32>
    %104 = arith.divf %102, %103 : vector<2x16xf32>
    %105 = vector.extract_strided_slice %98 {offsets = [0, 16], sizes = [2, 16], strides = [1, 1]} : vector<2x64xf32> to vector<2x16xf32>
    %106 = arith.negf %105 : vector<2x16xf32>
    %107 = math.exp %106 : vector<2x16xf32>
    %cst_36 = arith.constant 1.000000e+00 : f32
    %108 = vector.broadcast %cst_36 : f32 to vector<2x16xf32>
    %109 = arith.addf %108, %107 : vector<2x16xf32>
    %110 = arith.divf %108, %109 : vector<2x16xf32>
    %111 = vector.extract_strided_slice %98 {offsets = [0, 32], sizes = [2, 16], strides = [1, 1]} : vector<2x64xf32> to vector<2x16xf32>
    %112 = math.tanh %111 : vector<2x16xf32>
    %113 = vector.extract_strided_slice %98 {offsets = [0, 48], sizes = [2, 16], strides = [1, 1]} : vector<2x64xf32> to vector<2x16xf32>
    %114 = arith.negf %113 : vector<2x16xf32>
    %115 = math.exp %114 : vector<2x16xf32>
    %cst_37 = arith.constant 1.000000e+00 : f32
    %116 = vector.broadcast %cst_37 : f32 to vector<2x16xf32>
    %117 = arith.addf %116, %115 : vector<2x16xf32>
    %118 = arith.divf %116, %117 : vector<2x16xf32>
    %119 = arith.mulf %110, %54 : vector<2x16xf32>
    %120 = arith.mulf %104, %112 : vector<2x16xf32>
    %121 = arith.addf %119, %120 : vector<2x16xf32>
    %122 = math.tanh %121 : vector<2x16xf32>
    %123 = arith.mulf %118, %122 : vector<2x16xf32>
    %124 = vector.broadcast %c1_i32 : i32 to vector<2x1xi32>
    %125 = arith.cmpi sgt, %13, %124 : vector<2x1xi32>
    %126 = vector.shape_cast %125 : vector<2x1xi1> to vector<2x1xi1>
    %127 = vector.broadcast %126 : vector<2x1xi1> to vector<2x16xi1>
    %128 = arith.select %127, %123, %51 : vector<2x16xi1>, vector<2x16xf32>
    %129 = vector.shape_cast %125 : vector<2x1xi1> to vector<2x1xi1>
    %130 = vector.broadcast %129 : vector<2x1xi1> to vector<2x16xi1>
    %131 = arith.select %130, %121, %54 : vector<2x16xi1>, vector<2x16xf32>
    %c7_i32_38 = arith.constant 7 : i32
    %132 = arith.subi %c7_i32_38, %c1_i32 : i32
    %c2_i32_39 = arith.constant 2 : i32
    %133 = arith.muli %132, %c2_i32_39 : i32
    %134 = arith.index_cast %133 : i32 to index
    %c0_40 = arith.constant 0 : index
    %135 = vector.load %arg13[%134, %c0_40] : memref<16x64xf32, #tpu.memory_space<vmem>>, vector<2x64xf32>
    %cst_41 = arith.constant dense<0.000000e+00> : vector<2x64xf32>
    %136 = tpu.matmul %90, %15, %cst_41 {dimension_numbers = #tpu.dot_dimension_numbers<[1], [0], [0], [1], [0, 0, 1, 1], [], []>} : vector<2x16xf32>, vector<16x64xf32>, vector<2x64xf32> -> vector<2x64xf32>
    %137 = arith.addf %135, %136 : vector<2x64xf32>
    %138 = vector.extract_strided_slice %137 {offsets = [0, 0], sizes = [2, 16], strides = [1, 1]} : vector<2x64xf32> to vector<2x16xf32>
    %139 = arith.negf %138 : vector<2x16xf32>
    %140 = math.exp %139 : vector<2x16xf32>
    %cst_42 = arith.constant 1.000000e+00 : f32
    %141 = vector.broadcast %cst_42 : f32 to vector<2x16xf32>
    %142 = arith.addf %141, %140 : vector<2x16xf32>
    %143 = arith.divf %141, %142 : vector<2x16xf32>
    %144 = vector.extract_strided_slice %137 {offsets = [0, 16], sizes = [2, 16], strides = [1, 1]} : vector<2x64xf32> to vector<2x16xf32>
    %145 = arith.negf %144 : vector<2x16xf32>
    %146 = math.exp %145 : vector<2x16xf32>
    %cst_43 = arith.constant 1.000000e+00 : f32
    %147 = vector.broadcast %cst_43 : f32 to vector<2x16xf32>
    %148 = arith.addf %147, %146 : vector<2x16xf32>
    %149 = arith.divf %147, %148 : vector<2x16xf32>
    %150 = vector.extract_strided_slice %137 {offsets = [0, 32], sizes = [2, 16], strides = [1, 1]} : vector<2x64xf32> to vector<2x16xf32>
    %151 = math.tanh %150 : vector<2x16xf32>
    %152 = vector.extract_strided_slice %137 {offsets = [0, 48], sizes = [2, 16], strides = [1, 1]} : vector<2x64xf32> to vector<2x16xf32>
    %153 = arith.negf %152 : vector<2x16xf32>
    %154 = math.exp %153 : vector<2x16xf32>
    %cst_44 = arith.constant 1.000000e+00 : f32
    %155 = vector.broadcast %cst_44 : f32 to vector<2x16xf32>
    %156 = arith.addf %155, %154 : vector<2x16xf32>
    %157 = arith.divf %155, %156 : vector<2x16xf32>
    %158 = arith.mulf %149, %93 : vector<2x16xf32>
    %159 = arith.mulf %143, %151 : vector<2x16xf32>
    %160 = arith.addf %158, %159 : vector<2x16xf32>
    %161 = math.tanh %160 : vector<2x16xf32>
    %162 = arith.mulf %157, %161 : vector<2x16xf32>
    %163 = vector.broadcast %132 : i32 to vector<2x1xi32>
    %164 = arith.cmpi sgt, %13, %163 : vector<2x1xi32>
    %165 = vector.shape_cast %164 : vector<2x1xi1> to vector<2x1xi1>
    %166 = vector.broadcast %165 : vector<2x1xi1> to vector<2x16xi1>
    %167 = arith.select %166, %162, %90 : vector<2x16xi1>, vector<2x16xf32>
    %168 = vector.shape_cast %164 : vector<2x1xi1> to vector<2x1xi1>
    %169 = vector.broadcast %168 : vector<2x1xi1> to vector<2x16xi1>
    %170 = arith.select %169, %160, %93 : vector<2x16xi1>, vector<2x16xf32>
    %c2_i32_45 = arith.constant 2 : i32
    %c2_i32_46 = arith.constant 2 : i32
    %171 = arith.muli %c2_i32_45, %c2_i32_46 : i32
    %172 = arith.index_cast %171 : i32 to index
    %c0_47 = arith.constant 0 : index
    %173 = vector.load %arg12[%172, %c0_47] : memref<16x64xf32, #tpu.memory_space<vmem>>, vector<2x64xf32>
    %cst_48 = arith.constant dense<0.000000e+00> : vector<2x64xf32>
    %174 = tpu.matmul %128, %14, %cst_48 {dimension_numbers = #tpu.dot_dimension_numbers<[1], [0], [0], [1], [0, 0, 1, 1], [], []>} : vector<2x16xf32>, vector<16x64xf32>, vector<2x64xf32> -> vector<2x64xf32>
    %175 = arith.addf %173, %174 : vector<2x64xf32>
    %176 = vector.extract_strided_slice %175 {offsets = [0, 0], sizes = [2, 16], strides = [1, 1]} : vector<2x64xf32> to vector<2x16xf32>
    %177 = arith.negf %176 : vector<2x16xf32>
    %178 = math.exp %177 : vector<2x16xf32>
    %cst_49 = arith.constant 1.000000e+00 : f32
    %179 = vector.broadcast %cst_49 : f32 to vector<2x16xf32>
    %180 = arith.addf %179, %178 : vector<2x16xf32>
    %181 = arith.divf %179, %180 : vector<2x16xf32>
    %182 = vector.extract_strided_slice %175 {offsets = [0, 16], sizes = [2, 16], strides = [1, 1]} : vector<2x64xf32> to vector<2x16xf32>
    %183 = arith.negf %182 : vector<2x16xf32>
    %184 = math.exp %183 : vector<2x16xf32>
    %cst_50 = arith.constant 1.000000e+00 : f32
    %185 = vector.broadcast %cst_50 : f32 to vector<2x16xf32>
    %186 = arith.addf %185, %184 : vector<2x16xf32>
    %187 = arith.divf %185, %186 : vector<2x16xf32>
    %188 = vector.extract_strided_slice %175 {offsets = [0, 32], sizes = [2, 16], strides = [1, 1]} : vector<2x64xf32> to vector<2x16xf32>
    %189 = math.tanh %188 : vector<2x16xf32>
    %190 = vector.extract_strided_slice %175 {offsets = [0, 48], sizes = [2, 16], strides = [1, 1]} : vector<2x64xf32> to vector<2x16xf32>
    %191 = arith.negf %190 : vector<2x16xf32>
    %192 = math.exp %191 : vector<2x16xf32>
    %cst_51 = arith.constant 1.000000e+00 : f32
    %193 = vector.broadcast %cst_51 : f32 to vector<2x16xf32>
    %194 = arith.addf %193, %192 : vector<2x16xf32>
    %195 = arith.divf %193, %194 : vector<2x16xf32>
    %196 = arith.mulf %187, %131 : vector<2x16xf32>
    %197 = arith.mulf %181, %189 : vector<2x16xf32>
    %198 = arith.addf %196, %197 : vector<2x16xf32>
    %199 = math.tanh %198 : vector<2x16xf32>
    %200 = arith.mulf %195, %199 : vector<2x16xf32>
    %201 = vector.broadcast %c2_i32_45 : i32 to vector<2x1xi32>
    %202 = arith.cmpi sgt, %13, %201 : vector<2x1xi32>
    %203 = vector.shape_cast %202 : vector<2x1xi1> to vector<2x1xi1>
    %204 = vector.broadcast %203 : vector<2x1xi1> to vector<2x16xi1>
    %205 = arith.select %204, %200, %128 : vector<2x16xi1>, vector<2x16xf32>
    %206 = vector.shape_cast %202 : vector<2x1xi1> to vector<2x1xi1>
    %207 = vector.broadcast %206 : vector<2x1xi1> to vector<2x16xi1>
    %208 = arith.select %207, %198, %131 : vector<2x16xi1>, vector<2x16xf32>
    %c7_i32_52 = arith.constant 7 : i32
    %209 = arith.subi %c7_i32_52, %c2_i32_45 : i32
    %c2_i32_53 = arith.constant 2 : i32
    %210 = arith.muli %209, %c2_i32_53 : i32
    %211 = arith.index_cast %210 : i32 to index
    %c0_54 = arith.constant 0 : index
    %212 = vector.load %arg13[%211, %c0_54] : memref<16x64xf32, #tpu.memory_space<vmem>>, vector<2x64xf32>
    %cst_55 = arith.constant dense<0.000000e+00> : vector<2x64xf32>
    %213 = tpu.matmul %167, %15, %cst_55 {dimension_numbers = #tpu.dot_dimension_numbers<[1], [0], [0], [1], [0, 0, 1, 1], [], []>} : vector<2x16xf32>, vector<16x64xf32>, vector<2x64xf32> -> vector<2x64xf32>
    %214 = arith.addf %212, %213 : vector<2x64xf32>
    %215 = vector.extract_strided_slice %214 {offsets = [0, 0], sizes = [2, 16], strides = [1, 1]} : vector<2x64xf32> to vector<2x16xf32>
    %216 = arith.negf %215 : vector<2x16xf32>
    %217 = math.exp %216 : vector<2x16xf32>
    %cst_56 = arith.constant 1.000000e+00 : f32
    %218 = vector.broadcast %cst_56 : f32 to vector<2x16xf32>
    %219 = arith.addf %218, %217 : vector<2x16xf32>
    %220 = arith.divf %218, %219 : vector<2x16xf32>
    %221 = vector.extract_strided_slice %214 {offsets = [0, 16], sizes = [2, 16], strides = [1, 1]} : vector<2x64xf32> to vector<2x16xf32>
    %222 = arith.negf %221 : vector<2x16xf32>
    %223 = math.exp %222 : vector<2x16xf32>
    %cst_57 = arith.constant 1.000000e+00 : f32
    %224 = vector.broadcast %cst_57 : f32 to vector<2x16xf32>
    %225 = arith.addf %224, %223 : vector<2x16xf32>
    %226 = arith.divf %224, %225 : vector<2x16xf32>
    %227 = vector.extract_strided_slice %214 {offsets = [0, 32], sizes = [2, 16], strides = [1, 1]} : vector<2x64xf32> to vector<2x16xf32>
    %228 = math.tanh %227 : vector<2x16xf32>
    %229 = vector.extract_strided_slice %214 {offsets = [0, 48], sizes = [2, 16], strides = [1, 1]} : vector<2x64xf32> to vector<2x16xf32>
    %230 = arith.negf %229 : vector<2x16xf32>
    %231 = math.exp %230 : vector<2x16xf32>
    %cst_58 = arith.constant 1.000000e+00 : f32
    %232 = vector.broadcast %cst_58 : f32 to vector<2x16xf32>
    %233 = arith.addf %232, %231 : vector<2x16xf32>
    %234 = arith.divf %232, %233 : vector<2x16xf32>
    %235 = arith.mulf %226, %170 : vector<2x16xf32>
    %236 = arith.mulf %220, %228 : vector<2x16xf32>
    %237 = arith.addf %235, %236 : vector<2x16xf32>
    %238 = math.tanh %237 : vector<2x16xf32>
    %239 = arith.mulf %234, %238 : vector<2x16xf32>
    %240 = vector.broadcast %209 : i32 to vector<2x1xi32>
    %241 = arith.cmpi sgt, %13, %240 : vector<2x1xi32>
    %242 = vector.shape_cast %241 : vector<2x1xi1> to vector<2x1xi1>
    %243 = vector.broadcast %242 : vector<2x1xi1> to vector<2x16xi1>
    %244 = arith.select %243, %239, %167 : vector<2x16xi1>, vector<2x16xf32>
    %245 = vector.shape_cast %241 : vector<2x1xi1> to vector<2x1xi1>
    %246 = vector.broadcast %245 : vector<2x1xi1> to vector<2x16xi1>
    %247 = arith.select %246, %237, %170 : vector<2x16xi1>, vector<2x16xf32>
    %c3_i32 = arith.constant 3 : i32
    %c2_i32_59 = arith.constant 2 : i32
    %248 = arith.muli %c3_i32, %c2_i32_59 : i32
    %249 = arith.index_cast %248 : i32 to index
    %c0_60 = arith.constant 0 : index
    %250 = vector.load %arg12[%249, %c0_60] : memref<16x64xf32, #tpu.memory_space<vmem>>, vector<2x64xf32>
    %cst_61 = arith.constant dense<0.000000e+00> : vector<2x64xf32>
    %251 = tpu.matmul %205, %14, %cst_61 {dimension_numbers = #tpu.dot_dimension_numbers<[1], [0], [0], [1], [0, 0, 1, 1], [], []>} : vector<2x16xf32>, vector<16x64xf32>, vector<2x64xf32> -> vector<2x64xf32>
    %252 = arith.addf %250, %251 : vector<2x64xf32>
    %253 = vector.extract_strided_slice %252 {offsets = [0, 0], sizes = [2, 16], strides = [1, 1]} : vector<2x64xf32> to vector<2x16xf32>
    %254 = arith.negf %253 : vector<2x16xf32>
    %255 = math.exp %254 : vector<2x16xf32>
    %cst_62 = arith.constant 1.000000e+00 : f32
    %256 = vector.broadcast %cst_62 : f32 to vector<2x16xf32>
    %257 = arith.addf %256, %255 : vector<2x16xf32>
    %258 = arith.divf %256, %257 : vector<2x16xf32>
    %259 = vector.extract_strided_slice %252 {offsets = [0, 16], sizes = [2, 16], strides = [1, 1]} : vector<2x64xf32> to vector<2x16xf32>
    %260 = arith.negf %259 : vector<2x16xf32>
    %261 = math.exp %260 : vector<2x16xf32>
    %cst_63 = arith.constant 1.000000e+00 : f32
    %262 = vector.broadcast %cst_63 : f32 to vector<2x16xf32>
    %263 = arith.addf %262, %261 : vector<2x16xf32>
    %264 = arith.divf %262, %263 : vector<2x16xf32>
    %265 = vector.extract_strided_slice %252 {offsets = [0, 32], sizes = [2, 16], strides = [1, 1]} : vector<2x64xf32> to vector<2x16xf32>
    %266 = math.tanh %265 : vector<2x16xf32>
    %267 = vector.extract_strided_slice %252 {offsets = [0, 48], sizes = [2, 16], strides = [1, 1]} : vector<2x64xf32> to vector<2x16xf32>
    %268 = arith.negf %267 : vector<2x16xf32>
    %269 = math.exp %268 : vector<2x16xf32>
    %cst_64 = arith.constant 1.000000e+00 : f32
    %270 = vector.broadcast %cst_64 : f32 to vector<2x16xf32>
    %271 = arith.addf %270, %269 : vector<2x16xf32>
    %272 = arith.divf %270, %271 : vector<2x16xf32>
    %273 = arith.mulf %264, %208 : vector<2x16xf32>
    %274 = arith.mulf %258, %266 : vector<2x16xf32>
    %275 = arith.addf %273, %274 : vector<2x16xf32>
    %276 = math.tanh %275 : vector<2x16xf32>
    %277 = arith.mulf %272, %276 : vector<2x16xf32>
    %278 = vector.broadcast %c3_i32 : i32 to vector<2x1xi32>
    %279 = arith.cmpi sgt, %13, %278 : vector<2x1xi32>
    %280 = vector.shape_cast %279 : vector<2x1xi1> to vector<2x1xi1>
    %281 = vector.broadcast %280 : vector<2x1xi1> to vector<2x16xi1>
    %282 = arith.select %281, %277, %205 : vector<2x16xi1>, vector<2x16xf32>
    %283 = vector.shape_cast %279 : vector<2x1xi1> to vector<2x1xi1>
    %284 = vector.broadcast %283 : vector<2x1xi1> to vector<2x16xi1>
    %285 = arith.select %284, %275, %208 : vector<2x16xi1>, vector<2x16xf32>
    %c7_i32_65 = arith.constant 7 : i32
    %286 = arith.subi %c7_i32_65, %c3_i32 : i32
    %c2_i32_66 = arith.constant 2 : i32
    %287 = arith.muli %286, %c2_i32_66 : i32
    %288 = arith.index_cast %287 : i32 to index
    %c0_67 = arith.constant 0 : index
    %289 = vector.load %arg13[%288, %c0_67] : memref<16x64xf32, #tpu.memory_space<vmem>>, vector<2x64xf32>
    %cst_68 = arith.constant dense<0.000000e+00> : vector<2x64xf32>
    %290 = tpu.matmul %244, %15, %cst_68 {dimension_numbers = #tpu.dot_dimension_numbers<[1], [0], [0], [1], [0, 0, 1, 1], [], []>} : vector<2x16xf32>, vector<16x64xf32>, vector<2x64xf32> -> vector<2x64xf32>
    %291 = arith.addf %289, %290 : vector<2x64xf32>
    %292 = vector.extract_strided_slice %291 {offsets = [0, 0], sizes = [2, 16], strides = [1, 1]} : vector<2x64xf32> to vector<2x16xf32>
    %293 = arith.negf %292 : vector<2x16xf32>
    %294 = math.exp %293 : vector<2x16xf32>
    %cst_69 = arith.constant 1.000000e+00 : f32
    %295 = vector.broadcast %cst_69 : f32 to vector<2x16xf32>
    %296 = arith.addf %295, %294 : vector<2x16xf32>
    %297 = arith.divf %295, %296 : vector<2x16xf32>
    %298 = vector.extract_strided_slice %291 {offsets = [0, 16], sizes = [2, 16], strides = [1, 1]} : vector<2x64xf32> to vector<2x16xf32>
    %299 = arith.negf %298 : vector<2x16xf32>
    %300 = math.exp %299 : vector<2x16xf32>
    %cst_70 = arith.constant 1.000000e+00 : f32
    %301 = vector.broadcast %cst_70 : f32 to vector<2x16xf32>
    %302 = arith.addf %301, %300 : vector<2x16xf32>
    %303 = arith.divf %301, %302 : vector<2x16xf32>
    %304 = vector.extract_strided_slice %291 {offsets = [0, 32], sizes = [2, 16], strides = [1, 1]} : vector<2x64xf32> to vector<2x16xf32>
    %305 = math.tanh %304 : vector<2x16xf32>
    %306 = vector.extract_strided_slice %291 {offsets = [0, 48], sizes = [2, 16], strides = [1, 1]} : vector<2x64xf32> to vector<2x16xf32>
    %307 = arith.negf %306 : vector<2x16xf32>
    %308 = math.exp %307 : vector<2x16xf32>
    %cst_71 = arith.constant 1.000000e+00 : f32
    %309 = vector.broadcast %cst_71 : f32 to vector<2x16xf32>
    %310 = arith.addf %309, %308 : vector<2x16xf32>
    %311 = arith.divf %309, %310 : vector<2x16xf32>
    %312 = arith.mulf %303, %247 : vector<2x16xf32>
    %313 = arith.mulf %297, %305 : vector<2x16xf32>
    %314 = arith.addf %312, %313 : vector<2x16xf32>
    %315 = math.tanh %314 : vector<2x16xf32>
    %316 = arith.mulf %311, %315 : vector<2x16xf32>
    %317 = vector.broadcast %286 : i32 to vector<2x1xi32>
    %318 = arith.cmpi sgt, %13, %317 : vector<2x1xi32>
    %319 = vector.shape_cast %318 : vector<2x1xi1> to vector<2x1xi1>
    %320 = vector.broadcast %319 : vector<2x1xi1> to vector<2x16xi1>
    %321 = arith.select %320, %316, %244 : vector<2x16xi1>, vector<2x16xf32>
    %322 = vector.shape_cast %318 : vector<2x1xi1> to vector<2x1xi1>
    %323 = vector.broadcast %322 : vector<2x1xi1> to vector<2x16xi1>
    %324 = arith.select %323, %314, %247 : vector<2x16xi1>, vector<2x16xf32>
    %c4_i32 = arith.constant 4 : i32
    %c2_i32_72 = arith.constant 2 : i32
    %325 = arith.muli %c4_i32, %c2_i32_72 : i32
    %326 = arith.index_cast %325 : i32 to index
    %c0_73 = arith.constant 0 : index
    %327 = vector.load %arg12[%326, %c0_73] : memref<16x64xf32, #tpu.memory_space<vmem>>, vector<2x64xf32>
    %cst_74 = arith.constant dense<0.000000e+00> : vector<2x64xf32>
    %328 = tpu.matmul %282, %14, %cst_74 {dimension_numbers = #tpu.dot_dimension_numbers<[1], [0], [0], [1], [0, 0, 1, 1], [], []>} : vector<2x16xf32>, vector<16x64xf32>, vector<2x64xf32> -> vector<2x64xf32>
    %329 = arith.addf %327, %328 : vector<2x64xf32>
    %330 = vector.extract_strided_slice %329 {offsets = [0, 0], sizes = [2, 16], strides = [1, 1]} : vector<2x64xf32> to vector<2x16xf32>
    %331 = arith.negf %330 : vector<2x16xf32>
    %332 = math.exp %331 : vector<2x16xf32>
    %cst_75 = arith.constant 1.000000e+00 : f32
    %333 = vector.broadcast %cst_75 : f32 to vector<2x16xf32>
    %334 = arith.addf %333, %332 : vector<2x16xf32>
    %335 = arith.divf %333, %334 : vector<2x16xf32>
    %336 = vector.extract_strided_slice %329 {offsets = [0, 16], sizes = [2, 16], strides = [1, 1]} : vector<2x64xf32> to vector<2x16xf32>
    %337 = arith.negf %336 : vector<2x16xf32>
    %338 = math.exp %337 : vector<2x16xf32>
    %cst_76 = arith.constant 1.000000e+00 : f32
    %339 = vector.broadcast %cst_76 : f32 to vector<2x16xf32>
    %340 = arith.addf %339, %338 : vector<2x16xf32>
    %341 = arith.divf %339, %340 : vector<2x16xf32>
    %342 = vector.extract_strided_slice %329 {offsets = [0, 32], sizes = [2, 16], strides = [1, 1]} : vector<2x64xf32> to vector<2x16xf32>
    %343 = math.tanh %342 : vector<2x16xf32>
    %344 = vector.extract_strided_slice %329 {offsets = [0, 48], sizes = [2, 16], strides = [1, 1]} : vector<2x64xf32> to vector<2x16xf32>
    %345 = arith.negf %344 : vector<2x16xf32>
    %346 = math.exp %345 : vector<2x16xf32>
    %cst_77 = arith.constant 1.000000e+00 : f32
    %347 = vector.broadcast %cst_77 : f32 to vector<2x16xf32>
    %348 = arith.addf %347, %346 : vector<2x16xf32>
    %349 = arith.divf %347, %348 : vector<2x16xf32>
    %350 = arith.mulf %341, %285 : vector<2x16xf32>
    %351 = arith.mulf %335, %343 : vector<2x16xf32>
    %352 = arith.addf %350, %351 : vector<2x16xf32>
    %353 = math.tanh %352 : vector<2x16xf32>
    %354 = arith.mulf %349, %353 : vector<2x16xf32>
    %355 = vector.broadcast %c4_i32 : i32 to vector<2x1xi32>
    %356 = arith.cmpi sgt, %13, %355 : vector<2x1xi32>
    %357 = vector.shape_cast %356 : vector<2x1xi1> to vector<2x1xi1>
    %358 = vector.broadcast %357 : vector<2x1xi1> to vector<2x16xi1>
    %359 = arith.select %358, %354, %282 : vector<2x16xi1>, vector<2x16xf32>
    %360 = vector.shape_cast %356 : vector<2x1xi1> to vector<2x1xi1>
    %361 = vector.broadcast %360 : vector<2x1xi1> to vector<2x16xi1>
    %362 = arith.select %361, %352, %285 : vector<2x16xi1>, vector<2x16xf32>
    %c7_i32_78 = arith.constant 7 : i32
    %363 = arith.subi %c7_i32_78, %c4_i32 : i32
    %c2_i32_79 = arith.constant 2 : i32
    %364 = arith.muli %363, %c2_i32_79 : i32
    %365 = arith.index_cast %364 : i32 to index
    %c0_80 = arith.constant 0 : index
    %366 = vector.load %arg13[%365, %c0_80] : memref<16x64xf32, #tpu.memory_space<vmem>>, vector<2x64xf32>
    %cst_81 = arith.constant dense<0.000000e+00> : vector<2x64xf32>
    %367 = tpu.matmul %321, %15, %cst_81 {dimension_numbers = #tpu.dot_dimension_numbers<[1], [0], [0], [1], [0, 0, 1, 1], [], []>} : vector<2x16xf32>, vector<16x64xf32>, vector<2x64xf32> -> vector<2x64xf32>
    %368 = arith.addf %366, %367 : vector<2x64xf32>
    %369 = vector.extract_strided_slice %368 {offsets = [0, 0], sizes = [2, 16], strides = [1, 1]} : vector<2x64xf32> to vector<2x16xf32>
    %370 = arith.negf %369 : vector<2x16xf32>
    %371 = math.exp %370 : vector<2x16xf32>
    %cst_82 = arith.constant 1.000000e+00 : f32
    %372 = vector.broadcast %cst_82 : f32 to vector<2x16xf32>
    %373 = arith.addf %372, %371 : vector<2x16xf32>
    %374 = arith.divf %372, %373 : vector<2x16xf32>
    %375 = vector.extract_strided_slice %368 {offsets = [0, 16], sizes = [2, 16], strides = [1, 1]} : vector<2x64xf32> to vector<2x16xf32>
    %376 = arith.negf %375 : vector<2x16xf32>
    %377 = math.exp %376 : vector<2x16xf32>
    %cst_83 = arith.constant 1.000000e+00 : f32
    %378 = vector.broadcast %cst_83 : f32 to vector<2x16xf32>
    %379 = arith.addf %378, %377 : vector<2x16xf32>
    %380 = arith.divf %378, %379 : vector<2x16xf32>
    %381 = vector.extract_strided_slice %368 {offsets = [0, 32], sizes = [2, 16], strides = [1, 1]} : vector<2x64xf32> to vector<2x16xf32>
    %382 = math.tanh %381 : vector<2x16xf32>
    %383 = vector.extract_strided_slice %368 {offsets = [0, 48], sizes = [2, 16], strides = [1, 1]} : vector<2x64xf32> to vector<2x16xf32>
    %384 = arith.negf %383 : vector<2x16xf32>
    %385 = math.exp %384 : vector<2x16xf32>
    %cst_84 = arith.constant 1.000000e+00 : f32
    %386 = vector.broadcast %cst_84 : f32 to vector<2x16xf32>
    %387 = arith.addf %386, %385 : vector<2x16xf32>
    %388 = arith.divf %386, %387 : vector<2x16xf32>
    %389 = arith.mulf %380, %324 : vector<2x16xf32>
    %390 = arith.mulf %374, %382 : vector<2x16xf32>
    %391 = arith.addf %389, %390 : vector<2x16xf32>
    %392 = math.tanh %391 : vector<2x16xf32>
    %393 = arith.mulf %388, %392 : vector<2x16xf32>
    %394 = vector.broadcast %363 : i32 to vector<2x1xi32>
    %395 = arith.cmpi sgt, %13, %394 : vector<2x1xi32>
    %396 = vector.shape_cast %395 : vector<2x1xi1> to vector<2x1xi1>
    %397 = vector.broadcast %396 : vector<2x1xi1> to vector<2x16xi1>
    %398 = arith.select %397, %393, %321 : vector<2x16xi1>, vector<2x16xf32>
    %399 = vector.shape_cast %395 : vector<2x1xi1> to vector<2x1xi1>
    %400 = vector.broadcast %399 : vector<2x1xi1> to vector<2x16xi1>
    %401 = arith.select %400, %391, %324 : vector<2x16xi1>, vector<2x16xf32>
    %c5_i32 = arith.constant 5 : i32
    %c2_i32_85 = arith.constant 2 : i32
    %402 = arith.muli %c5_i32, %c2_i32_85 : i32
    %403 = arith.index_cast %402 : i32 to index
    %c0_86 = arith.constant 0 : index
    %404 = vector.load %arg12[%403, %c0_86] : memref<16x64xf32, #tpu.memory_space<vmem>>, vector<2x64xf32>
    %cst_87 = arith.constant dense<0.000000e+00> : vector<2x64xf32>
    %405 = tpu.matmul %359, %14, %cst_87 {dimension_numbers = #tpu.dot_dimension_numbers<[1], [0], [0], [1], [0, 0, 1, 1], [], []>} : vector<2x16xf32>, vector<16x64xf32>, vector<2x64xf32> -> vector<2x64xf32>
    %406 = arith.addf %404, %405 : vector<2x64xf32>
    %407 = vector.extract_strided_slice %406 {offsets = [0, 0], sizes = [2, 16], strides = [1, 1]} : vector<2x64xf32> to vector<2x16xf32>
    %408 = arith.negf %407 : vector<2x16xf32>
    %409 = math.exp %408 : vector<2x16xf32>
    %cst_88 = arith.constant 1.000000e+00 : f32
    %410 = vector.broadcast %cst_88 : f32 to vector<2x16xf32>
    %411 = arith.addf %410, %409 : vector<2x16xf32>
    %412 = arith.divf %410, %411 : vector<2x16xf32>
    %413 = vector.extract_strided_slice %406 {offsets = [0, 16], sizes = [2, 16], strides = [1, 1]} : vector<2x64xf32> to vector<2x16xf32>
    %414 = arith.negf %413 : vector<2x16xf32>
    %415 = math.exp %414 : vector<2x16xf32>
    %cst_89 = arith.constant 1.000000e+00 : f32
    %416 = vector.broadcast %cst_89 : f32 to vector<2x16xf32>
    %417 = arith.addf %416, %415 : vector<2x16xf32>
    %418 = arith.divf %416, %417 : vector<2x16xf32>
    %419 = vector.extract_strided_slice %406 {offsets = [0, 32], sizes = [2, 16], strides = [1, 1]} : vector<2x64xf32> to vector<2x16xf32>
    %420 = math.tanh %419 : vector<2x16xf32>
    %421 = vector.extract_strided_slice %406 {offsets = [0, 48], sizes = [2, 16], strides = [1, 1]} : vector<2x64xf32> to vector<2x16xf32>
    %422 = arith.negf %421 : vector<2x16xf32>
    %423 = math.exp %422 : vector<2x16xf32>
    %cst_90 = arith.constant 1.000000e+00 : f32
    %424 = vector.broadcast %cst_90 : f32 to vector<2x16xf32>
    %425 = arith.addf %424, %423 : vector<2x16xf32>
    %426 = arith.divf %424, %425 : vector<2x16xf32>
    %427 = arith.mulf %418, %362 : vector<2x16xf32>
    %428 = arith.mulf %412, %420 : vector<2x16xf32>
    %429 = arith.addf %427, %428 : vector<2x16xf32>
    %430 = math.tanh %429 : vector<2x16xf32>
    %431 = arith.mulf %426, %430 : vector<2x16xf32>
    %432 = vector.broadcast %c5_i32 : i32 to vector<2x1xi32>
    %433 = arith.cmpi sgt, %13, %432 : vector<2x1xi32>
    %434 = vector.shape_cast %433 : vector<2x1xi1> to vector<2x1xi1>
    %435 = vector.broadcast %434 : vector<2x1xi1> to vector<2x16xi1>
    %436 = arith.select %435, %431, %359 : vector<2x16xi1>, vector<2x16xf32>
    %437 = vector.shape_cast %433 : vector<2x1xi1> to vector<2x1xi1>
    %438 = vector.broadcast %437 : vector<2x1xi1> to vector<2x16xi1>
    %439 = arith.select %438, %429, %362 : vector<2x16xi1>, vector<2x16xf32>
    %c7_i32_91 = arith.constant 7 : i32
    %440 = arith.subi %c7_i32_91, %c5_i32 : i32
    %c2_i32_92 = arith.constant 2 : i32
    %441 = arith.muli %440, %c2_i32_92 : i32
    %442 = arith.index_cast %441 : i32 to index
    %c0_93 = arith.constant 0 : index
    %443 = vector.load %arg13[%442, %c0_93] : memref<16x64xf32, #tpu.memory_space<vmem>>, vector<2x64xf32>
    %cst_94 = arith.constant dense<0.000000e+00> : vector<2x64xf32>
    %444 = tpu.matmul %398, %15, %cst_94 {dimension_numbers = #tpu.dot_dimension_numbers<[1], [0], [0], [1], [0, 0, 1, 1], [], []>} : vector<2x16xf32>, vector<16x64xf32>, vector<2x64xf32> -> vector<2x64xf32>
    %445 = arith.addf %443, %444 : vector<2x64xf32>
    %446 = vector.extract_strided_slice %445 {offsets = [0, 0], sizes = [2, 16], strides = [1, 1]} : vector<2x64xf32> to vector<2x16xf32>
    %447 = arith.negf %446 : vector<2x16xf32>
    %448 = math.exp %447 : vector<2x16xf32>
    %cst_95 = arith.constant 1.000000e+00 : f32
    %449 = vector.broadcast %cst_95 : f32 to vector<2x16xf32>
    %450 = arith.addf %449, %448 : vector<2x16xf32>
    %451 = arith.divf %449, %450 : vector<2x16xf32>
    %452 = vector.extract_strided_slice %445 {offsets = [0, 16], sizes = [2, 16], strides = [1, 1]} : vector<2x64xf32> to vector<2x16xf32>
    %453 = arith.negf %452 : vector<2x16xf32>
    %454 = math.exp %453 : vector<2x16xf32>
    %cst_96 = arith.constant 1.000000e+00 : f32
    %455 = vector.broadcast %cst_96 : f32 to vector<2x16xf32>
    %456 = arith.addf %455, %454 : vector<2x16xf32>
    %457 = arith.divf %455, %456 : vector<2x16xf32>
    %458 = vector.extract_strided_slice %445 {offsets = [0, 32], sizes = [2, 16], strides = [1, 1]} : vector<2x64xf32> to vector<2x16xf32>
    %459 = math.tanh %458 : vector<2x16xf32>
    %460 = vector.extract_strided_slice %445 {offsets = [0, 48], sizes = [2, 16], strides = [1, 1]} : vector<2x64xf32> to vector<2x16xf32>
    %461 = arith.negf %460 : vector<2x16xf32>
    %462 = math.exp %461 : vector<2x16xf32>
    %cst_97 = arith.constant 1.000000e+00 : f32
    %463 = vector.broadcast %cst_97 : f32 to vector<2x16xf32>
    %464 = arith.addf %463, %462 : vector<2x16xf32>
    %465 = arith.divf %463, %464 : vector<2x16xf32>
    %466 = arith.mulf %457, %401 : vector<2x16xf32>
    %467 = arith.mulf %451, %459 : vector<2x16xf32>
    %468 = arith.addf %466, %467 : vector<2x16xf32>
    %469 = math.tanh %468 : vector<2x16xf32>
    %470 = arith.mulf %465, %469 : vector<2x16xf32>
    %471 = vector.broadcast %440 : i32 to vector<2x1xi32>
    %472 = arith.cmpi sgt, %13, %471 : vector<2x1xi32>
    %473 = vector.shape_cast %472 : vector<2x1xi1> to vector<2x1xi1>
    %474 = vector.broadcast %473 : vector<2x1xi1> to vector<2x16xi1>
    %475 = arith.select %474, %470, %398 : vector<2x16xi1>, vector<2x16xf32>
    %476 = vector.shape_cast %472 : vector<2x1xi1> to vector<2x1xi1>
    %477 = vector.broadcast %476 : vector<2x1xi1> to vector<2x16xi1>
    %478 = arith.select %477, %468, %401 : vector<2x16xi1>, vector<2x16xf32>
    %c6_i32 = arith.constant 6 : i32
    %c2_i32_98 = arith.constant 2 : i32
    %479 = arith.muli %c6_i32, %c2_i32_98 : i32
    %480 = arith.index_cast %479 : i32 to index
    %c0_99 = arith.constant 0 : index
    %481 = vector.load %arg12[%480, %c0_99] : memref<16x64xf32, #tpu.memory_space<vmem>>, vector<2x64xf32>
    %cst_100 = arith.constant dense<0.000000e+00> : vector<2x64xf32>
    %482 = tpu.matmul %436, %14, %cst_100 {dimension_numbers = #tpu.dot_dimension_numbers<[1], [0], [0], [1], [0, 0, 1, 1], [], []>} : vector<2x16xf32>, vector<16x64xf32>, vector<2x64xf32> -> vector<2x64xf32>
    %483 = arith.addf %481, %482 : vector<2x64xf32>
    %484 = vector.extract_strided_slice %483 {offsets = [0, 0], sizes = [2, 16], strides = [1, 1]} : vector<2x64xf32> to vector<2x16xf32>
    %485 = arith.negf %484 : vector<2x16xf32>
    %486 = math.exp %485 : vector<2x16xf32>
    %cst_101 = arith.constant 1.000000e+00 : f32
    %487 = vector.broadcast %cst_101 : f32 to vector<2x16xf32>
    %488 = arith.addf %487, %486 : vector<2x16xf32>
    %489 = arith.divf %487, %488 : vector<2x16xf32>
    %490 = vector.extract_strided_slice %483 {offsets = [0, 16], sizes = [2, 16], strides = [1, 1]} : vector<2x64xf32> to vector<2x16xf32>
    %491 = arith.negf %490 : vector<2x16xf32>
    %492 = math.exp %491 : vector<2x16xf32>
    %cst_102 = arith.constant 1.000000e+00 : f32
    %493 = vector.broadcast %cst_102 : f32 to vector<2x16xf32>
    %494 = arith.addf %493, %492 : vector<2x16xf32>
    %495 = arith.divf %493, %494 : vector<2x16xf32>
    %496 = vector.extract_strided_slice %483 {offsets = [0, 32], sizes = [2, 16], strides = [1, 1]} : vector<2x64xf32> to vector<2x16xf32>
    %497 = math.tanh %496 : vector<2x16xf32>
    %498 = vector.extract_strided_slice %483 {offsets = [0, 48], sizes = [2, 16], strides = [1, 1]} : vector<2x64xf32> to vector<2x16xf32>
    %499 = arith.negf %498 : vector<2x16xf32>
    %500 = math.exp %499 : vector<2x16xf32>
    %cst_103 = arith.constant 1.000000e+00 : f32
    %501 = vector.broadcast %cst_103 : f32 to vector<2x16xf32>
    %502 = arith.addf %501, %500 : vector<2x16xf32>
    %503 = arith.divf %501, %502 : vector<2x16xf32>
    %504 = arith.mulf %495, %439 : vector<2x16xf32>
    %505 = arith.mulf %489, %497 : vector<2x16xf32>
    %506 = arith.addf %504, %505 : vector<2x16xf32>
    %507 = math.tanh %506 : vector<2x16xf32>
    %508 = arith.mulf %503, %507 : vector<2x16xf32>
    %509 = vector.broadcast %c6_i32 : i32 to vector<2x1xi32>
    %510 = arith.cmpi sgt, %13, %509 : vector<2x1xi32>
    %511 = vector.shape_cast %510 : vector<2x1xi1> to vector<2x1xi1>
    %512 = vector.broadcast %511 : vector<2x1xi1> to vector<2x16xi1>
    %513 = arith.select %512, %508, %436 : vector<2x16xi1>, vector<2x16xf32>
    %514 = vector.shape_cast %510 : vector<2x1xi1> to vector<2x1xi1>
    %515 = vector.broadcast %514 : vector<2x1xi1> to vector<2x16xi1>
    %516 = arith.select %515, %506, %439 : vector<2x16xi1>, vector<2x16xf32>
    %c7_i32_104 = arith.constant 7 : i32
    %517 = arith.subi %c7_i32_104, %c6_i32 : i32
    %c2_i32_105 = arith.constant 2 : i32
    %518 = arith.muli %517, %c2_i32_105 : i32
    %519 = arith.index_cast %518 : i32 to index
    %c0_106 = arith.constant 0 : index
    %520 = vector.load %arg13[%519, %c0_106] : memref<16x64xf32, #tpu.memory_space<vmem>>, vector<2x64xf32>
    %cst_107 = arith.constant dense<0.000000e+00> : vector<2x64xf32>
    %521 = tpu.matmul %475, %15, %cst_107 {dimension_numbers = #tpu.dot_dimension_numbers<[1], [0], [0], [1], [0, 0, 1, 1], [], []>} : vector<2x16xf32>, vector<16x64xf32>, vector<2x64xf32> -> vector<2x64xf32>
    %522 = arith.addf %520, %521 : vector<2x64xf32>
    %523 = vector.extract_strided_slice %522 {offsets = [0, 0], sizes = [2, 16], strides = [1, 1]} : vector<2x64xf32> to vector<2x16xf32>
    %524 = arith.negf %523 : vector<2x16xf32>
    %525 = math.exp %524 : vector<2x16xf32>
    %cst_108 = arith.constant 1.000000e+00 : f32
    %526 = vector.broadcast %cst_108 : f32 to vector<2x16xf32>
    %527 = arith.addf %526, %525 : vector<2x16xf32>
    %528 = arith.divf %526, %527 : vector<2x16xf32>
    %529 = vector.extract_strided_slice %522 {offsets = [0, 16], sizes = [2, 16], strides = [1, 1]} : vector<2x64xf32> to vector<2x16xf32>
    %530 = arith.negf %529 : vector<2x16xf32>
    %531 = math.exp %530 : vector<2x16xf32>
    %cst_109 = arith.constant 1.000000e+00 : f32
    %532 = vector.broadcast %cst_109 : f32 to vector<2x16xf32>
    %533 = arith.addf %532, %531 : vector<2x16xf32>
    %534 = arith.divf %532, %533 : vector<2x16xf32>
    %535 = vector.extract_strided_slice %522 {offsets = [0, 32], sizes = [2, 16], strides = [1, 1]} : vector<2x64xf32> to vector<2x16xf32>
    %536 = math.tanh %535 : vector<2x16xf32>
    %537 = vector.extract_strided_slice %522 {offsets = [0, 48], sizes = [2, 16], strides = [1, 1]} : vector<2x64xf32> to vector<2x16xf32>
    %538 = arith.negf %537 : vector<2x16xf32>
    %539 = math.exp %538 : vector<2x16xf32>
    %cst_110 = arith.constant 1.000000e+00 : f32
    %540 = vector.broadcast %cst_110 : f32 to vector<2x16xf32>
    %541 = arith.addf %540, %539 : vector<2x16xf32>
    %542 = arith.divf %540, %541 : vector<2x16xf32>
    %543 = arith.mulf %534, %478 : vector<2x16xf32>
    %544 = arith.mulf %528, %536 : vector<2x16xf32>
    %545 = arith.addf %543, %544 : vector<2x16xf32>
    %546 = math.tanh %545 : vector<2x16xf32>
    %547 = arith.mulf %542, %546 : vector<2x16xf32>
    %548 = vector.broadcast %517 : i32 to vector<2x1xi32>
    %549 = arith.cmpi sgt, %13, %548 : vector<2x1xi32>
    %550 = vector.shape_cast %549 : vector<2x1xi1> to vector<2x1xi1>
    %551 = vector.broadcast %550 : vector<2x1xi1> to vector<2x16xi1>
    %552 = arith.select %551, %547, %475 : vector<2x16xi1>, vector<2x16xf32>
    %553 = vector.shape_cast %549 : vector<2x1xi1> to vector<2x1xi1>
    %554 = vector.broadcast %553 : vector<2x1xi1> to vector<2x16xi1>
    %555 = arith.select %554, %545, %478 : vector<2x16xi1>, vector<2x16xf32>
    %c7_i32_111 = arith.constant 7 : i32
    %c2_i32_112 = arith.constant 2 : i32
    %556 = arith.muli %c7_i32_111, %c2_i32_112 : i32
    %557 = arith.index_cast %556 : i32 to index
    %c0_113 = arith.constant 0 : index
    %558 = vector.load %arg12[%557, %c0_113] : memref<16x64xf32, #tpu.memory_space<vmem>>, vector<2x64xf32>
    %cst_114 = arith.constant dense<0.000000e+00> : vector<2x64xf32>
    %559 = tpu.matmul %513, %14, %cst_114 {dimension_numbers = #tpu.dot_dimension_numbers<[1], [0], [0], [1], [0, 0, 1, 1], [], []>} : vector<2x16xf32>, vector<16x64xf32>, vector<2x64xf32> -> vector<2x64xf32>
    %560 = arith.addf %558, %559 : vector<2x64xf32>
    %561 = vector.extract_strided_slice %560 {offsets = [0, 0], sizes = [2, 16], strides = [1, 1]} : vector<2x64xf32> to vector<2x16xf32>
    %562 = arith.negf %561 : vector<2x16xf32>
    %563 = math.exp %562 : vector<2x16xf32>
    %cst_115 = arith.constant 1.000000e+00 : f32
    %564 = vector.broadcast %cst_115 : f32 to vector<2x16xf32>
    %565 = arith.addf %564, %563 : vector<2x16xf32>
    %566 = arith.divf %564, %565 : vector<2x16xf32>
    %567 = vector.extract_strided_slice %560 {offsets = [0, 16], sizes = [2, 16], strides = [1, 1]} : vector<2x64xf32> to vector<2x16xf32>
    %568 = arith.negf %567 : vector<2x16xf32>
    %569 = math.exp %568 : vector<2x16xf32>
    %cst_116 = arith.constant 1.000000e+00 : f32
    %570 = vector.broadcast %cst_116 : f32 to vector<2x16xf32>
    %571 = arith.addf %570, %569 : vector<2x16xf32>
    %572 = arith.divf %570, %571 : vector<2x16xf32>
    %573 = vector.extract_strided_slice %560 {offsets = [0, 32], sizes = [2, 16], strides = [1, 1]} : vector<2x64xf32> to vector<2x16xf32>
    %574 = math.tanh %573 : vector<2x16xf32>
    %575 = vector.extract_strided_slice %560 {offsets = [0, 48], sizes = [2, 16], strides = [1, 1]} : vector<2x64xf32> to vector<2x16xf32>
    %576 = arith.negf %575 : vector<2x16xf32>
    %577 = math.exp %576 : vector<2x16xf32>
    %cst_117 = arith.constant 1.000000e+00 : f32
    %578 = vector.broadcast %cst_117 : f32 to vector<2x16xf32>
    %579 = arith.addf %578, %577 : vector<2x16xf32>
    %580 = arith.divf %578, %579 : vector<2x16xf32>
    %581 = arith.mulf %572, %516 : vector<2x16xf32>
    %582 = arith.mulf %566, %574 : vector<2x16xf32>
    %583 = arith.addf %581, %582 : vector<2x16xf32>
    %584 = math.tanh %583 : vector<2x16xf32>
    %585 = arith.mulf %580, %584 : vector<2x16xf32>
    %586 = vector.broadcast %c7_i32_111 : i32 to vector<2x1xi32>
    %587 = arith.cmpi sgt, %13, %586 : vector<2x1xi32>
    %588 = vector.shape_cast %587 : vector<2x1xi1> to vector<2x1xi1>
    %589 = vector.broadcast %588 : vector<2x1xi1> to vector<2x16xi1>
    %590 = arith.select %589, %585, %513 : vector<2x16xi1>, vector<2x16xf32>
    %591 = vector.shape_cast %587 : vector<2x1xi1> to vector<2x1xi1>
    %592 = vector.broadcast %591 : vector<2x1xi1> to vector<2x16xi1>
    %593 = arith.select %592, %583, %516 : vector<2x16xi1>, vector<2x16xf32>
    %c7_i32_118 = arith.constant 7 : i32
    %594 = arith.subi %c7_i32_118, %c7_i32_111 : i32
    %c2_i32_119 = arith.constant 2 : i32
    %595 = arith.muli %594, %c2_i32_119 : i32
    %596 = arith.index_cast %595 : i32 to index
    %c0_120 = arith.constant 0 : index
    %597 = vector.load %arg13[%596, %c0_120] : memref<16x64xf32, #tpu.memory_space<vmem>>, vector<2x64xf32>
    %cst_121 = arith.constant dense<0.000000e+00> : vector<2x64xf32>
    %598 = tpu.matmul %552, %15, %cst_121 {dimension_numbers = #tpu.dot_dimension_numbers<[1], [0], [0], [1], [0, 0, 1, 1], [], []>} : vector<2x16xf32>, vector<16x64xf32>, vector<2x64xf32> -> vector<2x64xf32>
    %599 = arith.addf %597, %598 : vector<2x64xf32>
    %600 = vector.extract_strided_slice %599 {offsets = [0, 0], sizes = [2, 16], strides = [1, 1]} : vector<2x64xf32> to vector<2x16xf32>
    %601 = arith.negf %600 : vector<2x16xf32>
    %602 = math.exp %601 : vector<2x16xf32>
    %cst_122 = arith.constant 1.000000e+00 : f32
    %603 = vector.broadcast %cst_122 : f32 to vector<2x16xf32>
    %604 = arith.addf %603, %602 : vector<2x16xf32>
    %605 = arith.divf %603, %604 : vector<2x16xf32>
    %606 = vector.extract_strided_slice %599 {offsets = [0, 16], sizes = [2, 16], strides = [1, 1]} : vector<2x64xf32> to vector<2x16xf32>
    %607 = arith.negf %606 : vector<2x16xf32>
    %608 = math.exp %607 : vector<2x16xf32>
    %cst_123 = arith.constant 1.000000e+00 : f32
    %609 = vector.broadcast %cst_123 : f32 to vector<2x16xf32>
    %610 = arith.addf %609, %608 : vector<2x16xf32>
    %611 = arith.divf %609, %610 : vector<2x16xf32>
    %612 = vector.extract_strided_slice %599 {offsets = [0, 32], sizes = [2, 16], strides = [1, 1]} : vector<2x64xf32> to vector<2x16xf32>
    %613 = math.tanh %612 : vector<2x16xf32>
    %614 = vector.extract_strided_slice %599 {offsets = [0, 48], sizes = [2, 16], strides = [1, 1]} : vector<2x64xf32> to vector<2x16xf32>
    %615 = arith.negf %614 : vector<2x16xf32>
    %616 = math.exp %615 : vector<2x16xf32>
    %cst_124 = arith.constant 1.000000e+00 : f32
    %617 = vector.broadcast %cst_124 : f32 to vector<2x16xf32>
    %618 = arith.addf %617, %616 : vector<2x16xf32>
    %619 = arith.divf %617, %618 : vector<2x16xf32>
    %620 = arith.mulf %611, %555 : vector<2x16xf32>
    %621 = arith.mulf %605, %613 : vector<2x16xf32>
    %622 = arith.addf %620, %621 : vector<2x16xf32>
    %623 = math.tanh %622 : vector<2x16xf32>
    %624 = arith.mulf %619, %623 : vector<2x16xf32>
    %625 = vector.broadcast %594 : i32 to vector<2x1xi32>
    %626 = arith.cmpi sgt, %13, %625 : vector<2x1xi32>
    %627 = vector.shape_cast %626 : vector<2x1xi1> to vector<2x1xi1>
    %628 = vector.broadcast %627 : vector<2x1xi1> to vector<2x16xi1>
    %629 = arith.select %628, %624, %552 : vector<2x16xi1>, vector<2x16xf32>
    %630 = vector.shape_cast %626 : vector<2x1xi1> to vector<2x1xi1>
    %631 = vector.broadcast %630 : vector<2x1xi1> to vector<2x16xi1>
    %632 = arith.select %631, %622, %555 : vector<2x16xi1>, vector<2x16xf32>
    %c8_i32 = arith.constant 8 : i32
    %c0_125 = arith.constant 0 : index
    %c0_126 = arith.constant 0 : index
    %633 = vector.load %arg8[%c0_125, %c0_126] : memref<48x8xf32, #tpu.memory_space<vmem>>, vector<48x8xf32>
    %634 = vector.extract_strided_slice %633 {offsets = [0, 0], sizes = [16, 8], strides = [1, 1]} : vector<48x8xf32> to vector<16x8xf32>
    %cst_127 = arith.constant dense<0.000000e+00> : vector<2x8xf32>
    %635 = tpu.matmul %629, %634, %cst_127 {dimension_numbers = #tpu.dot_dimension_numbers<[1], [0], [0], [1], [0, 0, 1, 1], [], []>} : vector<2x16xf32>, vector<16x8xf32>, vector<2x8xf32> -> vector<2x8xf32>
    %636 = vector.extract_strided_slice %633 {offsets = [16, 0], sizes = [16, 8], strides = [1, 1]} : vector<48x8xf32> to vector<16x8xf32>
    %cst_128 = arith.constant dense<0.000000e+00> : vector<2x8xf32>
    %637 = tpu.matmul %590, %636, %cst_128 {dimension_numbers = #tpu.dot_dimension_numbers<[1], [0], [0], [1], [0, 0, 1, 1], [], []>} : vector<2x16xf32>, vector<16x8xf32>, vector<2x8xf32> -> vector<2x8xf32>
    %638 = arith.addf %635, %637 : vector<2x8xf32>
    %c0_129 = arith.constant 0 : index
    %c0_130 = arith.constant 0 : index
    %639 = vector.load %arg9[%c0_129, %c0_130] : memref<1x8xf32, #tpu.memory_space<vmem>>, vector<1x8xf32>
    %640 = vector.broadcast %639 : vector<1x8xf32> to vector<2x8xf32>
    %641 = arith.addf %638, %640 : vector<2x8xf32>
    %c0_131 = arith.constant 0 : index
    %c0_132 = arith.constant 0 : index
    %642 = vector.load %arg10[%c0_131, %c0_132] : memref<2x16xf32, #tpu.memory_space<vmem>>, vector<2x16xf32>
    %643 = vector.extract_strided_slice %633 {offsets = [32, 0], sizes = [16, 8], strides = [1, 1]} : vector<48x8xf32> to vector<16x8xf32>
    %cst_133 = arith.constant dense<0.000000e+00> : vector<2x8xf32>
    %644 = tpu.matmul %642, %643, %cst_133 {dimension_numbers = #tpu.dot_dimension_numbers<[1], [0], [0], [1], [0, 0, 1, 1], [], []>} : vector<2x16xf32>, vector<16x8xf32>, vector<2x8xf32> -> vector<2x8xf32>
    %645 = arith.addf %641, %644 : vector<2x8xf32>
    %c0_134 = arith.constant 0 : index
    %c0_135 = arith.constant 0 : index
    %646 = vector.load %arg11[%c0_134, %c0_135] : memref<2x8xf32, #tpu.memory_space<vmem>>, vector<2x8xf32>
    tpu.vector_store %arg11[%c0_134, %c0_135], %645 {strides = array<i32>} : memref<2x8xf32, #tpu.memory_space<vmem>>, vector<2x8xf32>,
    return
  }
}

</mosaic_0001>

<llo_original>
// kernel: tpu_custom_call.1
$region0: #{tpu_custom_call.1}
  #allocation0 [shape = 'u32[]', space=smem, size = 0x4, offset = 0x4, fixed_abs, tag = 'smem constant byte address 0x4 - core index']
  #allocation1 [shape = 'u32[144,128]{1,0:T(1,128)}', space=vmem, size = 0x12000, scoped, tag = 'internal scratch']
  #allocation2 [shape = 'f32[16,64]{1,0:T(8,128)}', space=vmem, size = 0x2000, scoped, tag = 'scratch operand']
  #allocation3 [shape = 'f32[16,64]{1,0:T(8,128)}', space=vmem, size = 0x2000, scoped, tag = 'scratch operand']
  %s0 = inlined_call_operand.hbm [shape: f32[16,64], index: 0, kind: input, shape index: {}]
  %s1 = inlined_call_operand.vmem [shape: s32[2,1], index: 1, kind: input, shape index: {}]
  %s2 = inlined_call_operand.vmem [shape: f32[64,64], index: 2, kind: input, shape index: {}]
  %s3 = inlined_call_operand.hbm [shape: f32[16,64], index: 3, kind: input, shape index: {}]
  %s4 = inlined_call_operand.hbm [shape: f32[1,64], index: 4, kind: input, shape index: {}]
  %s5 = inlined_call_operand.hbm [shape: f32[64,64], index: 5, kind: input, shape index: {}]
  %s6 = inlined_call_operand.vmem [shape: f32[16,64], index: 6, kind: input, shape index: {}]
  %s7 = inlined_call_operand.hbm [shape: f32[1,64], index: 7, kind: input, shape index: {}]
  %s8 = inlined_call_operand.vmem [shape: f32[48,8], index: 8, kind: input, shape index: {}]
  %s9 = inlined_call_operand.vmem [shape: f32[1,8], index: 9, kind: input, shape index: {}]
  %s10 = inlined_call_operand.vmem [shape: f32[2,16], index: 10, kind: input, shape index: {}]
  %s11 = inlined_call_operand.hbm [shape: f32[2,8], index: 11, kind: output, shape index: {}]
  %s12 = sld [smem:[#allocation0]]
  $region74: #{tpu_custom_call.1} parent=0
    _
  %s14 = ssub.s32 1, %s12
  %s15 = scalar_select 0, %s14, %s12
  $region1: #{tpu_custom_call.1} parent=0
    #allocation4 [shape = 'u8[8192]{0}', space=vmem, size = 0x2000, scoped, tag = 'input window, operand 0, single buffered']
    #allocation5 [shape = 's32[1]{0}', space=sflag, size = 0x4, scoped, tag = 'scoped memory for tpu_custom_call.1']
    #allocation6 [shape = 's32[1]{0}', space=sflag, size = 0x4, scoped, tag = 'scoped memory for tpu_custom_call.1']
    #allocation7 [shape = 'u8[8192]{0}', space=vmem, size = 0x2000, scoped, tag = 'input window, operand 3, single buffered']
    #allocation8 [shape = 's32[1]{0}', space=sflag, size = 0x4, scoped, tag = 'scoped memory for tpu_custom_call.1']
    #allocation9 [shape = 'u8[512]{0}', space=vmem, size = 0x400, scoped, tag = 'input window, operand 4, single buffered']
    #allocation10 [shape = 'u8[32768]{0}', space=vmem, size = 0x8000, scoped, tag = 'input window, operand 5, single buffered']
    #allocation11 [shape = 's32[1]{0}', space=sflag, size = 0x4, scoped, tag = 'scoped memory for tpu_custom_call.1']
    #allocation12 [shape = 'u8[512]{0}', space=vmem, size = 0x400, scoped, tag = 'input window, operand 7, single buffered']
    #allocation13 [shape = 'u8[1024]{0}', space=vmem, size = 0x400, scoped, tag = 'output window, operand 0, single buffered']
    %16 = vsyncpa [#allocation5], 0
    %17 = vsyncpa [#allocation8], 0
    %18 = vsyncpa [#allocation11], 0
    %19 = vsyncpa [#allocation6], 0
    // Predicated region
    $region2: #{tpu_custom_call.1} parent=1 // pred_check
      _
    $region3: #{tpu_custom_call.1} parent=1 // pred_check_branch
      %21 = sbr.rel (0) target = $region5
    $region4: #{tpu_custom_call.1} parent=1 // pred_region
      %s23 = ssub.s32 256, 256
      %24 = vsyncadd [#allocation5], %s23
      %s25 = sshll.u32 [#allocation4], 4
      %s26 = int_to_ptr.vmem [resolvable:$true] %s25
      %31 = dma.hbm_to_vmem [thread:$0]  %s0, 256, %s26, [#allocation5], 128, 128, 8
    $region5: #{tpu_custom_call.1} parent=1 // pred_fallthru
      _
    // Predicated region
    $region6: #{tpu_custom_call.1} parent=1 // pred_check
      _
    $region7: #{tpu_custom_call.1} parent=1 // pred_check_branch
      %33 = sbr.rel (0) target = $region9
    $region8: #{tpu_custom_call.1} parent=1 // pred_region
      _
    $region9: #{tpu_custom_call.1} parent=1 // pred_fallthru
      _
    // Predicated region
    $region10: #{tpu_custom_call.1} parent=1 // pred_check
      _
    $region11: #{tpu_custom_call.1} parent=1 // pred_check_branch
      %35 = sbr.rel (0) target = $region13
    $region12: #{tpu_custom_call.1} parent=1 // pred_region
      _
    $region13: #{tpu_custom_call.1} parent=1 // pred_fallthru
      _
    // Predicated region
    $region14: #{tpu_custom_call.1} parent=1 // pred_check
      _
    $region15: #{tpu_custom_call.1} parent=1 // pred_check_branch
      %37 = sbr.rel (0) target = $region17
    $region16: #{tpu_custom_call.1} parent=1 // pred_region
      %s39 = ssub.s32 256, 256
      %40 = vsyncadd [#allocation8], %s39
      %s41 = sshll.u32 [#allocation7], 4
      %s42 = int_to_ptr.vmem [resolvable:$true] %s41
      %47 = dma.hbm_to_vmem [thread:$0]  %s3, 256, %s42, [#allocation8], 128, 128, 8
    $region17: #{tpu_custom_call.1} parent=1 // pred_fallthru
      _
    // Predicated region
    $region18: #{tpu_custom_call.1} parent=1 // pred_check
      _
    $region19: #{tpu_custom_call.1} parent=1 // pred_check_branch
      %49 = sbr.rel (0) target = $region21
    $region20: #{tpu_custom_call.1} parent=1 // pred_region
      %s51 = ssub.s32 16, 16
      %52 = vsyncadd [#allocation8], %s51
      %s54 = sshll.u32 [#allocation9], 4
      %s55 = int_to_ptr.vmem [resolvable:$true] %s54
      %57 = dma.hbm_to_vmem [thread:$0]  %s4, 16, %s55, [#allocation8]
    $region21: #{tpu_custom_call.1} parent=1 // pred_fallthru
      _
    // Predicated region
    $region22: #{tpu_custom_call.1} parent=1 // pred_check
      _
    $region23: #{tpu_custom_call.1} parent=1 // pred_check_branch
      %59 = sbr.rel (0) target = $region25
    $region24: #{tpu_custom_call.1} parent=1 // pred_region
      %s61 = ssub.s32 1024, 1024
      %62 = vsyncadd [#allocation11], %s61
      %s63 = sshll.u32 [#allocation10], 4
      %s64 = int_to_ptr.vmem [resolvable:$true] %s63
      %69 = dma.hbm_to_vmem [thread:$0]  %s5, 1024, %s64, [#allocation11], 128, 128, 8
    $region25: #{tpu_custom_call.1} parent=1 // pred_fallthru
      _
    // Predicated region
    $region26: #{tpu_custom_call.1} parent=1 // pred_check
      _
    $region27: #{tpu_custom_call.1} parent=1 // pred_check_branch
      %71 = sbr.rel (0) target = $region29
    $region28: #{tpu_custom_call.1} parent=1 // pred_region
      _
    $region29: #{tpu_custom_call.1} parent=1 // pred_fallthru
      _
    // Predicated region
    $region30: #{tpu_custom_call.1} parent=1 // pred_check
      _
    $region31: #{tpu_custom_call.1} parent=1 // pred_check_branch
      %73 = sbr.rel (0) target = $region33
    $region32: #{tpu_custom_call.1} parent=1 // pred_region
      %s75 = ssub.s32 16, 16
      %76 = vsyncadd [#allocation11], %s75
      %s78 = sshll.u32 [#allocation12], 4
      %s79 = int_to_ptr.vmem [resolvable:$true] %s78
      %81 = dma.hbm_to_vmem [thread:$0]  %s7, 16, %s79, [#allocation11]
    $region33: #{tpu_custom_call.1} parent=1 // pred_fallthru
      _
    // Predicated region
    $region34: #{tpu_custom_call.1} parent=1 // pred_check
      _
    $region35: #{tpu_custom_call.1} parent=1 // pred_check_branch
      %83 = sbr.rel (0) target = $region37
    $region36: #{tpu_custom_call.1} parent=1 // pred_region
      _
    $region37: #{tpu_custom_call.1} parent=1 // pred_fallthru
      _
    // Predicated region
    $region38: #{tpu_custom_call.1} parent=1 // pred_check
      _
    $region39: #{tpu_custom_call.1} parent=1 // pred_check_branch
      %85 = sbr.rel (0) target = $region41
    $region40: #{tpu_custom_call.1} parent=1 // pred_region
      _
    $region41: #{tpu_custom_call.1} parent=1 // pred_fallthru
      _
    // Predicated region
    $region42: #{tpu_custom_call.1} parent=1 // pred_check
      _
    $region43: #{tpu_custom_call.1} parent=1 // pred_check_branch
      %87 = sbr.rel (0) target = $region45
    $region44: #{tpu_custom_call.1} parent=1 // pred_region
      _
    $region45: #{tpu_custom_call.1} parent=1 // pred_fallthru
      _
    // Predicated region
    $region46: #{tpu_custom_call.1} parent=1 // pred_check
      _
    $region47: #{tpu_custom_call.1} parent=1 // pred_check_branch
      %89 = sbr.rel (0) target = $region49
    $region48: #{tpu_custom_call.1} parent=1 // pred_region
      %90 = dma.done [#allocation5], 256
    $region49: #{tpu_custom_call.1} parent=1 // pred_fallthru
      _
    // Predicated region
    $region50: #{tpu_custom_call.1} parent=1 // pred_check
      _
    $region51: #{tpu_custom_call.1} parent=1 // pred_check_branch
      %92 = sbr.rel (0) target = $region53
    $region52: #{tpu_custom_call.1} parent=1 // pred_region
      %93 = dma.done [#allocation8], 256
    $region53: #{tpu_custom_call.1} parent=1 // pred_fallthru
      _
    // Predicated region
    $region54: #{tpu_custom_call.1} parent=1 // pred_check
      _
    $region55: #{tpu_custom_call.1} parent=1 // pred_check_branch
      %95 = sbr.rel (0) target = $region57
    $region56: #{tpu_custom_call.1} parent=1 // pred_region
      %96 = dma.done [#allocation8], 16
    $region57: #{tpu_custom_call.1} parent=1 // pred_fallthru
      _
    // Predicated region
    $region58: #{tpu_custom_call.1} parent=1 // pred_check
      _
    $region59: #{tpu_custom_call.1} parent=1 // pred_check_branch
      %98 = sbr.rel (0) target = $region61
    $region60: #{tpu_custom_call.1} parent=1 // pred_region
      %99 = dma.done [#allocation11], 1024
    $region61: #{tpu_custom_call.1} parent=1 // pred_fallthru
      _
    // Predicated region
    $region62: #{tpu_custom_call.1} parent=1 // pred_check
      _
    $region63: #{tpu_custom_call.1} parent=1 // pred_check_branch
      %101 = sbr.rel (0) target = $region65
    $region64: #{tpu_custom_call.1} parent=1 // pred_region
      %102 = dma.done [#allocation11], 16
    $region65: #{tpu_custom_call.1} parent=1 // pred_fallthru
      _
    %v103 = vld [vmem:[#allocation4] sm:$0xff]
    %v104 = vld [vmem:[#allocation4 + $0x8] sm:$0xff]
    %v105 = vld [vmem:[%s2] sm:$0xff]
    %v106 = vld [vmem:[%s2 + $0x8] sm:$0xff]
    %v107 = vld [vmem:[%s2 + $0x10] sm:$0xff]
    %v108 = vld [vmem:[%s2 + $0x18] sm:$0xff]
    %v109 = vld [vmem:[%s2 + $0x20] sm:$0xff]
    %v110 = vld [vmem:[%s2 + $0x28] sm:$0xff]
    %v111 = vld [vmem:[%s2 + $0x30] sm:$0xff]
    %v112 = vld [vmem:[%s2 + $0x38] sm:$0xff]
    %v113 = vld [vmem:[#allocation9] sm:$0x1]
    %v115 = vlaneseq
    %v116 = vshrl.u32 %v115, 7
    %v117 = vsub.s32 0, %v116
    %v118 = vrot.slane %v113, %v117
    %vm120 = vcmask 523264
    %v122 = vsel %vm120, %v103, 0
    %v125 = vsel %vm120, %v104, 0
    %127 = vmatprep.subr.mxu0 0.0
    %128 = vmatpush1.msra.mxu0 %v105
    %129 = vmatprep.subr.mxu0 0.0
    %130 = vmatpush1.msra.mxu0 %v106
    %131 = vmatprep.subr.mxu0 0.0
    %132 = vmatpush1.msra.mxu0 %v107
    %133 = vmatprep.subr.mxu0 0.0
    %134 = vmatpush1.msra.mxu0 %v108
    %135 = vmatprep.subr.mxu0 0.0
    %136 = vmatpush1.msra.mxu0 %v109
    %137 = vmatprep.subr.mxu0 0.0
    %138 = vmatpush1.msra.mxu0 %v110
    %139 = vmatprep.subr.mxu0 0.0
    %140 = vmatpush1.msra.mxu0 %v111
    %141 = vmatprep.subr.mxu0 0.0
    %142 = vmatpush1.msra.mxu0 %v112
    %143 = vmatprep.subr.mxu0 0.0
    %144 = vmatpush1.msra.mxu0 0.0
    %145 = vmatprep.subr.mxu0 0.0
    %146 = vmatpush1.msra.mxu0 0.0
    %147 = vmatprep.subr.mxu0 0.0
    %148 = vmatpush1.msra.mxu0 0.0
    %149 = vmatprep.subr.mxu0 0.0
    %150 = vmatpush1.msra.mxu0 0.0
    %151 = vmatprep.subr.mxu0 0.0
    %152 = vmatpush1.msra.mxu0 0.0
    %153 = vmatprep.subr.mxu0 0.0
    %154 = vmatpush1.msra.mxu0 0.0
    %155 = vmatprep.subr.mxu0 0.0
    %156 = vmatpush1.msra.mxu0 0.0
    %157 = vmatprep.subr.mxu0 0.0
    %158 = vmatpush1.msra.mxu0 0.0
    %159 = vmatprep.subr.mxu0 0.0
    %160 = vmatpush1.msra.mxu0 0.0
    %161 = vmatprep.subr.mxu0 0.0
    %162 = vmatpush1.msra.mxu0 0.0
    %163 = vmatprep.subr.mxu0 0.0
    %164 = vmatpush1.msra.mxu0 0.0
    %165 = vmatprep.subr.mxu0 0.0
    %166 = vmatpush1.msra.mxu0 0.0
    %167 = vmatprep.subr.mxu0 0.0
    %168 = vmatpush1.msra.mxu0 0.0
    %169 = vmatprep.subr.mxu0 0.0
    %170 = vmatpush1.msra.mxu0 0.0
    %171 = vmatprep.subr.mxu0 0.0
    %172 = vmatpush1.msra.mxu0 0.0
    %173 = vmatprep.subr.mxu0 0.0
    %174 = vmatpush1.msra.mxu0 0.0
    %175 = vmatprep.subr.mxu0 0.0
    %176 = vmatpush1.msra.mxu0 0.0
    %177 = vmatprep.subr.mxu0 0.0
    %178 = vmatpush1.msra.mxu0 0.0
    %179 = vmatprep.subr.mxu0 0.0
    %180 = vmatpush1.msra.mxu0 0.0
    %181 = vmatprep.subr.mxu0 0.0
    %182 = vmatpush1.msra.mxu0 0.0
    %183 = vmatprep.subr.mxu0 0.0
    %184 = vmatpush1.msra.mxu0 0.0
    %185 = vmatprep.subr.mxu0 0.0
    %186 = vmatpush1.msra.mxu0 0.0
    %187 = vmatprep.subr.mxu0 0.0
    %188 = vmatpush1.msra.mxu0 0.0
    %189 = vmatprep.subr.mxu0 0.0
    %190 = vmatpush1.msra.mxu0 0.0
    %191 = vmatprep.mubr.f32.mxu0 0.0
    %192 = vmatmul.mubr.f32.gmra.mrb[0].mxu0 %v122
    %v193 = vpop.f32.mrb[0].mxu0
    %v194 = vadd.f32 %v118, %v193
    %v195 = vpop.f32.mrb[0].mxu0
    %196 = vmatprep.mubr.f32.mxu0 0.0
    %197 = vmatmul.mubr.f32.gmra.mrb[0].mxu0 %v125
    %v198 = vpop.f32.mrb[0].mxu0
    %v199 = vadd.f32 %v118, %v198
    %v200 = vpop.f32.mrb[0].mxu0
    %201 = vdwg.mxu0
    %202 = vst.msk [vmem:[#allocation2] sm:$0xff] %vm120, %v194
    %203 = vst.msk [vmem:[#allocation2 + $0x8] sm:$0xff] %vm120, %v199
    %v204 = vld [vmem:[#allocation10] sm:$0xff]
    %v205 = vld [vmem:[#allocation10 + $0x8] sm:$0xff]
    %v206 = vld [vmem:[#allocation10 + $0x10] sm:$0xff]
    %v207 = vld [vmem:[#allocation10 + $0x18] sm:$0xff]
    %v208 = vld [vmem:[#allocation10 + $0x20] sm:$0xff]
    %v209 = vld [vmem:[#allocation10 + $0x28] sm:$0xff]
    %v210 = vld [vmem:[#allocation10 + $0x30] sm:$0xff]
    %v211 = vld [vmem:[#allocation10 + $0x38] sm:$0xff]
    %v212 = vld [vmem:[#allocation12] sm:$0x1]
    %v214 = vlaneseq
    %v215 = vshrl.u32 %v214, 7
    %v216 = vsub.s32 0, %v215
    %v217 = vrot.slane %v212, %v216
    %219 = vmatprep.subr.mxu0 0.0
    %220 = vmatpush1.msra.mxu0 %v204
    %221 = vmatprep.subr.mxu0 0.0
    %222 = vmatpush1.msra.mxu0 %v205
    %223 = vmatprep.subr.mxu0 0.0
    %224 = vmatpush1.msra.mxu0 %v206
    %225 = vmatprep.subr.mxu0 0.0
    %226 = vmatpush1.msra.mxu0 %v207
    %227 = vmatprep.subr.mxu0 0.0
    %228 = vmatpush1.msra.mxu0 %v208
    %229 = vmatprep.subr.mxu0 0.0
    %230 = vmatpush1.msra.mxu0 %v209
    %231 = vmatprep.subr.mxu0 0.0
    %232 = vmatpush1.msra.mxu0 %v210
    %233 = vmatprep.subr.mxu0 0.0
    %234 = vmatpush1.msra.mxu0 %v211
    %235 = vmatprep.subr.mxu0 0.0
    %236 = vmatpush1.msra.mxu0 0.0
    %237 = vmatprep.subr.mxu0 0.0
    %238 = vmatpush1.msra.mxu0 0.0
    %239 = vmatprep.subr.mxu0 0.0
    %240 = vmatpush1.msra.mxu0 0.0
    %241 = vmatprep.subr.mxu0 0.0
    %242 = vmatpush1.msra.mxu0 0.0
    %243 = vmatprep.subr.mxu0 0.0
    %244 = vmatpush1.msra.mxu0 0.0
    %245 = vmatprep.subr.mxu0 0.0
    %246 = vmatpush1.msra.mxu0 0.0
    %247 = vmatprep.subr.mxu0 0.0
    %248 = vmatpush1.msra.mxu0 0.0
    %249 = vmatprep.subr.mxu0 0.0
    %250 = vmatpush1.msra.mxu0 0.0
    %251 = vmatprep.subr.mxu0 0.0
    %252 = vmatpush1.msra.mxu0 0.0
    %253 = vmatprep.subr.mxu0 0.0
    %254 = vmatpush1.msra.mxu0 0.0
    %255 = vmatprep.subr.mxu0 0.0
    %256 = vmatpush1.msra.mxu0 0.0
    %257 = vmatprep.subr.mxu0 0.0
    %258 = vmatpush1.msra.mxu0 0.0
    %259 = vmatprep.subr.mxu0 0.0
    %260 = vmatpush1.msra.mxu0 0.0
    %261 = vmatprep.subr.mxu0 0.0
    %262 = vmatpush1.msra.mxu0 0.0
    %263 = vmatprep.subr.mxu0 0.0
    %264 = vmatpush1.msra.mxu0 0.0
    %265 = vmatprep.subr.mxu0 0.0
    %266 = vmatpush1.msra.mxu0 0.0
    %267 = vmatprep.subr.mxu0 0.0
    %268 = vmatpush1.msra.mxu0 0.0
    %269 = vmatprep.subr.mxu0 0.0
    %270 = vmatpush1.msra.mxu0 0.0
    %271 = vmatprep.subr.mxu0 0.0
    %272 = vmatpush1.msra.mxu0 0.0
    %273 = vmatprep.subr.mxu0 0.0
    %274 = vmatpush1.msra.mxu0 0.0
    %275 = vmatprep.subr.mxu0 0.0
    %276 = vmatpush1.msra.mxu0 0.0
    %277 = vmatprep.subr.mxu0 0.0
    %278 = vmatpush1.msra.mxu0 0.0
    %279 = vmatprep.subr.mxu0 0.0
    %280 = vmatpush1.msra.mxu0 0.0
    %281 = vmatprep.subr.mxu0 0.0
    %282 = vmatpush1.msra.mxu0 0.0
    %283 = vmatprep.mubr.f32.mxu0 0.0
    %284 = vmatmul.mubr.f32.gmra.mrb[0].mxu0 %v122
    %v285 = vpop.f32.mrb[0].mxu0
    %v286 = vadd.f32 %v217, %v285
    %v287 = vpop.f32.mrb[0].mxu0
    %288 = vmatprep.mubr.f32.mxu0 0.0
    %289 = vmatmul.mubr.f32.gmra.mrb[0].mxu0 %v125
    %v290 = vpop.f32.mrb[0].mxu0
    %v291 = vadd.f32 %v217, %v290
    %v292 = vpop.f32.mrb[0].mxu0
    %293 = vdwg.mxu0
    %294 = vst.msk [vmem:[#allocation3] sm:$0xff] %vm120, %v286
    %295 = vst.msk [vmem:[#allocation3 + $0x8] sm:$0xff] %vm120, %v291
    %v296 = vld [vmem:[%s1] sm:$0x3]
    %v297 = vld [vmem:[#allocation7] sm:$0xff]
    %v298 = vld [vmem:[#allocation7 + $0x8] sm:$0xff]
    %v299 = vld [vmem:[%s6] sm:$0xff]
    %v300 = vld [vmem:[%s6 + $0x8] sm:$0xff]
    %v301 = vld [vmem:[#allocation2] sm:$0x3]
    %vm302 = vcmask 130048
    %v304 = vsel %vm302, 0.0, 0
    %306 = vmatprep.subr.mxu0 0.0
    %307 = vmatpush1.msra.mxu0 %v297
    %308 = vmatprep.subr.mxu0 0.0
    %309 = vmatpush1.msra.mxu0 %v298
    %310 = vmatprep.subr.mxu0 0.0
    %311 = vmatpush1.msra.mxu0 0.0
    %312 = vmatprep.subr.mxu0 0.0
    %313 = vmatpush1.msra.mxu0 0.0
    %314 = vmatprep.subr.mxu0 0.0
    %315 = vmatpush1.msra.mxu0 0.0
    %316 = vmatprep.subr.mxu0 0.0
    %317 = vmatpush1.msra.mxu0 0.0
    %318 = vmatprep.subr.mxu0 0.0
    %319 = vmatpush1.msra.mxu0 0.0
    %320 = vmatprep.subr.mxu0 0.0
    %321 = vmatpush1.msra.mxu0 0.0
    %322 = vmatprep.subr.mxu0 0.0
    %323 = vmatpush1.msra.mxu0 0.0
    %324 = vmatprep.subr.mxu0 0.0
    %325 = vmatpush1.msra.mxu0 0.0
    %326 = vmatprep.subr.mxu0 0.0
    %327 = vmatpush1.msra.mxu0 0.0
    %328 = vmatprep.subr.mxu0 0.0
    %329 = vmatpush1.msra.mxu0 0.0
    %330 = vmatprep.subr.mxu0 0.0
    %331 = vmatpush1.msra.mxu0 0.0
    %332 = vmatprep.subr.mxu0 0.0
    %333 = vmatpush1.msra.mxu0 0.0
    %334 = vmatprep.subr.mxu0 0.0
    %335 = vmatpush1.msra.mxu0 0.0
    %336 = vmatprep.subr.mxu0 0.0
    %337 = vmatpush1.msra.mxu0 0.0
    %338 = vmatprep.subr.mxu0 0.0
    %339 = vmatpush1.msra.mxu0 0.0
    %340 = vmatprep.subr.mxu0 0.0
    %341 = vmatpush1.msra.mxu0 0.0
    %342 = vmatprep.subr.mxu0 0.0
    %343 = vmatpush1.msra.mxu0 0.0
    %344 = vmatprep.subr.mxu0 0.0
    %345 = vmatpush1.msra.mxu0 0.0
    %346 = vmatprep.subr.mxu0 0.0
    %347 = vmatpush1.msra.mxu0 0.0
    %348 = vmatprep.subr.mxu0 0.0
    %349 = vmatpush1.msra.mxu0 0.0
    %350 = vmatprep.subr.mxu0 0.0
    %351 = vmatpush1.msra.mxu0 0.0
    %352 = vmatprep.subr.mxu0 0.0
    %353 = vmatpush1.msra.mxu0 0.0
    %354 = vmatprep.subr.mxu0 0.0
    %355 = vmatpush1.msra.mxu0 0.0
    %356 = vmatprep.subr.mxu0 0.0
    %357 = vmatpush1.msra.mxu0 0.0
    %358 = vmatprep.subr.mxu0 0.0
    %359 = vmatpush1.msra.mxu0 0.0
    %360 = vmatprep.subr.mxu0 0.0
    %361 = vmatpush1.msra.mxu0 0.0
    %362 = vmatprep.subr.mxu0 0.0
    %363 = vmatpush1.msra.mxu0 0.0
    %364 = vmatprep.subr.mxu0 0.0
    %365 = vmatpush1.msra.mxu0 0.0
    %366 = vmatprep.subr.mxu0 0.0
    %367 = vmatpush1.msra.mxu0 0.0
    %368 = vmatprep.subr.mxu0 0.0
    %369 = vmatpush1.msra.mxu0 0.0
    %370 = vmatprep.mubr.f32.mxu0 0.0
    %371 = vmatmul.mubr.f32.gmra.mrb[0].mxu0 %v304
    %v372 = vpop.f32.mrb[0].mxu0
    %v373 = vadd.f32 0.0, %v372
    %v374 = vpop.f32.mrb[0].mxu0
    %375 = vdwg.mxu0
    %v376 = vadd.f32 %v301, %v373
    %v377 = vxor.u32 %v376, 2147483648
    %v378 = vmul.f32 %v377, 1.442695
    %v379 = vpow.pop %v378
    %v380 = vadd.f32 %v379, 1.0
    %v381 = vrcp.pop %v380
    %v382 = vmul.f32 1.0, %v381
    %v383 = vtanh.pop %v376
    %v384 = vmul.f32 %v382, 0.0
    %386 = vrot.lane.b32.xlu0 %v383, 96
    %v387 = vpop.permute.xlu0 %386
    %v389 = vmul.f32 %v382, %v387
    %391 = vrot.lane.b32.xlu0 %v389, 16
    %v392 = vpop.permute.xlu0 %391
    %v394 = vadd.f32 %v384, %v392
    %v395 = vtanh.pop %v394
    %397 = vrot.lane.b32.xlu0 %v395, 32
    %v398 = vpop.permute.xlu0 %397
    %v400 = vmul.f32 %v382, %v398
    %vm401 = vcmp.gt.s32.totalorder %v296, 0
    %v402 = vsel %vm401, 1, 0
    %403 = vset.pattern.permute.xlu0 0
    %404 = vperm.xlu0 %403, %v402
    %v405 = vpop.permute.xlu0 %404
    %vm406 = vcmp.eq.s32.totalorder %v405, 1
    %v407 = vsel %vm406, %v400, 0.0
    %v408 = vsel %vm406, %v394, 0.0
    %v409 = vld [vmem:[#allocation3 + $0xe] sm:$0x3]
    %410 = vmatprep.subr.mxu0 0.0
    %411 = vmatpush1.msra.mxu0 %v299
    %412 = vmatprep.subr.mxu0 0.0
    %413 = vmatpush1.msra.mxu0 %v300
    %414 = vmatprep.subr.mxu0 0.0
    %415 = vmatpush1.msra.mxu0 0.0
    %416 = vmatprep.subr.mxu0 0.0
    %417 = vmatpush1.msra.mxu0 0.0
    %418 = vmatprep.subr.mxu0 0.0
    %419 = vmatpush1.msra.mxu0 0.0
    %420 = vmatprep.subr.mxu0 0.0
    %421 = vmatpush1.msra.mxu0 0.0
    %422 = vmatprep.subr.mxu0 0.0
    %423 = vmatpush1.msra.mxu0 0.0
    %424 = vmatprep.subr.mxu0 0.0
    %425 = vmatpush1.msra.mxu0 0.0
    %426 = vmatprep.subr.mxu0 0.0
    %427 = vmatpush1.msra.mxu0 0.0
    %428 = vmatprep.subr.mxu0 0.0
    %429 = vmatpush1.msra.mxu0 0.0
    %430 = vmatprep.subr.mxu0 0.0
    %431 = vmatpush1.msra.mxu0 0.0
    %432 = vmatprep.subr.mxu0 0.0
    %433 = vmatpush1.msra.mxu0 0.0
    %434 = vmatprep.subr.mxu0 0.0
    %435 = vmatpush1.msra.mxu0 0.0
    %436 = vmatprep.subr.mxu0 0.0
    %437 = vmatpush1.msra.mxu0 0.0
    %438 = vmatprep.subr.mxu0 0.0
    %439 = vmatpush1.msra.mxu0 0.0
    %440 = vmatprep.subr.mxu0 0.0
    %441 = vmatpush1.msra.mxu0 0.0
    %442 = vmatprep.subr.mxu0 0.0
    %443 = vmatpush1.msra.mxu0 0.0
    %444 = vmatprep.subr.mxu0 0.0
    %445 = vmatpush1.msra.mxu0 0.0
    %446 = vmatprep.subr.mxu0 0.0
    %447 = vmatpush1.msra.mxu0 0.0
    %448 = vmatprep.subr.mxu0 0.0
    %449 = vmatpush1.msra.mxu0 0.0
    %450 = vmatprep.subr.mxu0 0.0
    %451 = vmatpush1.msra.mxu0 0.0
    %452 = vmatprep.subr.mxu0 0.0
    %453 = vmatpush1.msra.mxu0 0.0
    %454 = vmatprep.subr.mxu0 0.0
    %455 = vmatpush1.msra.mxu0 0.0
    %456 = vmatprep.subr.mxu0 0.0
    %457 = vmatpush1.msra.mxu0 0.0
    %458 = vmatprep.subr.mxu0 0.0
    %459 = vmatpush1.msra.mxu0 0.0
    %460 = vmatprep.subr.mxu0 0.0
    %461 = vmatpush1.msra.mxu0 0.0
    %462 = vmatprep.subr.mxu0 0.0
    %463 = vmatpush1.msra.mxu0 0.0
    %464 = vmatprep.subr.mxu0 0.0
    %465 = vmatpush1.msra.mxu0 0.0
    %466 = vmatprep.subr.mxu0 0.0
    %467 = vmatpush1.msra.mxu0 0.0
    %468 = vmatprep.subr.mxu0 0.0
    %469 = vmatpush1.msra.mxu0 0.0
    %470 = vmatprep.subr.mxu0 0.0
    %471 = vmatpush1.msra.mxu0 0.0
    %472 = vmatprep.subr.mxu0 0.0
    %473 = vmatpush1.msra.mxu0 0.0
    %474 = vmatprep.mubr.f32.mxu0 0.0
    %475 = vmatmul.mubr.f32.gmra.mrb[0].mxu0 %v304
    %v476 = vpop.f32.mrb[0].mxu0
    %v477 = vadd.f32 0.0, %v476
    %v478 = vpop.f32.mrb[0].mxu0
    %479 = vdwg.mxu0
    %v480 = vadd.f32 %v409, %v477
    %v481 = vxor.u32 %v480, 2147483648
    %v482 = vmul.f32 %v481, 1.442695
    %v483 = vpow.pop %v482
    %v484 = vadd.f32 %v483, 1.0
    %v485 = vrcp.pop %v484
    %v486 = vmul.f32 1.0, %v485
    %v487 = vtanh.pop %v480
    %v488 = vmul.f32 %v486, 0.0
    %490 = vrot.lane.b32.xlu0 %v487, 96
    %v491 = vpop.permute.xlu0 %490
    %v493 = vmul.f32 %v486, %v491
    %495 = vrot.lane.b32.xlu0 %v493, 16
    %v496 = vpop.permute.xlu0 %495
    %v498 = vadd.f32 %v488, %v496
    %v499 = vtanh.pop %v498
    %501 = vrot.lane.b32.xlu0 %v499, 32
    %v502 = vpop.permute.xlu0 %501
    %v504 = vmul.f32 %v486, %v502
    %vm505 = vcmp.gt.s32.totalorder %v296, 7
    %v506 = vsel %vm505, 1, 0
    %507 = vset.pattern.permute.xlu0 0
    %508 = vperm.xlu0 %507, %v506
    %v509 = vpop.permute.xlu0 %508
    %vm510 = vcmp.eq.s32.totalorder %v509, 1
    %v511 = vsel %vm510, %v504, 0.0
    %v512 = vsel %vm510, %v498, 0.0
    %v513 = vld [vmem:[#allocation2 + $0x2] sm:$0x3]
    %515 = vrot.lane.b32.xlu0 %v407, 80
    %v516 = vpop.permute.xlu0 %515
    %v517 = vsel %vm302, %v516, 0
    %519 = vmatprep.subr.mxu0 0.0
    %520 = vmatpush1.msra.mxu0 %v297
    %521 = vmatprep.subr.mxu0 0.0
    %522 = vmatpush1.msra.mxu0 %v298
    %523 = vmatprep.subr.mxu0 0.0
    %524 = vmatpush1.msra.mxu0 0.0
    %525 = vmatprep.subr.mxu0 0.0
    %526 = vmatpush1.msra.mxu0 0.0
    %527 = vmatprep.subr.mxu0 0.0
    %528 = vmatpush1.msra.mxu0 0.0
    %529 = vmatprep.subr.mxu0 0.0
    %530 = vmatpush1.msra.mxu0 0.0
    %531 = vmatprep.subr.mxu0 0.0
    %532 = vmatpush1.msra.mxu0 0.0
    %533 = vmatprep.subr.mxu0 0.0
    %534 = vmatpush1.msra.mxu0 0.0
    %535 = vmatprep.subr.mxu0 0.0
    %536 = vmatpush1.msra.mxu0 0.0
    %537 = vmatprep.subr.mxu0 0.0
    %538 = vmatpush1.msra.mxu0 0.0
    %539 = vmatprep.subr.mxu0 0.0
    %540 = vmatpush1.msra.mxu0 0.0
    %541 = vmatprep.subr.mxu0 0.0
    %542 = vmatpush1.msra.mxu0 0.0
    %543 = vmatprep.subr.mxu0 0.0
    %544 = vmatpush1.msra.mxu0 0.0
    %545 = vmatprep.subr.mxu0 0.0
    %546 = vmatpush1.msra.mxu0 0.0
    %547 = vmatprep.subr.mxu0 0.0
    %548 = vmatpush1.msra.mxu0 0.0
    %549 = vmatprep.subr.mxu0 0.0
    %550 = vmatpush1.msra.mxu0 0.0
    %551 = vmatprep.subr.mxu0 0.0
    %552 = vmatpush1.msra.mxu0 0.0
    %553 = vmatprep.subr.mxu0 0.0
    %554 = vmatpush1.msra.mxu0 0.0
    %555 = vmatprep.subr.mxu0 0.0
    %556 = vmatpush1.msra.mxu0 0.0
    %557 = vmatprep.subr.mxu0 0.0
    %558 = vmatpush1.msra.mxu0 0.0
    %559 = vmatprep.subr.mxu0 0.0
    %560 = vmatpush1.msra.mxu0 0.0
    %561 = vmatprep.subr.mxu0 0.0
    %562 = vmatpush1.msra.mxu0 0.0
    %563 = vmatprep.subr.mxu0 0.0
    %564 = vmatpush1.msra.mxu0 0.0
    %565 = vmatprep.subr.mxu0 0.0
    %566 = vmatpush1.msra.mxu0 0.0
    %567 = vmatprep.subr.mxu0 0.0
    %568 = vmatpush1.msra.mxu0 0.0
    %569 = vmatprep.subr.mxu0 0.0
    %570 = vmatpush1.msra.mxu0 0.0
    %571 = vmatprep.subr.mxu0 0.0
    %572 = vmatpush1.msra.mxu0 0.0
    %573 = vmatprep.subr.mxu0 0.0
    %574 = vmatpush1.msra.mxu0 0.0
    %575 = vmatprep.subr.mxu0 0.0
    %576 = vmatpush1.msra.mxu0 0.0
    %577 = vmatprep.subr.mxu0 0.0
    %578 = vmatpush1.msra.mxu0 0.0
    %579 = vmatprep.subr.mxu0 0.0
    %580 = vmatpush1.msra.mxu0 0.0
    %581 = vmatprep.subr.mxu0 0.0
    %582 = vmatpush1.msra.mxu0 0.0
    %583 = vmatprep.mubr.f32.mxu0 0.0
    %584 = vmatmul.mubr.f32.gmra.mrb[0].mxu0 %v517
    %v585 = vpop.f32.mrb[0].mxu0
    %v586 = vadd.f32 0.0, %v585
    %v587 = vpop.f32.mrb[0].mxu0
    %588 = vdwg.mxu0
    %v589 = vadd.f32 %v513, %v586
    %v590 = vxor.u32 %v589, 2147483648
    %v591 = vmul.f32 %v590, 1.442695
    %v592 = vpow.pop %v591
    %v593 = vadd.f32 %v592, 1.0
    %v594 = vrcp.pop %v593
    %v595 = vmul.f32 1.0, %v594
    %v596 = vtanh.pop %v589
    %v597 = vmul.f32 %v595, %v408
    %599 = vrot.lane.b32.xlu0 %v596, 96
    %v600 = vpop.permute.xlu0 %599
    %v602 = vmul.f32 %v595, %v600
    %604 = vrot.lane.b32.xlu0 %v602, 16
    %v605 = vpop.permute.xlu0 %604
    %v607 = vadd.f32 %v597, %v605
    %v608 = vtanh.pop %v607
    %610 = vrot.lane.b32.xlu0 %v608, 32
    %v611 = vpop.permute.xlu0 %610
    %v613 = vmul.f32 %v595, %v611
    %vm614 = vcmp.gt.s32.totalorder %v296, 1
    %v615 = vsel %vm614, 1, 0
    %616 = vset.pattern.permute.xlu0 0
    %617 = vperm.xlu0 %616, %v615
    %v618 = vpop.permute.xlu0 %617
    %vm619 = vcmp.eq.s32.totalorder %v618, 1
    %v620 = vsel %vm619, %v613, %v407
    %v621 = vsel %vm619, %v607, %v408
    %v622 = vld [vmem:[#allocation3 + $0xc] sm:$0x3]
    %624 = vrot.lane.b32.xlu0 %v511, 80
    %v625 = vpop.permute.xlu0 %624
    %v626 = vsel %vm302, %v625, 0
    %628 = vmatprep.subr.mxu0 0.0
    %629 = vmatpush1.msra.mxu0 %v299
    %630 = vmatprep.subr.mxu0 0.0
    %631 = vmatpush1.msra.mxu0 %v300
    %632 = vmatprep.subr.mxu0 0.0
    %633 = vmatpush1.msra.mxu0 0.0
    %634 = vmatprep.subr.mxu0 0.0
    %635 = vmatpush1.msra.mxu0 0.0
    %636 = vmatprep.subr.mxu0 0.0
    %637 = vmatpush1.msra.mxu0 0.0
    %638 = vmatprep.subr.mxu0 0.0
    %639 = vmatpush1.msra.mxu0 0.0
    %640 = vmatprep.subr.mxu0 0.0
    %641 = vmatpush1.msra.mxu0 0.0
    %642 = vmatprep.subr.mxu0 0.0
    %643 = vmatpush1.msra.mxu0 0.0
    %644 = vmatprep.subr.mxu0 0.0
    %645 = vmatpush1.msra.mxu0 0.0
    %646 = vmatprep.subr.mxu0 0.0
    %647 = vmatpush1.msra.mxu0 0.0
    %648 = vmatprep.subr.mxu0 0.0
    %649 = vmatpush1.msra.mxu0 0.0
    %650 = vmatprep.subr.mxu0 0.0
    %651 = vmatpush1.msra.mxu0 0.0
    %652 = vmatprep.subr.mxu0 0.0
    %653 = vmatpush1.msra.mxu0 0.0
    %654 = vmatprep.subr.mxu0 0.0
    %655 = vmatpush1.msra.mxu0 0.0
    %656 = vmatprep.subr.mxu0 0.0
    %657 = vmatpush1.msra.mxu0 0.0
    %658 = vmatprep.subr.mxu0 0.0
    %659 = vmatpush1.msra.mxu0 0.0
    %660 = vmatprep.subr.mxu0 0.0
    %661 = vmatpush1.msra.mxu0 0.0
    %662 = vmatprep.subr.mxu0 0.0
    %663 = vmatpush1.msra.mxu0 0.0
    %664 = vmatprep.subr.mxu0 0.0
    %665 = vmatpush1.msra.mxu0 0.0
    %666 = vmatprep.subr.mxu0 0.0
    %667 = vmatpush1.msra.mxu0 0.0
    %668 = vmatprep.subr.mxu0 0.0
    %669 = vmatpush1.msra.mxu0 0.0
    %670 = vmatprep.subr.mxu0 0.0
    %671 = vmatpush1.msra.mxu0 0.0
    %672 = vmatprep.subr.mxu0 0.0
    %673 = vmatpush1.msra.mxu0 0.0
    %674 = vmatprep.subr.mxu0 0.0
    %675 = vmatpush1.msra.mxu0 0.0
    %676 = vmatprep.subr.mxu0 0.0
    %677 = vmatpush1.msra.mxu0 0.0
    %678 = vmatprep.subr.mxu0 0.0
    %679 = vmatpush1.msra.mxu0 0.0
    %680 = vmatprep.subr.mxu0 0.0
    %681 = vmatpush1.msra.mxu0 0.0
    %682 = vmatprep.subr.mxu0 0.0
    %683 = vmatpush1.msra.mxu0 0.0
    %684 = vmatprep.subr.mxu0 0.0
    %685 = vmatpush1.msra.mxu0 0.0
    %686 = vmatprep.subr.mxu0 0.0
    %687 = vmatpush1.msra.mxu0 0.0
    %688 = vmatprep.subr.mxu0 0.0
    %689 = vmatpush1.msra.mxu0 0.0
    %690 = vmatprep.subr.mxu0 0.0
    %691 = vmatpush1.msra.mxu0 0.0
    %692 = vmatprep.mubr.f32.mxu0 0.0
    %693 = vmatmul.mubr.f32.gmra.mrb[0].mxu0 %v626
    %v694 = vpop.f32.mrb[0].mxu0
    %v695 = vadd.f32 0.0, %v694
    %v696 = vpop.f32.mrb[0].mxu0
    %697 = vdwg.mxu0
    %v698 = vadd.f32 %v622, %v695
    %v699 = vxor.u32 %v698, 2147483648
    %v700 = vmul.f32 %v699, 1.442695
    %v701 = vpow.pop %v700
    %v702 = vadd.f32 %v701, 1.0
    %v703 = vrcp.pop %v702
    %v704 = vmul.f32 1.0, %v703
    %v705 = vtanh.pop %v698
    %v706 = vmul.f32 %v704, %v512
    %708 = vrot.lane.b32.xlu0 %v705, 96
    %v709 = vpop.permute.xlu0 %708
    %v711 = vmul.f32 %v704, %v709
    %713 = vrot.lane.b32.xlu0 %v711, 16
    %v714 = vpop.permute.xlu0 %713
    %v716 = vadd.f32 %v706, %v714
    %v717 = vtanh.pop %v716
    %719 = vrot.lane.b32.xlu0 %v717, 32
    %v720 = vpop.permute.xlu0 %719
    %v722 = vmul.f32 %v704, %v720
    %vm723 = vcmp.gt.s32.totalorder %v296, 6
    %v724 = vsel %vm723, 1, 0
    %725 = vset.pattern.permute.xlu0 0
    %726 = vperm.xlu0 %725, %v724
    %v727 = vpop.permute.xlu0 %726
    %vm728 = vcmp.eq.s32.totalorder %v727, 1
    %v729 = vsel %vm728, %v722, %v511
    %v730 = vsel %vm728, %v716, %v512
    %v731 = vld [vmem:[#allocation2 + $0x4] sm:$0x3]
    %733 = vrot.lane.b32.xlu0 %v620, 80
    %v734 = vpop.permute.xlu0 %733
    %v735 = vsel %vm302, %v734, 0
    %737 = vmatprep.subr.mxu0 0.0
    %738 = vmatpush1.msra.mxu0 %v297
    %739 = vmatprep.subr.mxu0 0.0
    %740 = vmatpush1.msra.mxu0 %v298
    %741 = vmatprep.subr.mxu0 0.0
    %742 = vmatpush1.msra.mxu0 0.0
    %743 = vmatprep.subr.mxu0 0.0
    %744 = vmatpush1.msra.mxu0 0.0
    %745 = vmatprep.subr.mxu0 0.0
    %746 = vmatpush1.msra.mxu0 0.0
    %747 = vmatprep.subr.mxu0 0.0
    %748 = vmatpush1.msra.mxu0 0.0
    %749 = vmatprep.subr.mxu0 0.0
    %750 = vmatpush1.msra.mxu0 0.0
    %751 = vmatprep.subr.mxu0 0.0
    %752 = vmatpush1.msra.mxu0 0.0
    %753 = vmatprep.subr.mxu0 0.0
    %754 = vmatpush1.msra.mxu0 0.0
    %755 = vmatprep.subr.mxu0 0.0
    %756 = vmatpush1.msra.mxu0 0.0
    %757 = vmatprep.subr.mxu0 0.0
    %758 = vmatpush1.msra.mxu0 0.0
    %759 = vmatprep.subr.mxu0 0.0
    %760 = vmatpush1.msra.mxu0 0.0
    %761 = vmatprep.subr.mxu0 0.0
    %762 = vmatpush1.msra.mxu0 0.0
    %763 = vmatprep.subr.mxu0 0.0
    %764 = vmatpush1.msra.mxu0 0.0
    %765 = vmatprep.subr.mxu0 0.0
    %766 = vmatpush1.msra.mxu0 0.0
    %767 = vmatprep.subr.mxu0 0.0
    %768 = vmatpush1.msra.mxu0 0.0
    %769 = vmatprep.subr.mxu0 0.0
    %770 = vmatpush1.msra.mxu0 0.0
    %771 = vmatprep.subr.mxu0 0.0
    %772 = vmatpush1.msra.mxu0 0.0
    %773 = vmatprep.subr.mxu0 0.0
    %774 = vmatpush1.msra.mxu0 0.0
    %775 = vmatprep.subr.mxu0 0.0
    %776 = vmatpush1.msra.mxu0 0.0
    %777 = vmatprep.subr.mxu0 0.0
    %778 = vmatpush1.msra.mxu0 0.0
    %779 = vmatprep.subr.mxu0 0.0
    %780 = vmatpush1.msra.mxu0 0.0
    %781 = vmatprep.subr.mxu0 0.0
    %782 = vmatpush1.msra.mxu0 0.0
    %783 = vmatprep.subr.mxu0 0.0
    %784 = vmatpush1.msra.mxu0 0.0
    %785 = vmatprep.subr.mxu0 0.0
    %786 = vmatpush1.msra.mxu0 0.0
    %787 = vmatprep.subr.mxu0 0.0
    %788 = vmatpush1.msra.mxu0 0.0
    %789 = vmatprep.subr.mxu0 0.0
    %790 = vmatpush1.msra.mxu0 0.0
    %791 = vmatprep.subr.mxu0 0.0
    %792 = vmatpush1.msra.mxu0 0.0
    %793 = vmatprep.subr.mxu0 0.0
    %794 = vmatpush1.msra.mxu0 0.0
    %795 = vmatprep.subr.mxu0 0.0
    %796 = vmatpush1.msra.mxu0 0.0
    %797 = vmatprep.subr.mxu0 0.0
    %798 = vmatpush1.msra.mxu0 0.0
    %799 = vmatprep.subr.mxu0 0.0
    %800 = vmatpush1.msra.mxu0 0.0
    %801 = vmatprep.mubr.f32.mxu0 0.0
    %802 = vmatmul.mubr.f32.gmra.mrb[0].mxu0 %v735
    %v803 = vpop.f32.mrb[0].mxu0
    %v804 = vadd.f32 0.0, %v803
    %v805 = vpop.f32.mrb[0].mxu0
    %806 = vdwg.mxu0
    %v807 = vadd.f32 %v731, %v804
    %v808 = vxor.u32 %v807, 2147483648
    %v809 = vmul.f32 %v808, 1.442695
    %v810 = vpow.pop %v809
    %v811 = vadd.f32 %v810, 1.0
    %v812 = vrcp.pop %v811
    %v813 = vmul.f32 1.0, %v812
    %v814 = vtanh.pop %v807
    %v815 = vmul.f32 %v813, %v621
    %817 = vrot.lane.b32.xlu0 %v814, 96
    %v818 = vpop.permute.xlu0 %817
    %v820 = vmul.f32 %v813, %v818
    %822 = vrot.lane.b32.xlu0 %v820, 16
    %v823 = vpop.permute.xlu0 %822
    %v825 = vadd.f32 %v815, %v823
    %v826 = vtanh.pop %v825
    %828 = vrot.lane.b32.xlu0 %v826, 32
    %v829 = vpop.permute.xlu0 %828
    %v831 = vmul.f32 %v813, %v829
    %vm832 = vcmp.gt.s32.totalorder %v296, 2
    %v833 = vsel %vm832, 1, 0
    %834 = vset.pattern.permute.xlu0 0
    %835 = vperm.xlu0 %834, %v833
    %v836 = vpop.permute.xlu0 %835
    %vm837 = vcmp.eq.s32.totalorder %v836, 1
    %v838 = vsel %vm837, %v831, %v620
    %v839 = vsel %vm837, %v825, %v621
    %v840 = vld [vmem:[#allocation3 + $0xa] sm:$0x3]
    %842 = vrot.lane.b32.xlu0 %v729, 80
    %v843 = vpop.permute.xlu0 %842
    %v844 = vsel %vm302, %v843, 0
    %846 = vmatprep.subr.mxu0 0.0
    %847 = vmatpush1.msra.mxu0 %v299
    %848 = vmatprep.subr.mxu0 0.0
    %849 = vmatpush1.msra.mxu0 %v300
    %850 = vmatprep.subr.mxu0 0.0
    %851 = vmatpush1.msra.mxu0 0.0
    %852 = vmatprep.subr.mxu0 0.0
    %853 = vmatpush1.msra.mxu0 0.0
    %854 = vmatprep.subr.mxu0 0.0
    %855 = vmatpush1.msra.mxu0 0.0
    %856 = vmatprep.subr.mxu0 0.0
    %857 = vmatpush1.msra.mxu0 0.0
    %858 = vmatprep.subr.mxu0 0.0
    %859 = vmatpush1.msra.mxu0 0.0
    %860 = vmatprep.subr.mxu0 0.0
    %861 = vmatpush1.msra.mxu0 0.0
    %862 = vmatprep.subr.mxu0 0.0
    %863 = vmatpush1.msra.mxu0 0.0
    %864 = vmatprep.subr.mxu0 0.0
    %865 = vmatpush1.msra.mxu0 0.0
    %866 = vmatprep.subr.mxu0 0.0
    %867 = vmatpush1.msra.mxu0 0.0
    %868 = vmatprep.subr.mxu0 0.0
    %869 = vmatpush1.msra.mxu0 0.0
    %870 = vmatprep.subr.mxu0 0.0
    %871 = vmatpush1.msra.mxu0 0.0
    %872 = vmatprep.subr.mxu0 0.0
    %873 = vmatpush1.msra.mxu0 0.0
    %874 = vmatprep.subr.mxu0 0.0
    %875 = vmatpush1.msra.mxu0 0.0
    %876 = vmatprep.subr.mxu0 0.0
    %877 = vmatpush1.msra.mxu0 0.0
    %878 = vmatprep.subr.mxu0 0.0
    %879 = vmatpush1.msra.mxu0 0.0
    %880 = vmatprep.subr.mxu0 0.0
    %881 = vmatpush1.msra.mxu0 0.0
    %882 = vmatprep.subr.mxu0 0.0
    %883 = vmatpush1.msra.mxu0 0.0
    %884 = vmatprep.subr.mxu0 0.0
    %885 = vmatpush1.msra.mxu0 0.0
    %886 = vmatprep.subr.mxu0 0.0
    %887 = vmatpush1.msra.mxu0 0.0
    %888 = vmatprep.subr.mxu0 0.0
    %889 = vmatpush1.msra.mxu0 0.0
    %890 = vmatprep.subr.mxu0 0.0
    %891 = vmatpush1.msra.mxu0 0.0
    %892 = vmatprep.subr.mxu0 0.0
    %893 = vmatpush1.msra.mxu0 0.0
    %894 = vmatprep.subr.mxu0 0.0
    %895 = vmatpush1.msra.mxu0 0.0
    %896 = vmatprep.subr.mxu0 0.0
    %897 = vmatpush1.msra.mxu0 0.0
    %898 = vmatprep.subr.mxu0 0.0
    %899 = vmatpush1.msra.mxu0 0.0
    %900 = vmatprep.subr.mxu0 0.0
    %901 = vmatpush1.msra.mxu0 0.0
    %902 = vmatprep.subr.mxu0 0.0
    %903 = vmatpush1.msra.mxu0 0.0
    %904 = vmatprep.subr.mxu0 0.0
    %905 = vmatpush1.msra.mxu0 0.0
    %906 = vmatprep.subr.mxu0 0.0
    %907 = vmatpush1.msra.mxu0 0.0
    %908 = vmatprep.subr.mxu0 0.0
    %909 = vmatpush1.msra.mxu0 0.0
    %910 = vmatprep.mubr.f32.mxu0 0.0
    %911 = vmatmul.mubr.f32.gmra.mrb[0].mxu0 %v844
    %v912 = vpop.f32.mrb[0].mxu0
    %v913 = vadd.f32 0.0, %v912
    %v914 = vpop.f32.mrb[0].mxu0
    %915 = vdwg.mxu0
    %v916 = vadd.f32 %v840, %v913
    %v917 = vxor.u32 %v916, 2147483648
    %v918 = vmul.f32 %v917, 1.442695
    %v919 = vpow.pop %v918
    %v920 = vadd.f32 %v919, 1.0
    %v921 = vrcp.pop %v920
    %v922 = vmul.f32 1.0, %v921
    %v923 = vtanh.pop %v916
    %v924 = vmul.f32 %v922, %v730
    %926 = vrot.lane.b32.xlu0 %v923, 96
    %v927 = vpop.permute.xlu0 %926
    %v929 = vmul.f32 %v922, %v927
    %931 = vrot.lane.b32.xlu0 %v929, 16
    %v932 = vpop.permute.xlu0 %931
    %v934 = vadd.f32 %v924, %v932
    %v935 = vtanh.pop %v934
    %937 = vrot.lane.b32.xlu0 %v935, 32
    %v938 = vpop.permute.xlu0 %937
    %v940 = vmul.f32 %v922, %v938
    %vm941 = vcmp.gt.s32.totalorder %v296, 5
    %v942 = vsel %vm941, 1, 0
    %943 = vset.pattern.permute.xlu0 0
    %944 = vperm.xlu0 %943, %v942
    %v945 = vpop.permute.xlu0 %944
    %vm946 = vcmp.eq.s32.totalorder %v945, 1
    %v947 = vsel %vm946, %v940, %v729
    %v948 = vsel %vm946, %v934, %v730
    %v949 = vld [vmem:[#allocation2 + $0x6] sm:$0x3]
    %951 = vrot.lane.b32.xlu0 %v838, 80
    %v952 = vpop.permute.xlu0 %951
    %v953 = vsel %vm302, %v952, 0
    %955 = vmatprep.subr.mxu0 0.0
    %956 = vmatpush1.msra.mxu0 %v297
    %957 = vmatprep.subr.mxu0 0.0
    %958 = vmatpush1.msra.mxu0 %v298
    %959 = vmatprep.subr.mxu0 0.0
    %960 = vmatpush1.msra.mxu0 0.0
    %961 = vmatprep.subr.mxu0 0.0
    %962 = vmatpush1.msra.mxu0 0.0
    %963 = vmatprep.subr.mxu0 0.0
    %964 = vmatpush1.msra.mxu0 0.0
    %965 = vmatprep.subr.mxu0 0.0
    %966 = vmatpush1.msra.mxu0 0.0
    %967 = vmatprep.subr.mxu0 0.0
    %968 = vmatpush1.msra.mxu0 0.0
    %969 = vmatprep.subr.mxu0 0.0
    %970 = vmatpush1.msra.mxu0 0.0
    %971 = vmatprep.subr.mxu0 0.0
    %972 = vmatpush1.msra.mxu0 0.0
    %973 = vmatprep.subr.mxu0 0.0
    %974 = vmatpush1.msra.mxu0 0.0
    %975 = vmatprep.subr.mxu0 0.0
    %976 = vmatpush1.msra.mxu0 0.0
    %977 = vmatprep.subr.mxu0 0.0
    %978 = vmatpush1.msra.mxu0 0.0
    %979 = vmatprep.subr.mxu0 0.0
    %980 = vmatpush1.msra.mxu0 0.0
    %981 = vmatprep.subr.mxu0 0.0
    %982 = vmatpush1.msra.mxu0 0.0
    %983 = vmatprep.subr.mxu0 0.0
    %984 = vmatpush1.msra.mxu0 0.0
    %985 = vmatprep.subr.mxu0 0.0
    %986 = vmatpush1.msra.mxu0 0.0
    %987 = vmatprep.subr.mxu0 0.0
    %988 = vmatpush1.msra.mxu0 0.0
    %989 = vmatprep.subr.mxu0 0.0
    %990 = vmatpush1.msra.mxu0 0.0
    %991 = vmatprep.subr.mxu0 0.0
    %992 = vmatpush1.msra.mxu0 0.0
    %993 = vmatprep.subr.mxu0 0.0
    %994 = vmatpush1.msra.mxu0 0.0
    %995 = vmatprep.subr.mxu0 0.0
    %996 = vmatpush1.msra.mxu0 0.0
    %997 = vmatprep.subr.mxu0 0.0
    %998 = vmatpush1.msra.mxu0 0.0
    %999 = vmatprep.subr.mxu0 0.0
    %1000 = vmatpush1.msra.mxu0 0.0
    %1001 = vmatprep.subr.mxu0 0.0
    %1002 = vmatpush1.msra.mxu0 0.0
    %1003 = vmatprep.subr.mxu0 0.0
    %1004 = vmatpush1.msra.mxu0 0.0
    %1005 = vmatprep.subr.mxu0 0.0
    %1006 = vmatpush1.msra.mxu0 0.0
    %1007 = vmatprep.subr.mxu0 0.0
    %1008 = vmatpush1.msra.mxu0 0.0
    %1009 = vmatprep.subr.mxu0 0.0
    %1010 = vmatpush1.msra.mxu0 0.0
    %1011 = vmatprep.subr.mxu0 0.0
    %1012 = vmatpush1.msra.mxu0 0.0
    %1013 = vmatprep.subr.mxu0 0.0
    %1014 = vmatpush1.msra.mxu0 0.0
    %1015 = vmatprep.subr.mxu0 0.0
    %1016 = vmatpush1.msra.mxu0 0.0
    %1017 = vmatprep.subr.mxu0 0.0
    %1018 = vmatpush1.msra.mxu0 0.0
    %1019 = vmatprep.mubr.f32.mxu0 0.0
    %1020 = vmatmul.mubr.f32.gmra.mrb[0].mxu0 %v953
    %v1021 = vpop.f32.mrb[0].mxu0
    %v1022 = vadd.f32 0.0, %v1021
    %v1023 = vpop.f32.mrb[0].mxu0
    %1024 = vdwg.mxu0
    %v1025 = vadd.f32 %v949, %v1022
    %v1026 = vxor.u32 %v1025, 2147483648
    %v1027 = vmul.f32 %v1026, 1.442695
    %v1028 = vpow.pop %v1027
    %v1029 = vadd.f32 %v1028, 1.0
    %v1030 = vrcp.pop %v1029
    %v1031 = vmul.f32 1.0, %v1030
    %v1032 = vtanh.pop %v1025
    %v1033 = vmul.f32 %v1031, %v839
    %1035 = vrot.lane.b32.xlu0 %v1032, 96
    %v1036 = vpop.permute.xlu0 %1035
    %v1038 = vmul.f32 %v1031, %v1036
    %1040 = vrot.lane.b32.xlu0 %v1038, 16
    %v1041 = vpop.permute.xlu0 %1040
    %v1043 = vadd.f32 %v1033, %v1041
    %v1044 = vtanh.pop %v1043
    %1046 = vrot.lane.b32.xlu0 %v1044, 32
    %v1047 = vpop.permute.xlu0 %1046
    %v1049 = vmul.f32 %v1031, %v1047
    %vm1050 = vcmp.gt.s32.totalorder %v296, 3
    %v1051 = vsel %vm1050, 1, 0
    %1052 = vset.pattern.permute.xlu0 0
    %1053 = vperm.xlu0 %1052, %v1051
    %v1054 = vpop.permute.xlu0 %1053
    %vm1055 = vcmp.eq.s32.totalorder %v1054, 1
    %v1056 = vsel %vm1055, %v1049, %v838
    %v1057 = vsel %vm1055, %v1043, %v839
    %v1058 = vld [vmem:[#allocation3 + $0x8] sm:$0x3]
    %1060 = vrot.lane.b32.xlu0 %v947, 80
    %v1061 = vpop.permute.xlu0 %1060
    %v1062 = vsel %vm302, %v1061, 0
    %1064 = vmatprep.subr.mxu0 0.0
    %1065 = vmatpush1.msra.mxu0 %v299
    %1066 = vmatprep.subr.mxu0 0.0
    %1067 = vmatpush1.msra.mxu0 %v300
    %1068 = vmatprep.subr.mxu0 0.0
    %1069 = vmatpush1.msra.mxu0 0.0
    %1070 = vmatprep.subr.mxu0 0.0
    %1071 = vmatpush1.msra.mxu0 0.0
    %1072 = vmatprep.subr.mxu0 0.0
    %1073 = vmatpush1.msra.mxu0 0.0
    %1074 = vmatprep.subr.mxu0 0.0
    %1075 = vmatpush1.msra.mxu0 0.0
    %1076 = vmatprep.subr.mxu0 0.0
    %1077 = vmatpush1.msra.mxu0 0.0
    %1078 = vmatprep.subr.mxu0 0.0
    %1079 = vmatpush1.msra.mxu0 0.0
    %1080 = vmatprep.subr.mxu0 0.0
    %1081 = vmatpush1.msra.mxu0 0.0
    %1082 = vmatprep.subr.mxu0 0.0
    %1083 = vmatpush1.msra.mxu0 0.0
    %1084 = vmatprep.subr.mxu0 0.0
    %1085 = vmatpush1.msra.mxu0 0.0
    %1086 = vmatprep.subr.mxu0 0.0
    %1087 = vmatpush1.msra.mxu0 0.0
    %1088 = vmatprep.subr.mxu0 0.0
    %1089 = vmatpush1.msra.mxu0 0.0
    %1090 = vmatprep.subr.mxu0 0.0
    %1091 = vmatpush1.msra.mxu0 0.0
    %1092 = vmatprep.subr.mxu0 0.0
    %1093 = vmatpush1.msra.mxu0 0.0
    %1094 = vmatprep.subr.mxu0 0.0
    %1095 = vmatpush1.msra.mxu0 0.0
    %1096 = vmatprep.subr.mxu0 0.0
    %1097 = vmatpush1.msra.mxu0 0.0
    %1098 = vmatprep.subr.mxu0 0.0
    %1099 = vmatpush1.msra.mxu0 0.0
    %1100 = vmatprep.subr.mxu0 0.0
    %1101 = vmatpush1.msra.mxu0 0.0
    %1102 = vmatprep.subr.mxu0 0.0
    %1103 = vmatpush1.msra.mxu0 0.0
    %1104 = vmatprep.subr.mxu0 0.0
    %1105 = vmatpush1.msra.mxu0 0.0
    %1106 = vmatprep.subr.mxu0 0.0
    %1107 = vmatpush1.msra.mxu0 0.0
    %1108 = vmatprep.subr.mxu0 0.0
    %1109 = vmatpush1.msra.mxu0 0.0
    %1110 = vmatprep.subr.mxu0 0.0
    %1111 = vmatpush1.msra.mxu0 0.0
    %1112 = vmatprep.subr.mxu0 0.0
    %1113 = vmatpush1.msra.mxu0 0.0
    %1114 = vmatprep.subr.mxu0 0.0
    %1115 = vmatpush1.msra.mxu0 0.0
    %1116 = vmatprep.subr.mxu0 0.0
    %1117 = vmatpush1.msra.mxu0 0.0
    %1118 = vmatprep.subr.mxu0 0.0
    %1119 = vmatpush1.msra.mxu0 0.0
    %1120 = vmatprep.subr.mxu0 0.0
    %1121 = vmatpush1.msra.mxu0 0.0
    %1122 = vmatprep.subr.mxu0 0.0
    %1123 = vmatpush1.msra.mxu0 0.0
    %1124 = vmatprep.subr.mxu0 0.0
    %1125 = vmatpush1.msra.mxu0 0.0
    %1126 = vmatprep.subr.mxu0 0.0
    %1127 = vmatpush1.msra.mxu0 0.0
    %1128 = vmatprep.mubr.f32.mxu0 0.0
    %1129 = vmatmul.mubr.f32.gmra.mrb[0].mxu0 %v1062
    %v1130 = vpop.f32.mrb[0].mxu0
    %v1131 = vadd.f32 0.0, %v1130
    %v1132 = vpop.f32.mrb[0].mxu0
    %1133 = vdwg.mxu0
    %v1134 = vadd.f32 %v1058, %v1131
    %v1135 = vxor.u32 %v1134, 2147483648
    %v1136 = vmul.f32 %v1135, 1.442695
    %v1137 = vpow.pop %v1136
    %v1138 = vadd.f32 %v1137, 1.0
    %v1139 = vrcp.pop %v1138
    %v1140 = vmul.f32 1.0, %v1139
    %v1141 = vtanh.pop %v1134
    %v1142 = vmul.f32 %v1140, %v948
    %1144 = vrot.lane.b32.xlu0 %v1141, 96
    %v1145 = vpop.permute.xlu0 %1144
    %v1147 = vmul.f32 %v1140, %v1145
    %1149 = vrot.lane.b32.xlu0 %v1147, 16
    %v1150 = vpop.permute.xlu0 %1149
    %v1152 = vadd.f32 %v1142, %v1150
    %v1153 = vtanh.pop %v1152
    %1155 = vrot.lane.b32.xlu0 %v1153, 32
    %v1156 = vpop.permute.xlu0 %1155
    %v1158 = vmul.f32 %v1140, %v1156
    %vm1159 = vcmp.gt.s32.totalorder %v296, 4
    %v1160 = vsel %vm1159, 1, 0
    %1161 = vset.pattern.permute.xlu0 0
    %1162 = vperm.xlu0 %1161, %v1160
    %v1163 = vpop.permute.xlu0 %1162
    %vm1164 = vcmp.eq.s32.totalorder %v1163, 1
    %v1165 = vsel %vm1164, %v1158, %v947
    %v1166 = vsel %vm1164, %v1152, %v948
    %v1167 = vld [vmem:[#allocation2 + $0x8] sm:$0x3]
    %1169 = vrot.lane.b32.xlu0 %v1056, 80
    %v1170 = vpop.permute.xlu0 %1169
    %v1171 = vsel %vm302, %v1170, 0
    %1173 = vmatprep.subr.mxu0 0.0
    %1174 = vmatpush1.msra.mxu0 %v297
    %1175 = vmatprep.subr.mxu0 0.0
    %1176 = vmatpush1.msra.mxu0 %v298
    %1177 = vmatprep.subr.mxu0 0.0
    %1178 = vmatpush1.msra.mxu0 0.0
    %1179 = vmatprep.subr.mxu0 0.0
    %1180 = vmatpush1.msra.mxu0 0.0
    %1181 = vmatprep.subr.mxu0 0.0
    %1182 = vmatpush1.msra.mxu0 0.0
    %1183 = vmatprep.subr.mxu0 0.0
    %1184 = vmatpush1.msra.mxu0 0.0
    %1185 = vmatprep.subr.mxu0 0.0
    %1186 = vmatpush1.msra.mxu0 0.0
    %1187 = vmatprep.subr.mxu0 0.0
    %1188 = vmatpush1.msra.mxu0 0.0
    %1189 = vmatprep.subr.mxu0 0.0
    %1190 = vmatpush1.msra.mxu0 0.0
    %1191 = vmatprep.subr.mxu0 0.0
    %1192 = vmatpush1.msra.mxu0 0.0
    %1193 = vmatprep.subr.mxu0 0.0
    %1194 = vmatpush1.msra.mxu0 0.0
    %1195 = vmatprep.subr.mxu0 0.0
    %1196 = vmatpush1.msra.mxu0 0.0
    %1197 = vmatprep.subr.mxu0 0.0
    %1198 = vmatpush1.msra.mxu0 0.0
    %1199 = vmatprep.subr.mxu0 0.0
    %1200 = vmatpush1.msra.mxu0 0.0
    %1201 = vmatprep.subr.mxu0 0.0
    %1202 = vmatpush1.msra.mxu0 0.0
    %1203 = vmatprep.subr.mxu0 0.0
    %1204 = vmatpush1.msra.mxu0 0.0
    %1205 = vmatprep.subr.mxu0 0.0
    %1206 = vmatpush1.msra.mxu0 0.0
    %1207 = vmatprep.subr.mxu0 0.0
    %1208 = vmatpush1.msra.mxu0 0.0
    %1209 = vmatprep.subr.mxu0 0.0
    %1210 = vmatpush1.msra.mxu0 0.0
    %1211 = vmatprep.subr.mxu0 0.0
    %1212 = vmatpush1.msra.mxu0 0.0
    %1213 = vmatprep.subr.mxu0 0.0
    %1214 = vmatpush1.msra.mxu0 0.0
    %1215 = vmatprep.subr.mxu0 0.0
    %1216 = vmatpush1.msra.mxu0 0.0
    %1217 = vmatprep.subr.mxu0 0.0
    %1218 = vmatpush1.msra.mxu0 0.0
    %1219 = vmatprep.subr.mxu0 0.0
    %1220 = vmatpush1.msra.mxu0 0.0
    %1221 = vmatprep.subr.mxu0 0.0
    %1222 = vmatpush1.msra.mxu0 0.0
    %1223 = vmatprep.subr.mxu0 0.0
    %1224 = vmatpush1.msra.mxu0 0.0
    %1225 = vmatprep.subr.mxu0 0.0
    %1226 = vmatpush1.msra.mxu0 0.0
    %1227 = vmatprep.subr.mxu0 0.0
    %1228 = vmatpush1.msra.mxu0 0.0
    %1229 = vmatprep.subr.mxu0 0.0
    %1230 = vmatpush1.msra.mxu0 0.0
    %1231 = vmatprep.subr.mxu0 0.0
    %1232 = vmatpush1.msra.mxu0 0.0
    %1233 = vmatprep.subr.mxu0 0.0
    %1234 = vmatpush1.msra.mxu0 0.0
    %1235 = vmatprep.subr.mxu0 0.0
    %1236 = vmatpush1.msra.mxu0 0.0
    %1237 = vmatprep.mubr.f32.mxu0 0.0
    %1238 = vmatmul.mubr.f32.gmra.mrb[0].mxu0 %v1171
    %v1239 = vpop.f32.mrb[0].mxu0
    %v1240 = vadd.f32 0.0, %v1239
    %v1241 = vpop.f32.mrb[0].mxu0
    %1242 = vdwg.mxu0
    %v1243 = vadd.f32 %v1167, %v1240
    %v1244 = vxor.u32 %v1243, 2147483648
    %v1245 = vmul.f32 %v1244, 1.442695
    %v1246 = vpow.pop %v1245
    %v1247 = vadd.f32 %v1246, 1.0
    %v1248 = vrcp.pop %v1247
    %v1249 = vmul.f32 1.0, %v1248
    %v1250 = vtanh.pop %v1243
    %v1251 = vmul.f32 %v1249, %v1057
    %1253 = vrot.lane.b32.xlu0 %v1250, 96
    %v1254 = vpop.permute.xlu0 %1253
    %v1256 = vmul.f32 %v1249, %v1254
    %1258 = vrot.lane.b32.xlu0 %v1256, 16
    %v1259 = vpop.permute.xlu0 %1258
    %v1261 = vadd.f32 %v1251, %v1259
    %v1262 = vtanh.pop %v1261
    %1264 = vrot.lane.b32.xlu0 %v1262, 32
    %v1265 = vpop.permute.xlu0 %1264
    %v1267 = vmul.f32 %v1249, %v1265
    %v1268 = vsel %vm1164, %v1267, %v1056
    %v1269 = vsel %vm1164, %v1261, %v1057
    %v1270 = vld [vmem:[#allocation3 + $0x6] sm:$0x3]
    %1272 = vrot.lane.b32.xlu0 %v1165, 80
    %v1273 = vpop.permute.xlu0 %1272
    %v1274 = vsel %vm302, %v1273, 0
    %1276 = vmatprep.subr.mxu0 0.0
    %1277 = vmatpush1.msra.mxu0 %v299
    %1278 = vmatprep.subr.mxu0 0.0
    %1279 = vmatpush1.msra.mxu0 %v300
    %1280 = vmatprep.subr.mxu0 0.0
    %1281 = vmatpush1.msra.mxu0 0.0
    %1282 = vmatprep.subr.mxu0 0.0
    %1283 = vmatpush1.msra.mxu0 0.0
    %1284 = vmatprep.subr.mxu0 0.0
    %1285 = vmatpush1.msra.mxu0 0.0
    %1286 = vmatprep.subr.mxu0 0.0
    %1287 = vmatpush1.msra.mxu0 0.0
    %1288 = vmatprep.subr.mxu0 0.0
    %1289 = vmatpush1.msra.mxu0 0.0
    %1290 = vmatprep.subr.mxu0 0.0
    %1291 = vmatpush1.msra.mxu0 0.0
    %1292 = vmatprep.subr.mxu0 0.0
    %1293 = vmatpush1.msra.mxu0 0.0
    %1294 = vmatprep.subr.mxu0 0.0
    %1295 = vmatpush1.msra.mxu0 0.0
    %1296 = vmatprep.subr.mxu0 0.0
    %1297 = vmatpush1.msra.mxu0 0.0
    %1298 = vmatprep.subr.mxu0 0.0
    %1299 = vmatpush1.msra.mxu0 0.0
    %1300 = vmatprep.subr.mxu0 0.0
    %1301 = vmatpush1.msra.mxu0 0.0
    %1302 = vmatprep.subr.mxu0 0.0
    %1303 = vmatpush1.msra.mxu0 0.0
    %1304 = vmatprep.subr.mxu0 0.0
    %1305 = vmatpush1.msra.mxu0 0.0
    %1306 = vmatprep.subr.mxu0 0.0
    %1307 = vmatpush1.msra.mxu0 0.0
    %1308 = vmatprep.subr.mxu0 0.0
    %1309 = vmatpush1.msra.mxu0 0.0
    %1310 = vmatprep.subr.mxu0 0.0
    %1311 = vmatpush1.msra.mxu0 0.0
    %1312 = vmatprep.subr.mxu0 0.0
    %1313 = vmatpush1.msra.mxu0 0.0
    %1314 = vmatprep.subr.mxu0 0.0
    %1315 = vmatpush1.msra.mxu0 0.0
    %1316 = vmatprep.subr.mxu0 0.0
    %1317 = vmatpush1.msra.mxu0 0.0
    %1318 = vmatprep.subr.mxu0 0.0
    %1319 = vmatpush1.msra.mxu0 0.0
    %1320 = vmatprep.subr.mxu0 0.0
    %1321 = vmatpush1.msra.mxu0 0.0
    %1322 = vmatprep.subr.mxu0 0.0
    %1323 = vmatpush1.msra.mxu0 0.0
    %1324 = vmatprep.subr.mxu0 0.0
    %1325 = vmatpush1.msra.mxu0 0.0
    %1326 = vmatprep.subr.mxu0 0.0
    %1327 = vmatpush1.msra.mxu0 0.0
    %1328 = vmatprep.subr.mxu0 0.0
    %1329 = vmatpush1.msra.mxu0 0.0
    %1330 = vmatprep.subr.mxu0 0.0
    %1331 = vmatpush1.msra.mxu0 0.0
    %1332 = vmatprep.subr.mxu0 0.0
    %1333 = vmatpush1.msra.mxu0 0.0
    %1334 = vmatprep.subr.mxu0 0.0
    %1335 = vmatpush1.msra.mxu0 0.0
    %1336 = vmatprep.subr.mxu0 0.0
    %1337 = vmatpush1.msra.mxu0 0.0
    %1338 = vmatprep.subr.mxu0 0.0
    %1339 = vmatpush1.msra.mxu0 0.0
    %1340 = vmatprep.mubr.f32.mxu0 0.0
    %1341 = vmatmul.mubr.f32.gmra.mrb[0].mxu0 %v1274
    %v1342 = vpop.f32.mrb[0].mxu0
    %v1343 = vadd.f32 0.0, %v1342
    %v1344 = vpop.f32.mrb[0].mxu0
    %1345 = vdwg.mxu0
    %v1346 = vadd.f32 %v1270, %v1343
    %v1347 = vxor.u32 %v1346, 2147483648
    %v1348 = vmul.f32 %v1347, 1.442695
    %v1349 = vpow.pop %v1348
    %v1350 = vadd.f32 %v1349, 1.0
    %v1351 = vrcp.pop %v1350
    %v1352 = vmul.f32 1.0, %v1351
    %v1353 = vtanh.pop %v1346
    %v1354 = vmul.f32 %v1352, %v1166
    %1356 = vrot.lane.b32.xlu0 %v1353, 96
    %v1357 = vpop.permute.xlu0 %1356
    %v1359 = vmul.f32 %v1352, %v1357
    %1361 = vrot.lane.b32.xlu0 %v1359, 16
    %v1362 = vpop.permute.xlu0 %1361
    %v1364 = vadd.f32 %v1354, %v1362
    %v1365 = vtanh.pop %v1364
    %1367 = vrot.lane.b32.xlu0 %v1365, 32
    %v1368 = vpop.permute.xlu0 %1367
    %v1370 = vmul.f32 %v1352, %v1368
    %v1371 = vsel %vm1055, %v1370, %v1165
    %v1372 = vsel %vm1055, %v1364, %v1166
    %v1373 = vld [vmem:[#allocation2 + $0xa] sm:$0x3]
    %1375 = vrot.lane.b32.xlu0 %v1268, 80
    %v1376 = vpop.permute.xlu0 %1375
    %v1377 = vsel %vm302, %v1376, 0
    %1379 = vmatprep.subr.mxu0 0.0
    %1380 = vmatpush1.msra.mxu0 %v297
    %1381 = vmatprep.subr.mxu0 0.0
    %1382 = vmatpush1.msra.mxu0 %v298
    %1383 = vmatprep.subr.mxu0 0.0
    %1384 = vmatpush1.msra.mxu0 0.0
    %1385 = vmatprep.subr.mxu0 0.0
    %1386 = vmatpush1.msra.mxu0 0.0
    %1387 = vmatprep.subr.mxu0 0.0
    %1388 = vmatpush1.msra.mxu0 0.0
    %1389 = vmatprep.subr.mxu0 0.0
    %1390 = vmatpush1.msra.mxu0 0.0
    %1391 = vmatprep.subr.mxu0 0.0
    %1392 = vmatpush1.msra.mxu0 0.0
    %1393 = vmatprep.subr.mxu0 0.0
    %1394 = vmatpush1.msra.mxu0 0.0
    %1395 = vmatprep.subr.mxu0 0.0
    %1396 = vmatpush1.msra.mxu0 0.0
    %1397 = vmatprep.subr.mxu0 0.0
    %1398 = vmatpush1.msra.mxu0 0.0
    %1399 = vmatprep.subr.mxu0 0.0
    %1400 = vmatpush1.msra.mxu0 0.0
    %1401 = vmatprep.subr.mxu0 0.0
    %1402 = vmatpush1.msra.mxu0 0.0
    %1403 = vmatprep.subr.mxu0 0.0
    %1404 = vmatpush1.msra.mxu0 0.0
    %1405 = vmatprep.subr.mxu0 0.0
    %1406 = vmatpush1.msra.mxu0 0.0
    %1407 = vmatprep.subr.mxu0 0.0
    %1408 = vmatpush1.msra.mxu0 0.0
    %1409 = vmatprep.subr.mxu0 0.0
    %1410 = vmatpush1.msra.mxu0 0.0
    %1411 = vmatprep.subr.mxu0 0.0
    %1412 = vmatpush1.msra.mxu0 0.0
    %1413 = vmatprep.subr.mxu0 0.0
    %1414 = vmatpush1.msra.mxu0 0.0
    %1415 = vmatprep.subr.mxu0 0.0
    %1416 = vmatpush1.msra.mxu0 0.0
    %1417 = vmatprep.subr.mxu0 0.0
    %1418 = vmatpush1.msra.mxu0 0.0
    %1419 = vmatprep.subr.mxu0 0.0
    %1420 = vmatpush1.msra.mxu0 0.0
    %1421 = vmatprep.subr.mxu0 0.0
    %1422 = vmatpush1.msra.mxu0 0.0
    %1423 = vmatprep.subr.mxu0 0.0
    %1424 = vmatpush1.msra.mxu0 0.0
    %1425 = vmatprep.subr.mxu0 0.0
    %1426 = vmatpush1.msra.mxu0 0.0
    %1427 = vmatprep.subr.mxu0 0.0
    %1428 = vmatpush1.msra.mxu0 0.0
    %1429 = vmatprep.subr.mxu0 0.0
    %1430 = vmatpush1.msra.mxu0 0.0
    %1431 = vmatprep.subr.mxu0 0.0
    %1432 = vmatpush1.msra.mxu0 0.0
    %1433 = vmatprep.subr.mxu0 0.0
    %1434 = vmatpush1.msra.mxu0 0.0
    %1435 = vmatprep.subr.mxu0 0.0
    %1436 = vmatpush1.msra.mxu0 0.0
    %1437 = vmatprep.subr.mxu0 0.0
    %1438 = vmatpush1.msra.mxu0 0.0
    %1439 = vmatprep.subr.mxu0 0.0
    %1440 = vmatpush1.msra.mxu0 0.0
    %1441 = vmatprep.subr.mxu0 0.0
    %1442 = vmatpush1.msra.mxu0 0.0
    %1443 = vmatprep.mubr.f32.mxu0 0.0
    %1444 = vmatmul.mubr.f32.gmra.mrb[0].mxu0 %v1377
    %v1445 = vpop.f32.mrb[0].mxu0
    %v1446 = vadd.f32 0.0, %v1445
    %v1447 = vpop.f32.mrb[0].mxu0
    %1448 = vdwg.mxu0
    %v1449 = vadd.f32 %v1373, %v1446
    %v1450 = vxor.u32 %v1449, 2147483648
    %v1451 = vmul.f32 %v1450, 1.442695
    %v1452 = vpow.pop %v1451
    %v1453 = vadd.f32 %v1452, 1.0
    %v1454 = vrcp.pop %v1453
    %v1455 = vmul.f32 1.0, %v1454
    %v1456 = vtanh.pop %v1449
    %v1457 = vmul.f32 %v1455, %v1269
    %1459 = vrot.lane.b32.xlu0 %v1456, 96
    %v1460 = vpop.permute.xlu0 %1459
    %v1462 = vmul.f32 %v1455, %v1460
    %1464 = vrot.lane.b32.xlu0 %v1462, 16
    %v1465 = vpop.permute.xlu0 %1464
    %v1467 = vadd.f32 %v1457, %v1465
    %v1468 = vtanh.pop %v1467
    %1470 = vrot.lane.b32.xlu0 %v1468, 32
    %v1471 = vpop.permute.xlu0 %1470
    %v1473 = vmul.f32 %v1455, %v1471
    %v1474 = vsel %vm946, %v1473, %v1268
    %v1475 = vsel %vm946, %v1467, %v1269
    %v1476 = vld [vmem:[#allocation3 + $0x4] sm:$0x3]
    %1478 = vrot.lane.b32.xlu0 %v1371, 80
    %v1479 = vpop.permute.xlu0 %1478
    %v1480 = vsel %vm302, %v1479, 0
    %1482 = vmatprep.subr.mxu0 0.0
    %1483 = vmatpush1.msra.mxu0 %v299
    %1484 = vmatprep.subr.mxu0 0.0
    %1485 = vmatpush1.msra.mxu0 %v300
    %1486 = vmatprep.subr.mxu0 0.0
    %1487 = vmatpush1.msra.mxu0 0.0
    %1488 = vmatprep.subr.mxu0 0.0
    %1489 = vmatpush1.msra.mxu0 0.0
    %1490 = vmatprep.subr.mxu0 0.0
    %1491 = vmatpush1.msra.mxu0 0.0
    %1492 = vmatprep.subr.mxu0 0.0
    %1493 = vmatpush1.msra.mxu0 0.0
    %1494 = vmatprep.subr.mxu0 0.0
    %1495 = vmatpush1.msra.mxu0 0.0
    %1496 = vmatprep.subr.mxu0 0.0
    %1497 = vmatpush1.msra.mxu0 0.0
    %1498 = vmatprep.subr.mxu0 0.0
    %1499 = vmatpush1.msra.mxu0 0.0
    %1500 = vmatprep.subr.mxu0 0.0
    %1501 = vmatpush1.msra.mxu0 0.0
    %1502 = vmatprep.subr.mxu0 0.0
    %1503 = vmatpush1.msra.mxu0 0.0
    %1504 = vmatprep.subr.mxu0 0.0
    %1505 = vmatpush1.msra.mxu0 0.0
    %1506 = vmatprep.subr.mxu0 0.0
    %1507 = vmatpush1.msra.mxu0 0.0
    %1508 = vmatprep.subr.mxu0 0.0
    %1509 = vmatpush1.msra.mxu0 0.0
    %1510 = vmatprep.subr.mxu0 0.0
    %1511 = vmatpush1.msra.mxu0 0.0
    %1512 = vmatprep.subr.mxu0 0.0
    %1513 = vmatpush1.msra.mxu0 0.0
    %1514 = vmatprep.subr.mxu0 0.0
    %1515 = vmatpush1.msra.mxu0 0.0
    %1516 = vmatprep.subr.mxu0 0.0
    %1517 = vmatpush1.msra.mxu0 0.0
    %1518 = vmatprep.subr.mxu0 0.0
    %1519 = vmatpush1.msra.mxu0 0.0
    %1520 = vmatprep.subr.mxu0 0.0
    %1521 = vmatpush1.msra.mxu0 0.0
    %1522 = vmatprep.subr.mxu0 0.0
    %1523 = vmatpush1.msra.mxu0 0.0
    %1524 = vmatprep.subr.mxu0 0.0
    %1525 = vmatpush1.msra.mxu0 0.0
    %1526 = vmatprep.subr.mxu0 0.0
    %1527 = vmatpush1.msra.mxu0 0.0
    %1528 = vmatprep.subr.mxu0 0.0
    %1529 = vmatpush1.msra.mxu0 0.0
    %1530 = vmatprep.subr.mxu0 0.0
    %1531 = vmatpush1.msra.mxu0 0.0
    %1532 = vmatprep.subr.mxu0 0.0
    %1533 = vmatpush1.msra.mxu0 0.0
    %1534 = vmatprep.subr.mxu0 0.0
    %1535 = vmatpush1.msra.mxu0 0.0
    %1536 = vmatprep.subr.mxu0 0.0
    %1537 = vmatpush1.msra.mxu0 0.0
    %1538 = vmatprep.subr.mxu0 0.0
    %1539 = vmatpush1.msra.mxu0 0.0
    %1540 = vmatprep.subr.mxu0 0.0
    %1541 = vmatpush1.msra.mxu0 0.0
    %1542 = vmatprep.subr.mxu0 0.0
    %1543 = vmatpush1.msra.mxu0 0.0
    %1544 = vmatprep.subr.mxu0 0.0
    %1545 = vmatpush1.msra.mxu0 0.0
    %1546 = vmatprep.mubr.f32.mxu0 0.0
    %1547 = vmatmul.mubr.f32.gmra.mrb[0].mxu0 %v1480
    %v1548 = vpop.f32.mrb[0].mxu0
    %v1549 = vadd.f32 0.0, %v1548
    %v1550 = vpop.f32.mrb[0].mxu0
    %1551 = vdwg.mxu0
    %v1552 = vadd.f32 %v1476, %v1549
    %v1553 = vxor.u32 %v1552, 2147483648
    %v1554 = vmul.f32 %v1553, 1.442695
    %v1555 = vpow.pop %v1554
    %v1556 = vadd.f32 %v1555, 1.0
    %v1557 = vrcp.pop %v1556
    %v1558 = vmul.f32 1.0, %v1557
    %v1559 = vtanh.pop %v1552
    %v1560 = vmul.f32 %v1558, %v1372
    %1562 = vrot.lane.b32.xlu0 %v1559, 96
    %v1563 = vpop.permute.xlu0 %1562
    %v1565 = vmul.f32 %v1558, %v1563
    %1567 = vrot.lane.b32.xlu0 %v1565, 16
    %v1568 = vpop.permute.xlu0 %1567
    %v1570 = vadd.f32 %v1560, %v1568
    %v1571 = vtanh.pop %v1570
    %1573 = vrot.lane.b32.xlu0 %v1571, 32
    %v1574 = vpop.permute.xlu0 %1573
    %v1576 = vmul.f32 %v1558, %v1574
    %v1577 = vsel %vm837, %v1576, %v1371
    %v1578 = vsel %vm837, %v1570, %v1372
    %v1579 = vld [vmem:[#allocation2 + $0xc] sm:$0x3]
    %1581 = vrot.lane.b32.xlu0 %v1474, 80
    %v1582 = vpop.permute.xlu0 %1581
    %v1583 = vsel %vm302, %v1582, 0
    %1585 = vmatprep.subr.mxu0 0.0
    %1586 = vmatpush1.msra.mxu0 %v297
    %1587 = vmatprep.subr.mxu0 0.0
    %1588 = vmatpush1.msra.mxu0 %v298
    %1589 = vmatprep.subr.mxu0 0.0
    %1590 = vmatpush1.msra.mxu0 0.0
    %1591 = vmatprep.subr.mxu0 0.0
    %1592 = vmatpush1.msra.mxu0 0.0
    %1593 = vmatprep.subr.mxu0 0.0
    %1594 = vmatpush1.msra.mxu0 0.0
    %1595 = vmatprep.subr.mxu0 0.0
    %1596 = vmatpush1.msra.mxu0 0.0
    %1597 = vmatprep.subr.mxu0 0.0
    %1598 = vmatpush1.msra.mxu0 0.0
    %1599 = vmatprep.subr.mxu0 0.0
    %1600 = vmatpush1.msra.mxu0 0.0
    %1601 = vmatprep.subr.mxu0 0.0
    %1602 = vmatpush1.msra.mxu0 0.0
    %1603 = vmatprep.subr.mxu0 0.0
    %1604 = vmatpush1.msra.mxu0 0.0
    %1605 = vmatprep.subr.mxu0 0.0
    %1606 = vmatpush1.msra.mxu0 0.0
    %1607 = vmatprep.subr.mxu0 0.0
    %1608 = vmatpush1.msra.mxu0 0.0
    %1609 = vmatprep.subr.mxu0 0.0
    %1610 = vmatpush1.msra.mxu0 0.0
    %1611 = vmatprep.subr.mxu0 0.0
    %1612 = vmatpush1.msra.mxu0 0.0
    %1613 = vmatprep.subr.mxu0 0.0
    %1614 = vmatpush1.msra.mxu0 0.0
    %1615 = vmatprep.subr.mxu0 0.0
    %1616 = vmatpush1.msra.mxu0 0.0
    %1617 = vmatprep.subr.mxu0 0.0
    %1618 = vmatpush1.msra.mxu0 0.0
    %1619 = vmatprep.subr.mxu0 0.0
    %1620 = vmatpush1.msra.mxu0 0.0
    %1621 = vmatprep.subr.mxu0 0.0
    %1622 = vmatpush1.msra.mxu0 0.0
    %1623 = vmatprep.subr.mxu0 0.0
    %1624 = vmatpush1.msra.mxu0 0.0
    %1625 = vmatprep.subr.mxu0 0.0
    %1626 = vmatpush1.msra.mxu0 0.0
    %1627 = vmatprep.subr.mxu0 0.0
    %1628 = vmatpush1.msra.mxu0 0.0
    %1629 = vmatprep.subr.mxu0 0.0
    %1630 = vmatpush1.msra.mxu0 0.0
    %1631 = vmatprep.subr.mxu0 0.0
    %1632 = vmatpush1.msra.mxu0 0.0
    %1633 = vmatprep.subr.mxu0 0.0
    %1634 = vmatpush1.msra.mxu0 0.0
    %1635 = vmatprep.subr.mxu0 0.0
    %1636 = vmatpush1.msra.mxu0 0.0
    %1637 = vmatprep.subr.mxu0 0.0
    %1638 = vmatpush1.msra.mxu0 0.0
    %1639 = vmatprep.subr.mxu0 0.0
    %1640 = vmatpush1.msra.mxu0 0.0
    %1641 = vmatprep.subr.mxu0 0.0
    %1642 = vmatpush1.msra.mxu0 0.0
    %1643 = vmatprep.subr.mxu0 0.0
    %1644 = vmatpush1.msra.mxu0 0.0
    %1645 = vmatprep.subr.mxu0 0.0
    %1646 = vmatpush1.msra.mxu0 0.0
    %1647 = vmatprep.subr.mxu0 0.0
    %1648 = vmatpush1.msra.mxu0 0.0
    %1649 = vmatprep.mubr.f32.mxu0 0.0
    %1650 = vmatmul.mubr.f32.gmra.mrb[0].mxu0 %v1583
    %v1651 = vpop.f32.mrb[0].mxu0
    %v1652 = vadd.f32 0.0, %v1651
    %v1653 = vpop.f32.mrb[0].mxu0
    %1654 = vdwg.mxu0
    %v1655 = vadd.f32 %v1579, %v1652
    %v1656 = vxor.u32 %v1655, 2147483648
    %v1657 = vmul.f32 %v1656, 1.442695
    %v1658 = vpow.pop %v1657
    %v1659 = vadd.f32 %v1658, 1.0
    %v1660 = vrcp.pop %v1659
    %v1661 = vmul.f32 1.0, %v1660
    %v1662 = vtanh.pop %v1655
    %v1663 = vmul.f32 %v1661, %v1475
    %1665 = vrot.lane.b32.xlu0 %v1662, 96
    %v1666 = vpop.permute.xlu0 %1665
    %v1668 = vmul.f32 %v1661, %v1666
    %1670 = vrot.lane.b32.xlu0 %v1668, 16
    %v1671 = vpop.permute.xlu0 %1670
    %v1673 = vadd.f32 %v1663, %v1671
    %v1674 = vtanh.pop %v1673
    %1676 = vrot.lane.b32.xlu0 %v1674, 32
    %v1677 = vpop.permute.xlu0 %1676
    %v1679 = vmul.f32 %v1661, %v1677
    %v1680 = vsel %vm728, %v1679, %v1474
    %v1681 = vsel %vm728, %v1673, %v1475
    %v1682 = vld [vmem:[#allocation3 + $0x2] sm:$0x3]
    %1684 = vrot.lane.b32.xlu0 %v1577, 80
    %v1685 = vpop.permute.xlu0 %1684
    %v1686 = vsel %vm302, %v1685, 0
    %1688 = vmatprep.subr.mxu0 0.0
    %1689 = vmatpush1.msra.mxu0 %v299
    %1690 = vmatprep.subr.mxu0 0.0
    %1691 = vmatpush1.msra.mxu0 %v300
    %1692 = vmatprep.subr.mxu0 0.0
    %1693 = vmatpush1.msra.mxu0 0.0
    %1694 = vmatprep.subr.mxu0 0.0
    %1695 = vmatpush1.msra.mxu0 0.0
    %1696 = vmatprep.subr.mxu0 0.0
    %1697 = vmatpush1.msra.mxu0 0.0
    %1698 = vmatprep.subr.mxu0 0.0
    %1699 = vmatpush1.msra.mxu0 0.0
    %1700 = vmatprep.subr.mxu0 0.0
    %1701 = vmatpush1.msra.mxu0 0.0
    %1702 = vmatprep.subr.mxu0 0.0
    %1703 = vmatpush1.msra.mxu0 0.0
    %1704 = vmatprep.subr.mxu0 0.0
    %1705 = vmatpush1.msra.mxu0 0.0
    %1706 = vmatprep.subr.mxu0 0.0
    %1707 = vmatpush1.msra.mxu0 0.0
    %1708 = vmatprep.subr.mxu0 0.0
    %1709 = vmatpush1.msra.mxu0 0.0
    %1710 = vmatprep.subr.mxu0 0.0
    %1711 = vmatpush1.msra.mxu0 0.0
    %1712 = vmatprep.subr.mxu0 0.0
    %1713 = vmatpush1.msra.mxu0 0.0
    %1714 = vmatprep.subr.mxu0 0.0
    %1715 = vmatpush1.msra.mxu0 0.0
    %1716 = vmatprep.subr.mxu0 0.0
    %1717 = vmatpush1.msra.mxu0 0.0
    %1718 = vmatprep.subr.mxu0 0.0
    %1719 = vmatpush1.msra.mxu0 0.0
    %1720 = vmatprep.subr.mxu0 0.0
    %1721 = vmatpush1.msra.mxu0 0.0
    %1722 = vmatprep.subr.mxu0 0.0
    %1723 = vmatpush1.msra.mxu0 0.0
    %1724 = vmatprep.subr.mxu0 0.0
    %1725 = vmatpush1.msra.mxu0 0.0
    %1726 = vmatprep.subr.mxu0 0.0
    %1727 = vmatpush1.msra.mxu0 0.0
    %1728 = vmatprep.subr.mxu0 0.0
    %1729 = vmatpush1.msra.mxu0 0.0
    %1730 = vmatprep.subr.mxu0 0.0
    %1731 = vmatpush1.msra.mxu0 0.0
    %1732 = vmatprep.subr.mxu0 0.0
    %1733 = vmatpush1.msra.mxu0 0.0
    %1734 = vmatprep.subr.mxu0 0.0
    %1735 = vmatpush1.msra.mxu0 0.0
    %1736 = vmatprep.subr.mxu0 0.0
    %1737 = vmatpush1.msra.mxu0 0.0
    %1738 = vmatprep.subr.mxu0 0.0
    %1739 = vmatpush1.msra.mxu0 0.0
    %1740 = vmatprep.subr.mxu0 0.0
    %1741 = vmatpush1.msra.mxu0 0.0
    %1742 = vmatprep.subr.mxu0 0.0
    %1743 = vmatpush1.msra.mxu0 0.0
    %1744 = vmatprep.subr.mxu0 0.0
    %1745 = vmatpush1.msra.mxu0 0.0
    %1746 = vmatprep.subr.mxu0 0.0
    %1747 = vmatpush1.msra.mxu0 0.0
    %1748 = vmatprep.subr.mxu0 0.0
    %1749 = vmatpush1.msra.mxu0 0.0
    %1750 = vmatprep.subr.mxu0 0.0
    %1751 = vmatpush1.msra.mxu0 0.0
    %1752 = vmatprep.mubr.f32.mxu0 0.0
    %1753 = vmatmul.mubr.f32.gmra.mrb[0].mxu0 %v1686
    %v1754 = vpop.f32.mrb[0].mxu0
    %v1755 = vadd.f32 0.0, %v1754
    %v1756 = vpop.f32.mrb[0].mxu0
    %1757 = vdwg.mxu0
    %v1758 = vadd.f32 %v1682, %v1755
    %v1759 = vxor.u32 %v1758, 2147483648
    %v1760 = vmul.f32 %v1759, 1.442695
    %v1761 = vpow.pop %v1760
    %v1762 = vadd.f32 %v1761, 1.0
    %v1763 = vrcp.pop %v1762
    %v1764 = vmul.f32 1.0, %v1763
    %v1765 = vtanh.pop %v1758
    %v1766 = vmul.f32 %v1764, %v1578
    %1768 = vrot.lane.b32.xlu0 %v1765, 96
    %v1769 = vpop.permute.xlu0 %1768
    %v1771 = vmul.f32 %v1764, %v1769
    %1773 = vrot.lane.b32.xlu0 %v1771, 16
    %v1774 = vpop.permute.xlu0 %1773
    %v1776 = vadd.f32 %v1766, %v1774
    %v1777 = vtanh.pop %v1776
    %1779 = vrot.lane.b32.xlu0 %v1777, 32
    %v1780 = vpop.permute.xlu0 %1779
    %v1782 = vmul.f32 %v1764, %v1780
    %v1783 = vsel %vm619, %v1782, %v1577
    %v1784 = vsel %vm619, %v1776, %v1578
    %v1785 = vld [vmem:[#allocation2 + $0xe] sm:$0x3]
    %1787 = vrot.lane.b32.xlu0 %v1680, 80
    %v1788 = vpop.permute.xlu0 %1787
    %v1789 = vsel %vm302, %v1788, 0
    %1791 = vmatprep.subr.mxu0 0.0
    %1792 = vmatpush1.msra.mxu0 %v297
    %1793 = vmatprep.subr.mxu0 0.0
    %1794 = vmatpush1.msra.mxu0 %v298
    %1795 = vmatprep.subr.mxu0 0.0
    %1796 = vmatpush1.msra.mxu0 0.0
    %1797 = vmatprep.subr.mxu0 0.0
    %1798 = vmatpush1.msra.mxu0 0.0
    %1799 = vmatprep.subr.mxu0 0.0
    %1800 = vmatpush1.msra.mxu0 0.0
    %1801 = vmatprep.subr.mxu0 0.0
    %1802 = vmatpush1.msra.mxu0 0.0
    %1803 = vmatprep.subr.mxu0 0.0
    %1804 = vmatpush1.msra.mxu0 0.0
    %1805 = vmatprep.subr.mxu0 0.0
    %1806 = vmatpush1.msra.mxu0 0.0
    %1807 = vmatprep.subr.mxu0 0.0
    %1808 = vmatpush1.msra.mxu0 0.0
    %1809 = vmatprep.subr.mxu0 0.0
    %1810 = vmatpush1.msra.mxu0 0.0
    %1811 = vmatprep.subr.mxu0 0.0
    %1812 = vmatpush1.msra.mxu0 0.0
    %1813 = vmatprep.subr.mxu0 0.0
    %1814 = vmatpush1.msra.mxu0 0.0
    %1815 = vmatprep.subr.mxu0 0.0
    %1816 = vmatpush1.msra.mxu0 0.0
    %1817 = vmatprep.subr.mxu0 0.0
    %1818 = vmatpush1.msra.mxu0 0.0
    %1819 = vmatprep.subr.mxu0 0.0
    %1820 = vmatpush1.msra.mxu0 0.0
    %1821 = vmatprep.subr.mxu0 0.0
    %1822 = vmatpush1.msra.mxu0 0.0
    %1823 = vmatprep.subr.mxu0 0.0
    %1824 = vmatpush1.msra.mxu0 0.0
    %1825 = vmatprep.subr.mxu0 0.0
    %1826 = vmatpush1.msra.mxu0 0.0
    %1827 = vmatprep.subr.mxu0 0.0
    %1828 = vmatpush1.msra.mxu0 0.0
    %1829 = vmatprep.subr.mxu0 0.0
    %1830 = vmatpush1.msra.mxu0 0.0
    %1831 = vmatprep.subr.mxu0 0.0
    %1832 = vmatpush1.msra.mxu0 0.0
    %1833 = vmatprep.subr.mxu0 0.0
    %1834 = vmatpush1.msra.mxu0 0.0
    %1835 = vmatprep.subr.mxu0 0.0
    %1836 = vmatpush1.msra.mxu0 0.0
    %1837 = vmatprep.subr.mxu0 0.0
    %1838 = vmatpush1.msra.mxu0 0.0
    %1839 = vmatprep.subr.mxu0 0.0
    %1840 = vmatpush1.msra.mxu0 0.0
    %1841 = vmatprep.subr.mxu0 0.0
    %1842 = vmatpush1.msra.mxu0 0.0
    %1843 = vmatprep.subr.mxu0 0.0
    %1844 = vmatpush1.msra.mxu0 0.0
    %1845 = vmatprep.subr.mxu0 0.0
    %1846 = vmatpush1.msra.mxu0 0.0
    %1847 = vmatprep.subr.mxu0 0.0
    %1848 = vmatpush1.msra.mxu0 0.0
    %1849 = vmatprep.subr.mxu0 0.0
    %1850 = vmatpush1.msra.mxu0 0.0
    %1851 = vmatprep.subr.mxu0 0.0
    %1852 = vmatpush1.msra.mxu0 0.0
    %1853 = vmatprep.subr.mxu0 0.0
    %1854 = vmatpush1.msra.mxu0 0.0
    %1855 = vmatprep.mubr.f32.mxu0 0.0
    %1856 = vmatmul.mubr.f32.gmra.mrb[0].mxu0 %v1789
    %v1857 = vpop.f32.mrb[0].mxu0
    %v1858 = vadd.f32 0.0, %v1857
    %v1859 = vpop.f32.mrb[0].mxu0
    %1860 = vdwg.mxu0
    %v1861 = vadd.f32 %v1785, %v1858
    %v1862 = vxor.u32 %v1861, 2147483648
    %v1863 = vmul.f32 %v1862, 1.442695
    %v1864 = vpow.pop %v1863
    %v1865 = vadd.f32 %v1864, 1.0
    %v1866 = vrcp.pop %v1865
    %v1867 = vmul.f32 1.0, %v1866
    %v1868 = vtanh.pop %v1861
    %v1869 = vmul.f32 %v1867, %v1681
    %1871 = vrot.lane.b32.xlu0 %v1868, 96
    %v1872 = vpop.permute.xlu0 %1871
    %v1874 = vmul.f32 %v1867, %v1872
    %1876 = vrot.lane.b32.xlu0 %v1874, 16
    %v1877 = vpop.permute.xlu0 %1876
    %v1879 = vadd.f32 %v1869, %v1877
    %v1880 = vtanh.pop %v1879
    %1882 = vrot.lane.b32.xlu0 %v1880, 32
    %v1883 = vpop.permute.xlu0 %1882
    %v1885 = vmul.f32 %v1867, %v1883
    %v1886 = vsel %vm510, %v1885, %v1680
    %v1887 = vld [vmem:[#allocation3] sm:$0x3]
    %1889 = vrot.lane.b32.xlu0 %v1783, 80
    %v1890 = vpop.permute.xlu0 %1889
    %v1891 = vsel %vm302, %v1890, 0
    %1893 = vmatprep.subr.mxu0 0.0
    %1894 = vmatpush1.msra.mxu0 %v299
    %1895 = vmatprep.subr.mxu0 0.0
    %1896 = vmatpush1.msra.mxu0 %v300
    %1897 = vmatprep.subr.mxu0 0.0
    %1898 = vmatpush1.msra.mxu0 0.0
    %1899 = vmatprep.subr.mxu0 0.0
    %1900 = vmatpush1.msra.mxu0 0.0
    %1901 = vmatprep.subr.mxu0 0.0
    %1902 = vmatpush1.msra.mxu0 0.0
    %1903 = vmatprep.subr.mxu0 0.0
    %1904 = vmatpush1.msra.mxu0 0.0
    %1905 = vmatprep.subr.mxu0 0.0
    %1906 = vmatpush1.msra.mxu0 0.0
    %1907 = vmatprep.subr.mxu0 0.0
    %1908 = vmatpush1.msra.mxu0 0.0
    %1909 = vmatprep.subr.mxu0 0.0
    %1910 = vmatpush1.msra.mxu0 0.0
    %1911 = vmatprep.subr.mxu0 0.0
    %1912 = vmatpush1.msra.mxu0 0.0
    %1913 = vmatprep.subr.mxu0 0.0
    %1914 = vmatpush1.msra.mxu0 0.0
    %1915 = vmatprep.subr.mxu0 0.0
    %1916 = vmatpush1.msra.mxu0 0.0
    %1917 = vmatprep.subr.mxu0 0.0
    %1918 = vmatpush1.msra.mxu0 0.0
    %1919 = vmatprep.subr.mxu0 0.0
    %1920 = vmatpush1.msra.mxu0 0.0
    %1921 = vmatprep.subr.mxu0 0.0
    %1922 = vmatpush1.msra.mxu0 0.0
    %1923 = vmatprep.subr.mxu0 0.0
    %1924 = vmatpush1.msra.mxu0 0.0
    %1925 = vmatprep.subr.mxu0 0.0
    %1926 = vmatpush1.msra.mxu0 0.0
    %1927 = vmatprep.subr.mxu0 0.0
    %1928 = vmatpush1.msra.mxu0 0.0
    %1929 = vmatprep.subr.mxu0 0.0
    %1930 = vmatpush1.msra.mxu0 0.0
    %1931 = vmatprep.subr.mxu0 0.0
    %1932 = vmatpush1.msra.mxu0 0.0
    %1933 = vmatprep.subr.mxu0 0.0
    %1934 = vmatpush1.msra.mxu0 0.0
    %1935 = vmatprep.subr.mxu0 0.0
    %1936 = vmatpush1.msra.mxu0 0.0
    %1937 = vmatprep.subr.mxu0 0.0
    %1938 = vmatpush1.msra.mxu0 0.0
    %1939 = vmatprep.subr.mxu0 0.0
    %1940 = vmatpush1.msra.mxu0 0.0
    %1941 = vmatprep.subr.mxu0 0.0
    %1942 = vmatpush1.msra.mxu0 0.0
    %1943 = vmatprep.subr.mxu0 0.0
    %1944 = vmatpush1.msra.mxu0 0.0
    %1945 = vmatprep.subr.mxu0 0.0
    %1946 = vmatpush1.msra.mxu0 0.0
    %1947 = vmatprep.subr.mxu0 0.0
    %1948 = vmatpush1.msra.mxu0 0.0
    %1949 = vmatprep.subr.mxu0 0.0
    %1950 = vmatpush1.msra.mxu0 0.0
    %1951 = vmatprep.subr.mxu0 0.0
    %1952 = vmatpush1.msra.mxu0 0.0
    %1953 = vmatprep.subr.mxu0 0.0
    %1954 = vmatpush1.msra.mxu0 0.0
    %1955 = vmatprep.subr.mxu0 0.0
    %1956 = vmatpush1.msra.mxu0 0.0
    %1957 = vmatprep.mubr.f32.mxu0 0.0
    %1958 = vmatmul.mubr.f32.gmra.mrb[0].mxu0 %v1891
    %v1959 = vpop.f32.mrb[0].mxu0
    %v1960 = vadd.f32 0.0, %v1959
    %v1961 = vpop.f32.mrb[0].mxu0
    %1962 = vdwg.mxu0
    %v1963 = vadd.f32 %v1887, %v1960
    %v1964 = vxor.u32 %v1963, 2147483648
    %v1965 = vmul.f32 %v1964, 1.442695
    %v1966 = vpow.pop %v1965
    %v1967 = vadd.f32 %v1966, 1.0
    %v1968 = vrcp.pop %v1967
    %v1969 = vmul.f32 1.0, %v1968
    %v1970 = vtanh.pop %v1963
    %v1971 = vmul.f32 %v1969, %v1784
    %1973 = vrot.lane.b32.xlu0 %v1970, 96
    %v1974 = vpop.permute.xlu0 %1973
    %v1976 = vmul.f32 %v1969, %v1974
    %1978 = vrot.lane.b32.xlu0 %v1976, 16
    %v1979 = vpop.permute.xlu0 %1978
    %v1981 = vadd.f32 %v1971, %v1979
    %v1982 = vtanh.pop %v1981
    %1984 = vrot.lane.b32.xlu0 %v1982, 32
    %v1985 = vpop.permute.xlu0 %1984
    %v1987 = vmul.f32 %v1969, %v1985
    %v1988 = vsel %vm406, %v1987, %v1783
    %v1989 = vld [vmem:[%s8] sm:$0xff]
    %v1990 = vld [vmem:[%s8 + $0x8] sm:$0xff]
    %v1991 = vld [vmem:[%s8 + $0x10] sm:$0xff]
    %v1992 = vld [vmem:[%s8 + $0x18] sm:$0xff]
    %v1993 = vld [vmem:[%s8 + $0x20] sm:$0xff]
    %v1994 = vld [vmem:[%s8 + $0x28] sm:$0xff]
    %1996 = vrot.lane.b32.xlu0 %v1886, 80
    %v1997 = vpop.permute.xlu0 %1996
    %v1998 = vsel %vm302, %v1997, 0
    %2000 = vmatprep.subr.mxu0 0.0
    %2001 = vmatpush1.msra.mxu0 %v1991
    %2002 = vmatprep.subr.mxu0 0.0
    %2003 = vmatpush1.msra.mxu0 %v1992
    %2004 = vmatprep.subr.mxu0 0.0
    %2005 = vmatpush1.msra.mxu0 0.0
    %2006 = vmatprep.subr.mxu0 0.0
    %2007 = vmatpush1.msra.mxu0 0.0
    %2008 = vmatprep.subr.mxu0 0.0
    %2009 = vmatpush1.msra.mxu0 0.0
    %2010 = vmatprep.subr.mxu0 0.0
    %2011 = vmatpush1.msra.mxu0 0.0
    %2012 = vmatprep.subr.mxu0 0.0
    %2013 = vmatpush1.msra.mxu0 0.0
    %2014 = vmatprep.subr.mxu0 0.0
    %2015 = vmatpush1.msra.mxu0 0.0
    %2016 = vmatprep.subr.mxu0 0.0
    %2017 = vmatpush1.msra.mxu0 0.0
    %2018 = vmatprep.subr.mxu0 0.0
    %2019 = vmatpush1.msra.mxu0 0.0
    %2020 = vmatprep.subr.mxu0 0.0
    %2021 = vmatpush1.msra.mxu0 0.0
    %2022 = vmatprep.subr.mxu0 0.0
    %2023 = vmatpush1.msra.mxu0 0.0
    %2024 = vmatprep.subr.mxu0 0.0
    %2025 = vmatpush1.msra.mxu0 0.0
    %2026 = vmatprep.subr.mxu0 0.0
    %2027 = vmatpush1.msra.mxu0 0.0
    %2028 = vmatprep.subr.mxu0 0.0
    %2029 = vmatpush1.msra.mxu0 0.0
    %2030 = vmatprep.subr.mxu0 0.0
    %2031 = vmatpush1.msra.mxu0 0.0
    %2032 = vmatprep.subr.mxu0 0.0
    %2033 = vmatpush1.msra.mxu0 0.0
    %2034 = vmatprep.subr.mxu0 0.0
    %2035 = vmatpush1.msra.mxu0 0.0
    %2036 = vmatprep.subr.mxu0 0.0
    %2037 = vmatpush1.msra.mxu0 0.0
    %2038 = vmatprep.subr.mxu0 0.0
    %2039 = vmatpush1.msra.mxu0 0.0
    %2040 = vmatprep.subr.mxu0 0.0
    %2041 = vmatpush1.msra.mxu0 0.0
    %2042 = vmatprep.subr.mxu0 0.0
    %2043 = vmatpush1.msra.mxu0 0.0
    %2044 = vmatprep.subr.mxu0 0.0
    %2045 = vmatpush1.msra.mxu0 0.0
    %2046 = vmatprep.subr.mxu0 0.0
    %2047 = vmatpush1.msra.mxu0 0.0
    %2048 = vmatprep.subr.mxu0 0.0
    %2049 = vmatpush1.msra.mxu0 0.0
    %2050 = vmatprep.subr.mxu0 0.0
    %2051 = vmatpush1.msra.mxu0 0.0
    %2052 = vmatprep.subr.mxu0 0.0
    %2053 = vmatpush1.msra.mxu0 0.0
    %2054 = vmatprep.subr.mxu0 0.0
    %2055 = vmatpush1.msra.mxu0 0.0
    %2056 = vmatprep.subr.mxu0 0.0
    %2057 = vmatpush1.msra.mxu0 0.0
    %2058 = vmatprep.subr.mxu0 0.0
    %2059 = vmatpush1.msra.mxu0 0.0
    %2060 = vmatprep.subr.mxu0 0.0
    %2061 = vmatpush1.msra.mxu0 0.0
    %2062 = vmatprep.subr.mxu0 0.0
    %2063 = vmatpush1.msra.mxu0 0.0
    %2064 = vmatprep.mubr.f32.mxu0 0.0
    %2065 = vmatmul.mubr.f32.gmra.mrb[0].mxu0 %v1998
    %v2066 = vpop.f32.mrb[0].mxu0
    %v2067 = vadd.f32 0.0, %v2066
    %v2068 = vpop.f32.mrb[0].mxu0
    %2069 = vdwg.mxu0
    %2071 = vrot.lane.b32.xlu0 %v1988, 80
    %v2072 = vpop.permute.xlu0 %2071
    %v2073 = vsel %vm302, %v2072, 0
    %2075 = vmatprep.subr.mxu0 0.0
    %2076 = vmatpush1.msra.mxu0 %v1989
    %2077 = vmatprep.subr.mxu0 0.0
    %2078 = vmatpush1.msra.mxu0 %v1990
    %2079 = vmatprep.subr.mxu0 0.0
    %2080 = vmatpush1.msra.mxu0 0.0
    %2081 = vmatprep.subr.mxu0 0.0
    %2082 = vmatpush1.msra.mxu0 0.0
    %2083 = vmatprep.subr.mxu0 0.0
    %2084 = vmatpush1.msra.mxu0 0.0
    %2085 = vmatprep.subr.mxu0 0.0
    %2086 = vmatpush1.msra.mxu0 0.0
    %2087 = vmatprep.subr.mxu0 0.0
    %2088 = vmatpush1.msra.mxu0 0.0
    %2089 = vmatprep.subr.mxu0 0.0
    %2090 = vmatpush1.msra.mxu0 0.0
    %2091 = vmatprep.subr.mxu0 0.0
    %2092 = vmatpush1.msra.mxu0 0.0
    %2093 = vmatprep.subr.mxu0 0.0
    %2094 = vmatpush1.msra.mxu0 0.0
    %2095 = vmatprep.subr.mxu0 0.0
    %2096 = vmatpush1.msra.mxu0 0.0
    %2097 = vmatprep.subr.mxu0 0.0
    %2098 = vmatpush1.msra.mxu0 0.0
    %2099 = vmatprep.subr.mxu0 0.0
    %2100 = vmatpush1.msra.mxu0 0.0
    %2101 = vmatprep.subr.mxu0 0.0
    %2102 = vmatpush1.msra.mxu0 0.0
    %2103 = vmatprep.subr.mxu0 0.0
    %2104 = vmatpush1.msra.mxu0 0.0
    %2105 = vmatprep.subr.mxu0 0.0
    %2106 = vmatpush1.msra.mxu0 0.0
    %2107 = vmatprep.subr.mxu0 0.0
    %2108 = vmatpush1.msra.mxu0 0.0
    %2109 = vmatprep.subr.mxu0 0.0
    %2110 = vmatpush1.msra.mxu0 0.0
    %2111 = vmatprep.subr.mxu0 0.0
    %2112 = vmatpush1.msra.mxu0 0.0
    %2113 = vmatprep.subr.mxu0 0.0
    %2114 = vmatpush1.msra.mxu0 0.0
    %2115 = vmatprep.subr.mxu0 0.0
    %2116 = vmatpush1.msra.mxu0 0.0
    %2117 = vmatprep.subr.mxu0 0.0
    %2118 = vmatpush1.msra.mxu0 0.0
    %2119 = vmatprep.subr.mxu0 0.0
    %2120 = vmatpush1.msra.mxu0 0.0
    %2121 = vmatprep.subr.mxu0 0.0
    %2122 = vmatpush1.msra.mxu0 0.0
    %2123 = vmatprep.subr.mxu0 0.0
    %2124 = vmatpush1.msra.mxu0 0.0
    %2125 = vmatprep.subr.mxu0 0.0
    %2126 = vmatpush1.msra.mxu0 0.0
    %2127 = vmatprep.subr.mxu0 0.0
    %2128 = vmatpush1.msra.mxu0 0.0
    %2129 = vmatprep.subr.mxu0 0.0
    %2130 = vmatpush1.msra.mxu0 0.0
    %2131 = vmatprep.subr.mxu0 0.0
    %2132 = vmatpush1.msra.mxu0 0.0
    %2133 = vmatprep.subr.mxu0 0.0
    %2134 = vmatpush1.msra.mxu0 0.0
    %2135 = vmatprep.subr.mxu0 0.0
    %2136 = vmatpush1.msra.mxu0 0.0
    %2137 = vmatprep.subr.mxu0 0.0
    %2138 = vmatpush1.msra.mxu0 0.0
    %2139 = vmatprep.mubr.f32.mxu0 0.0
    %2140 = vmatmul.mubr.f32.gmra.mrb[0].mxu0 %v2073
    %v2141 = vpop.f32.mrb[0].mxu0
    %v2142 = vadd.f32 %v2067, %v2141
    %v2143 = vpop.f32.mrb[0].mxu0
    %2144 = vdwg.mxu0
    %v2145 = vld [vmem:[%s9] sm:$0x1]
    %v2147 = vlaneseq
    %v2148 = vshrl.u32 %v2147, 7
    %v2149 = vsub.s32 0, %v2148
    %v2150 = vrot.slane %v2145, %v2149
    %v2152 = vadd.f32 %v2142, %v2150
    %v2153 = vld [vmem:[%s10] sm:$0x3]
    %v2155 = vsel %vm302, %v2153, 0
    %2157 = vmatprep.subr.mxu0 0.0
    %2158 = vmatpush1.msra.mxu0 %v1993
    %2159 = vmatprep.subr.mxu0 0.0
    %2160 = vmatpush1.msra.mxu0 %v1994
    %2161 = vmatprep.subr.mxu0 0.0
    %2162 = vmatpush1.msra.mxu0 0.0
    %2163 = vmatprep.subr.mxu0 0.0
    %2164 = vmatpush1.msra.mxu0 0.0
    %2165 = vmatprep.subr.mxu0 0.0
    %2166 = vmatpush1.msra.mxu0 0.0
    %2167 = vmatprep.subr.mxu0 0.0
    %2168 = vmatpush1.msra.mxu0 0.0
    %2169 = vmatprep.subr.mxu0 0.0
    %2170 = vmatpush1.msra.mxu0 0.0
    %2171 = vmatprep.subr.mxu0 0.0
    %2172 = vmatpush1.msra.mxu0 0.0
    %2173 = vmatprep.subr.mxu0 0.0
    %2174 = vmatpush1.msra.mxu0 0.0
    %2175 = vmatprep.subr.mxu0 0.0
    %2176 = vmatpush1.msra.mxu0 0.0
    %2177 = vmatprep.subr.mxu0 0.0
    %2178 = vmatpush1.msra.mxu0 0.0
    %2179 = vmatprep.subr.mxu0 0.0
    %2180 = vmatpush1.msra.mxu0 0.0
    %2181 = vmatprep.subr.mxu0 0.0
    %2182 = vmatpush1.msra.mxu0 0.0
    %2183 = vmatprep.subr.mxu0 0.0
    %2184 = vmatpush1.msra.mxu0 0.0
    %2185 = vmatprep.subr.mxu0 0.0
    %2186 = vmatpush1.msra.mxu0 0.0
    %2187 = vmatprep.subr.mxu0 0.0
    %2188 = vmatpush1.msra.mxu0 0.0
    %2189 = vmatprep.subr.mxu0 0.0
    %2190 = vmatpush1.msra.mxu0 0.0
    %2191 = vmatprep.subr.mxu0 0.0
    %2192 = vmatpush1.msra.mxu0 0.0
    %2193 = vmatprep.subr.mxu0 0.0
    %2194 = vmatpush1.msra.mxu0 0.0
    %2195 = vmatprep.subr.mxu0 0.0
    %2196 = vmatpush1.msra.mxu0 0.0
    %2197 = vmatprep.subr.mxu0 0.0
    %2198 = vmatpush1.msra.mxu0 0.0
    %2199 = vmatprep.subr.mxu0 0.0
    %2200 = vmatpush1.msra.mxu0 0.0
    %2201 = vmatprep.subr.mxu0 0.0
    %2202 = vmatpush1.msra.mxu0 0.0
    %2203 = vmatprep.subr.mxu0 0.0
    %2204 = vmatpush1.msra.mxu0 0.0
    %2205 = vmatprep.subr.mxu0 0.0
    %2206 = vmatpush1.msra.mxu0 0.0
    %2207 = vmatprep.subr.mxu0 0.0
    %2208 = vmatpush1.msra.mxu0 0.0
    %2209 = vmatprep.subr.mxu0 0.0
    %2210 = vmatpush1.msra.mxu0 0.0
    %2211 = vmatprep.subr.mxu0 0.0
    %2212 = vmatpush1.msra.mxu0 0.0
    %2213 = vmatprep.subr.mxu0 0.0
    %2214 = vmatpush1.msra.mxu0 0.0
    %2215 = vmatprep.subr.mxu0 0.0
    %2216 = vmatpush1.msra.mxu0 0.0
    %2217 = vmatprep.subr.mxu0 0.0
    %2218 = vmatpush1.msra.mxu0 0.0
    %2219 = vmatprep.subr.mxu0 0.0
    %2220 = vmatpush1.msra.mxu0 0.0
    %2221 = vmatprep.mubr.f32.mxu0 0.0
    %2222 = vmatmul.mubr.f32.gmra.mrb[0].mxu0 %v2155
    %v2223 = vpop.f32.mrb[0].mxu0
    %v2224 = vadd.f32 0.0, %v2223
    %v2225 = vpop.f32.mrb[0].mxu0
    %2226 = vdwg.mxu0
    %v2227 = vadd.f32 %v2152, %v2224
    %vm2228 = vcmask 58368
    %2229 = vst.msk [vmem:[#allocation13] sm:$0x3] %vm2228, %v2227
    // Predicated region
    $region66: #{tpu_custom_call.1} parent=1 // pred_check
      _
    $region67: #{tpu_custom_call.1} parent=1 // pred_check_branch
      %2231 = sbr.rel (0) target = $region69
    $region68: #{tpu_custom_call.1} parent=1 // pred_region
      %s2233 = ssub.s32 32, 32
      %2234 = vsyncadd [#allocation6], %s2233
      %s2236 = sshll.u32 [#allocation13], 4
      %s2237 = int_to_ptr.vmem [resolvable:$true] %s2236
      %2239 = dma.vmem_to_hbm [thread:$0]  %s2237, 32, %s11, [#allocation6]
    $region69: #{tpu_custom_call.1} parent=1 // pred_fallthru
      _
    // Predicated region
    $region70: #{tpu_custom_call.1} parent=1 // pred_check
      _
    $region71: #{tpu_custom_call.1} parent=1 // pred_check_branch
      %2241 = sbr.rel (0) target = $region73
    $region72: #{tpu_custom_call.1} parent=1 // pred_region
      %2242 = dma.done [#allocation6], 32
    $region73: #{tpu_custom_call.1} parent=1 // pred_fallthru
      _
    %2243 = vsyncpa [#allocation5], 1
    %2244 = vsyncpa [#allocation8], 1
    %2245 = vsyncpa [#allocation11], 1
    %2246 = vsyncpa [#allocation6], 1

</llo_original>
